<compile_context>
chip_gen: v7x
topology: tpu7x:2x2x1
jax: 0.10.0
libtpu: 0.0.40
codegen_flags: <defaults>
</compile_context>

<pallas_src>
import jax
import jax.numpy as jnp
from jax.experimental import pallas as pl
from jax.experimental.pallas import tpu as pltpu

LANE = 128
BF16_SUBLANE = 16          # minimum sublane tile for bf16 operands
NEG_INF = -1e30            # padded-logit bias; exp underflows to 0 in f32


def _round_up(n, m):
    return ((n + m - 1) // m) * m


def _cdiv(a, b):
    return -(-a // b)


def _default_num_batch_tiles():
    """1 grid step on single-TensorCore chips (v5e/v6e); 2 on v7x so the
    'parallel' batch axis is sharded across both TensorCores."""
    try:
        kind = getattr(jax.devices()[0], "device_kind", "").lower()
    except Exception:
        return 1
    return 2 if "v7" in kind else 1


def policy_net_kernel(x_ref, w1_ref, b1_ref, w2_ref, b2_ref,
                      w3_ref, b3_ref, w4_ref, b4_ref, o_ref):
    # Layers 1..3: bf16 MXU matmuls with f32 accumulation; bias + ReLU in f32
    # on the VPU, recast to bf16 for the next MXU pass.
    h = jnp.dot(x_ref[...], w1_ref[...], preferred_element_type=jnp.float32)
    h = jnp.maximum(h + b1_ref[...], 0.0).astype(jnp.bfloat16)
    h = jnp.dot(h, w2_ref[...], preferred_element_type=jnp.float32)
    h = jnp.maximum(h + b2_ref[...], 0.0).astype(jnp.bfloat16)
    h = jnp.dot(h, w3_ref[...], preferred_element_type=jnp.float32)
    h = jnp.maximum(h + b3_ref[...], 0.0).astype(jnp.bfloat16)
    # Layer 4: padded action lanes carry NEG_INF via the bias -> ~0 probability.
    logits = jnp.dot(h, w4_ref[...], preferred_element_type=jnp.float32)
    logits = logits + b4_ref[...]
    # Numerically stable softmax over the lane-dense (padded) action dim.
    # Exact divide (not approx reciprocal): these probabilities feed REINFORCE
    # sampling / log-probs, so rows must sum to 1; the (tile_b,1) divide is
    # negligible next to the matmuls.
    m = jnp.max(logits, axis=-1, keepdims=True)
    e = jnp.exp(logits - m)
    denom = jnp.sum(e, axis=-1, keepdims=True)
    # TODO(synk): fuse categorical sampling / log-prob into the kernel so only
    # a (tile_b, 128) action/log-prob pair leaves VMEM instead of full probs.
    o_ref[...] = (e / denom).astype(o_ref.dtype)


def _init_linear(key, fan_in, fan_out):
    """torch.nn.Linear default init: U(-1/sqrt(fan_in), 1/sqrt(fan_in))."""
    kw, kb = jax.random.split(key)
    bound = 1.0 / jnp.sqrt(jnp.float32(fan_in))
    # Stored as (in, out) so the kernel does x @ W + b (== torch's x @ W.T + b).
    w = jax.random.uniform(kw, (fan_in, fan_out), jnp.float32, -bound, bound)
    b = jax.random.uniform(kb, (1, fan_out), jnp.float32, -bound, bound)
    return w, b


def _pad_weight(w, in_pad, out_pad, dtype):
    wp = jnp.zeros((in_pad, out_pad), jnp.float32)
    wp = wp.at[: w.shape[0], : w.shape[1]].set(w)
    return wp.astype(dtype)


def _pad_bias(b, out_pad, pad_value=0.0):
    bp = jnp.full((1, out_pad), pad_value, jnp.float32)
    return bp.at[:, : b.shape[1]].set(b)


def make_policy_net_params(key, input_dim, action_dim):
    dim_h1 = input_dim * 10
    dim_h3 = action_dim * 10
    dim_h2 = int((dim_h1 + dim_h3) / 2)

    k1, k2, k3, k4 = jax.random.split(key, 4)
    w1, b1 = _init_linear(k1, input_dim, dim_h1)
    w2, b2 = _init_linear(k2, dim_h1, dim_h2)
    w3, b3 = _init_linear(k3, dim_h2, dim_h3)
    w4, b4 = _init_linear(k4, dim_h3, action_dim)

    # Input dim is only padded to the bf16 sublane tile (16), not to 128 lanes:
    # the kernel takes x with its natural feature width (block dim == full dim).
    d_in_p = _round_up(input_dim, BF16_SUBLANE)   # 16  -> 16
    h1_p = _round_up(dim_h1, LANE)                # 160 -> 256
    h2_p = _round_up(dim_h2, LANE)                # 100 -> 128
    h3_p = _round_up(dim_h3, LANE)                # 40  -> 128
    out_p = _round_up(action_dim, LANE)           # 4   -> 128 (lane-dense out)

    return {
        "input_dim": input_dim,
        "action_dim": action_dim,
        # Padded, kernel-ready tensors: weights bf16, biases f32.
        "w1": _pad_weight(w1, d_in_p, h1_p, jnp.bfloat16),
        "b1": _pad_bias(b1, h1_p),
        "w2": _pad_weight(w2, h1_p, h2_p, jnp.bfloat16),
        "b2": _pad_bias(b2, h2_p),
        "w3": _pad_weight(w3, h2_p, h3_p, jnp.bfloat16),
        "b3": _pad_bias(b3, h3_p),
        "w4": _pad_weight(w4, h3_p, out_p, jnp.bfloat16),
        # Padded action lanes get NEG_INF so softmax gives them ~0 probability.
        "b4": _pad_bias(b4, out_p, pad_value=NEG_INF),
        # Unpadded f32 copies for the pure-JAX reference.
        "ref": (w1, b1, w2, b2, w3, b3, w4, b4),
    }


def policy_net_forward(x, params, *, num_batch_tiles=None, max_tile_b=2048,
                       out_dtype=jnp.float32):
    """Forward pass.  x: (B, ...) flattened to (B, input_dim) like nn.Flatten().

    num_batch_tiles: target grid steps (None = auto: 1 on v5e/v6e, 2 on v7x so
    both TensorCores get a step).  tile_b grows with the batch, capped at
    max_tile_b rows so large rollout batches stay inside scoped VMEM.
    """
    input_dim = params["input_dim"]
    action_dim = params["action_dim"]
    w1, b1 = params["w1"], params["b1"]
    w2, b2 = params["w2"], params["b2"]
    w3, b3 = params["w3"], params["b3"]
    w4, b4 = params["w4"], params["b4"]
    d_in_p = w1.shape[0]
    out_p = w4.shape[1]

    b = x.shape[0]
    x2 = jnp.reshape(x, (b, -1))
    assert x2.shape[1] == input_dim, (x2.shape, input_dim)

    if num_batch_tiles is None:
        num_batch_tiles = _default_num_batch_tiles()
    assert max_tile_b % BF16_SUBLANE == 0, max_tile_b

    # Single grid step on v5e/v6e (per-step overhead dominates at this FLOP
    # count), two on v7x; tile_b is a multiple of 16 (bf16 sublane tile).
    tile_b = min(_round_up(_cdiv(b, num_batch_tiles), BF16_SUBLANE), max_tile_b)
    grid_b = _cdiv(b, tile_b)
    b_pad = grid_b * tile_b

    # bf16 input, lanes NOT padded to 128; only batch rows padded, only if needed.
    x_bf = x2.astype(jnp.bfloat16)
    if b_pad != b or d_in_p != input_dim:
        x_in = jnp.pad(x_bf, ((0, b_pad - b), (0, d_in_p - input_dim)))
    else:
        x_in = x_bf

    # Advisory cost hint for XLA's scheduler.
    flops = 2 * b_pad * (w1.shape[0] * w1.shape[1] + w2.shape[0] * w2.shape[1]
                         + w3.shape[0] * w3.shape[1] + w4.shape[0] * w4.shape[1])
    bytes_accessed = (x_in.size * 2
                      + 2 * (w1.size + w2.size + w3.size + w4.size)
                      + 4 * (b1.size + b2.size + b3.size + b4.size)
                      + jnp.dtype(out_dtype).itemsize * b_pad * out_p)
    cost = pl.CostEstimate(flops=flops, transcendentals=b_pad * out_p,
                           bytes_accessed=bytes_accessed)

    const = lambda i: (0, 0)  # weights/biases: same block for every grid step

    def build(single_buffer_weights):
        if single_buffer_weights:
            # Constant-index blocks: double buffering buys nothing; halve their
            # resident VMEM and skip the buffer-swap bookkeeping.
            cspec = lambda s: pl.BlockSpec(
                s, const, pipeline_mode=pl.Buffered(buffer_count=1))
        else:
            cspec = lambda s: pl.BlockSpec(s, const)
        return pl.pallas_call(
            policy_net_kernel,
            out_shape=jax.ShapeDtypeStruct((b_pad, out_p), out_dtype),
            grid_spec=pltpu.PrefetchScalarGridSpec(
                num_scalar_prefetch=0,
                grid=(grid_b,),
                in_specs=[
                    pl.BlockSpec((tile_b, d_in_p), lambda i: (i, 0)),
                    cspec(w1.shape), cspec(b1.shape),
                    cspec(w2.shape), cspec(b2.shape),
                    cspec(w3.shape), cspec(b3.shape),
                    cspec(w4.shape), cspec(b4.shape),
                ],
                out_specs=pl.BlockSpec((tile_b, out_p), lambda i: (i, 0)),
            ),
            compiler_params=pltpu.CompilerParams(
                dimension_semantics=("parallel",)),
            cost_estimate=cost,
        )

    args = (x_in, w1, b1, w2, b2, w3, b3, w4, b4)
    try:
        out = jax.block_until_ready(build(True)(*args))
    except Exception:
        # This Pallas build rejects single-buffered inputs; fall back to the
        # default double-buffered constant blocks (~200 KiB extra VMEM only).
        out = jax.block_until_ready(build(False)(*args))

    # Drop batch-row padding and padded action lanes.
    return out[:b, :action_dim]


def policy_net_ref(x, params):
    """Pure-JAX f32 reference matching the torch module exactly."""
    b = x.shape[0]
    h = jnp.reshape(x, (b, -1)).astype(jnp.float32)
    w1, b1, w2, b2, w3, b3, w4, b4 = params["ref"]
    h = jnp.maximum(h @ w1 + b1, 0.0)
    h = jnp.maximum(h @ w2 + b2, 0.0)
    h = jnp.maximum(h @ w3 + b3, 0.0)
    logits = h @ w4 + b4
    return jax.nn.softmax(logits, axis=-1)


if __name__ == "__main__":
    input_dim = 16     # flattened observation size (4x4 observation)
    action_dim = 4

    key = jax.random.PRNGKey(0)
    k_params, k_x = jax.random.split(key)
    params = make_policy_net_params(k_params, input_dim, action_dim)

    batch = 256
    x = jax.random.normal(k_x, (batch, 4, 4), jnp.float32)
    ref = policy_net_ref(x, params)

    # Default tiling: whole batch in one grid step (v5e/v6e), two steps on v7x.
    out = jax.block_until_ready(policy_net_forward(x, params))
    assert out.shape == (batch, action_dim)
    assert bool(jnp.all(jnp.isfinite(out)))
    # Exact softmax divide -> rows sum to 1 to f32 accuracy.
    assert jnp.allclose(jnp.sum(out, axis=-1), 1.0, atol=1e-4)
    # bf16 matmuls -> loosened tolerances vs the f32 reference.
    assert jnp.allclose(out, ref, atol=2e-2, rtol=2e-2)

    # Explicit 2-step grid (the v7x two-TensorCore path) must match too.
    out2 = jax.block_until_ready(
        policy_net_forward(x, params, num_batch_tiles=2))
    assert jnp.allclose(out2, ref, atol=2e-2, rtol=2e-2)

    # Tiny / odd batch (single RL step): exercises the batch-row padding path.
    out_small = jax.block_until_ready(policy_net_forward(x[:2], params))
    assert out_small.shape == (2, action_dim)
    assert jnp.allclose(out_small, ref[:2], atol=2e-2, rtol=2e-2)

    print("KERNEL_OK")
</pallas_src>

<mosaic_0001>
module attributes {stable_mosaic.version = 11 : i64} {
  func.func @policy_net_kernel(%arg0: i32, %arg1: memref<256x16xbf16, #tpu.memory_space<vmem>>, %arg2: memref<16x256xbf16, #tpu.memory_space<vmem>>, %arg3: memref<1x256xf32, #tpu.memory_space<vmem>>, %arg4: memref<256x128xbf16, #tpu.memory_space<vmem>>, %arg5: memref<1x128xf32, #tpu.memory_space<vmem>>, %arg6: memref<128x128xbf16, #tpu.memory_space<vmem>>, %arg7: memref<1x128xf32, #tpu.memory_space<vmem>>, %arg8: memref<128x128xbf16, #tpu.memory_space<vmem>>, %arg9: memref<1x128xf32, #tpu.memory_space<vmem>>, %arg10: memref<256x128xf32, #tpu.memory_space<vmem>>) attributes {dimension_semantics = [#tpu.dimension_semantics<parallel>], iteration_bounds = array<i64: 1>, scalar_prefetch = 0 : i64, scratch_operands = 0 : i64, tpu.core_type = #tpu.core_type<tc>, window_params = [{transform_indices = @transform_0, window_bounds = array<i64: 256, 16>}, {pipeline_mode = #tpu.pipeline_mode<synchronous>, transform_indices = @transform_1, window_bounds = array<i64: 16, 256>}, {pipeline_mode = #tpu.pipeline_mode<synchronous>, transform_indices = @transform_2, window_bounds = array<i64: 1, 256>}, {pipeline_mode = #tpu.pipeline_mode<synchronous>, transform_indices = @transform_3, window_bounds = array<i64: 256, 128>}, {pipeline_mode = #tpu.pipeline_mode<synchronous>, transform_indices = @transform_4, window_bounds = array<i64: 1, 128>}, {pipeline_mode = #tpu.pipeline_mode<synchronous>, transform_indices = @transform_5, window_bounds = array<i64: 128, 128>}, {pipeline_mode = #tpu.pipeline_mode<synchronous>, transform_indices = @transform_6, window_bounds = array<i64: 1, 128>}, {pipeline_mode = #tpu.pipeline_mode<synchronous>, transform_indices = @transform_7, window_bounds = array<i64: 128, 128>}, {pipeline_mode = #tpu.pipeline_mode<synchronous>, transform_indices = @transform_8, window_bounds = array<i64: 1, 128>}, {transform_indices = @transform_9, window_bounds = array<i64: 256, 128>}]} {
    %c0 = arith.constant 0 : index
    %c0_0 = arith.constant 0 : index
    %0 = vector.load %arg1[%c0, %c0_0] : memref<256x16xbf16, #tpu.memory_space<vmem>>, vector<256x16xbf16>
    %c0_1 = arith.constant 0 : index
    %c0_2 = arith.constant 0 : index
    %1 = vector.load %arg2[%c0_1, %c0_2] : memref<16x256xbf16, #tpu.memory_space<vmem>>, vector<16x256xbf16>
    %cst = arith.constant dense<0.000000e+00> : vector<256x256xf32>
    %2 = tpu.matmul %0, %1, %cst {dimension_numbers = #tpu.dot_dimension_numbers<[1], [0], [0], [1], [0, 0, 1, 1], [], []>} : vector<256x16xbf16>, vector<16x256xbf16>, vector<256x256xf32> -> vector<256x256xf32>
    %c0_3 = arith.constant 0 : index
    %c0_4 = arith.constant 0 : index
    %3 = vector.load %arg3[%c0_3, %c0_4] : memref<1x256xf32, #tpu.memory_space<vmem>>, vector<1x256xf32>
    %4 = vector.broadcast %3 : vector<1x256xf32> to vector<256x256xf32>
    %5 = arith.addf %2, %4 : vector<256x256xf32>
    %cst_5 = arith.constant 0.000000e+00 : f32
    %6 = vector.broadcast %cst_5 : f32 to vector<256x256xf32>
    %7 = arith.maximumf %5, %6 : vector<256x256xf32>
    %8 = arith.truncf %7 : vector<256x256xf32> to vector<256x256xbf16>
    %c0_6 = arith.constant 0 : index
    %c0_7 = arith.constant 0 : index
    %9 = vector.load %arg4[%c0_6, %c0_7] : memref<256x128xbf16, #tpu.memory_space<vmem>>, vector<256x128xbf16>
    %cst_8 = arith.constant dense<0.000000e+00> : vector<256x128xf32>
    %10 = tpu.matmul %8, %9, %cst_8 {dimension_numbers = #tpu.dot_dimension_numbers<[1], [0], [0], [1], [0, 0, 1, 1], [], []>} : vector<256x256xbf16>, vector<256x128xbf16>, vector<256x128xf32> -> vector<256x128xf32>
    %c0_9 = arith.constant 0 : index
    %c0_10 = arith.constant 0 : index
    %11 = vector.load %arg5[%c0_9, %c0_10] : memref<1x128xf32, #tpu.memory_space<vmem>>, vector<1x128xf32>
    %12 = vector.broadcast %11 : vector<1x128xf32> to vector<256x128xf32>
    %13 = arith.addf %10, %12 : vector<256x128xf32>
    %cst_11 = arith.constant 0.000000e+00 : f32
    %14 = vector.broadcast %cst_11 : f32 to vector<256x128xf32>
    %15 = arith.maximumf %13, %14 : vector<256x128xf32>
    %16 = arith.truncf %15 : vector<256x128xf32> to vector<256x128xbf16>
    %c0_12 = arith.constant 0 : index
    %c0_13 = arith.constant 0 : index
    %17 = vector.load %arg6[%c0_12, %c0_13] : memref<128x128xbf16, #tpu.memory_space<vmem>>, vector<128x128xbf16>
    %cst_14 = arith.constant dense<0.000000e+00> : vector<256x128xf32>
    %18 = tpu.matmul %16, %17, %cst_14 {dimension_numbers = #tpu.dot_dimension_numbers<[1], [0], [0], [1], [0, 0, 1, 1], [], []>} : vector<256x128xbf16>, vector<128x128xbf16>, vector<256x128xf32> -> vector<256x128xf32>
    %c0_15 = arith.constant 0 : index
    %c0_16 = arith.constant 0 : index
    %19 = vector.load %arg7[%c0_15, %c0_16] : memref<1x128xf32, #tpu.memory_space<vmem>>, vector<1x128xf32>
    %20 = vector.broadcast %19 : vector<1x128xf32> to vector<256x128xf32>
    %21 = arith.addf %18, %20 : vector<256x128xf32>
    %cst_17 = arith.constant 0.000000e+00 : f32
    %22 = vector.broadcast %cst_17 : f32 to vector<256x128xf32>
    %23 = arith.maximumf %21, %22 : vector<256x128xf32>
    %24 = arith.truncf %23 : vector<256x128xf32> to vector<256x128xbf16>
    %c0_18 = arith.constant 0 : index
    %c0_19 = arith.constant 0 : index
    %25 = vector.load %arg8[%c0_18, %c0_19] : memref<128x128xbf16, #tpu.memory_space<vmem>>, vector<128x128xbf16>
    %cst_20 = arith.constant dense<0.000000e+00> : vector<256x128xf32>
    %26 = tpu.matmul %24, %25, %cst_20 {dimension_numbers = #tpu.dot_dimension_numbers<[1], [0], [0], [1], [0, 0, 1, 1], [], []>} : vector<256x128xbf16>, vector<128x128xbf16>, vector<256x128xf32> -> vector<256x128xf32>
    %c0_21 = arith.constant 0 : index
    %c0_22 = arith.constant 0 : index
    %27 = vector.load %arg9[%c0_21, %c0_22] : memref<1x128xf32, #tpu.memory_space<vmem>>, vector<1x128xf32>
    %28 = vector.broadcast %27 : vector<1x128xf32> to vector<256x128xf32>
    %29 = arith.addf %26, %28 : vector<256x128xf32>
    %cst_23 = arith.constant dense<0xFF800000> : vector<256xf32>
    %30 = vector.multi_reduction <maximumf>, %29, %cst_23 [1] : vector<256x128xf32> to vector<256xf32>
    %31 = vector.shape_cast %30 : vector<256xf32> to vector<256x1xf32>
    %32 = vector.broadcast %31 : vector<256x1xf32> to vector<256x128xf32>
    %33 = arith.subf %29, %32 : vector<256x128xf32>
    %34 = math.exp %33 : vector<256x128xf32>
    %cst_24 = arith.constant dense<0.000000e+00> : vector<256xf32>
    %35 = vector.multi_reduction <add>, %34, %cst_24 [1] : vector<256x128xf32> to vector<256xf32>
    %36 = vector.shape_cast %35 : vector<256xf32> to vector<256x1xf32>
    %37 = vector.broadcast %36 : vector<256x1xf32> to vector<256x128xf32>
    %38 = arith.divf %34, %37 : vector<256x128xf32>
    %c0_25 = arith.constant 0 : index
    %c0_26 = arith.constant 0 : index
    %39 = vector.load %arg10[%c0_25, %c0_26] : memref<256x128xf32, #tpu.memory_space<vmem>>, vector<256x128xf32>
    tpu.vector_store %arg10[%c0_25, %c0_26], %38 {strides = array<i32>} : memref<256x128xf32, #tpu.memory_space<vmem>>, vector<256x128xf32>,
    return
  }
  func.func @transform_0(%arg0: i32) -> (i32, i32) {
    %c0_i32 = arith.constant 0 : i32
    %c0_i32_0 = arith.constant 0 : i32
    return %arg0, %c0_i32 : i32, i32
  }
  func.func @transform_1(%arg0: i32) -> (i32, i32) {
    %c0_i32 = arith.constant 0 : i32
    %c0_i32_0 = arith.constant 0 : i32
    %c0_i32_1 = arith.constant 0 : i32
    return %c0_i32, %c0_i32_0 : i32, i32
  }
  func.func @transform_2(%arg0: i32) -> (i32, i32) {
    %c0_i32 = arith.constant 0 : i32
    %c0_i32_0 = arith.constant 0 : i32
    %c0_i32_1 = arith.constant 0 : i32
    return %c0_i32, %c0_i32_0 : i32, i32
  }
  func.func @transform_3(%arg0: i32) -> (i32, i32) {
    %c0_i32 = arith.constant 0 : i32
    %c0_i32_0 = arith.constant 0 : i32
    %c0_i32_1 = arith.constant 0 : i32
    return %c0_i32, %c0_i32_0 : i32, i32
  }
  func.func @transform_4(%arg0: i32) -> (i32, i32) {
    %c0_i32 = arith.constant 0 : i32
    %c0_i32_0 = arith.constant 0 : i32
    %c0_i32_1 = arith.constant 0 : i32
    return %c0_i32, %c0_i32_0 : i32, i32
  }
  func.func @transform_5(%arg0: i32) -> (i32, i32) {
    %c0_i32 = arith.constant 0 : i32
    %c0_i32_0 = arith.constant 0 : i32
    %c0_i32_1 = arith.constant 0 : i32
    return %c0_i32, %c0_i32_0 : i32, i32
  }
  func.func @transform_6(%arg0: i32) -> (i32, i32) {
    %c0_i32 = arith.constant 0 : i32
    %c0_i32_0 = arith.constant 0 : i32
    %c0_i32_1 = arith.constant 0 : i32
    return %c0_i32, %c0_i32_0 : i32, i32
  }
  func.func @transform_7(%arg0: i32) -> (i32, i32) {
    %c0_i32 = arith.constant 0 : i32
    %c0_i32_0 = arith.constant 0 : i32
    %c0_i32_1 = arith.constant 0 : i32
    return %c0_i32, %c0_i32_0 : i32, i32
  }
  func.func @transform_8(%arg0: i32) -> (i32, i32) {
    %c0_i32 = arith.constant 0 : i32
    %c0_i32_0 = arith.constant 0 : i32
    %c0_i32_1 = arith.constant 0 : i32
    return %c0_i32, %c0_i32_0 : i32, i32
  }
  func.func @transform_9(%arg0: i32) -> (i32, i32) {
    %c0_i32 = arith.constant 0 : i32
    %c0_i32_0 = arith.constant 0 : i32
    return %arg0, %c0_i32 : i32, i32
  }
}

module attributes {stable_mosaic.version = 11 : i64} {
  func.func @policy_net_kernel(%arg0: i32, %arg1: memref<256x16xbf16, #tpu.memory_space<vmem>>, %arg2: memref<16x256xbf16, #tpu.memory_space<vmem>>, %arg3: memref<1x256xf32, #tpu.memory_space<vmem>>, %arg4: memref<256x128xbf16, #tpu.memory_space<vmem>>, %arg5: memref<1x128xf32, #tpu.memory_space<vmem>>, %arg6: memref<128x128xbf16, #tpu.memory_space<vmem>>, %arg7: memref<1x128xf32, #tpu.memory_space<vmem>>, %arg8: memref<128x128xbf16, #tpu.memory_space<vmem>>, %arg9: memref<1x128xf32, #tpu.memory_space<vmem>>, %arg10: memref<256x128xf32, #tpu.memory_space<vmem>>) attributes {dimension_semantics = [#tpu.dimension_semantics<parallel>], iteration_bounds = array<i64: 1>, scalar_prefetch = 0 : i64, scratch_operands = 0 : i64, tpu.core_type = #tpu.core_type<tc>, window_params = [{transform_indices = @transform_0, window_bounds = array<i64: 256, 16>}, {pipeline_mode = #tpu.pipeline_mode<synchronous>, transform_indices = @transform_1, window_bounds = array<i64: 16, 256>}, {pipeline_mode = #tpu.pipeline_mode<synchronous>, transform_indices = @transform_2, window_bounds = array<i64: 1, 256>}, {pipeline_mode = #tpu.pipeline_mode<synchronous>, transform_indices = @transform_3, window_bounds = array<i64: 256, 128>}, {pipeline_mode = #tpu.pipeline_mode<synchronous>, transform_indices = @transform_4, window_bounds = array<i64: 1, 128>}, {pipeline_mode = #tpu.pipeline_mode<synchronous>, transform_indices = @transform_5, window_bounds = array<i64: 128, 128>}, {pipeline_mode = #tpu.pipeline_mode<synchronous>, transform_indices = @transform_6, window_bounds = array<i64: 1, 128>}, {pipeline_mode = #tpu.pipeline_mode<synchronous>, transform_indices = @transform_7, window_bounds = array<i64: 128, 128>}, {pipeline_mode = #tpu.pipeline_mode<synchronous>, transform_indices = @transform_8, window_bounds = array<i64: 1, 128>}, {transform_indices = @transform_9, window_bounds = array<i64: 256, 128>}]} {
    %c0 = arith.constant 0 : index
    %c0_0 = arith.constant 0 : index
    %0 = vector.load %arg1[%c0, %c0_0] : memref<256x16xbf16, #tpu.memory_space<vmem>>, vector<256x16xbf16>
    %c0_1 = arith.constant 0 : index
    %c0_2 = arith.constant 0 : index
    %1 = vector.load %arg2[%c0_1, %c0_2] : memref<16x256xbf16, #tpu.memory_space<vmem>>, vector<16x256xbf16>
    %cst = arith.constant dense<0.000000e+00> : vector<256x256xf32>
    %2 = tpu.matmul %0, %1, %cst {dimension_numbers = #tpu.dot_dimension_numbers<[1], [0], [0], [1], [0, 0, 1, 1], [], []>} : vector<256x16xbf16>, vector<16x256xbf16>, vector<256x256xf32> -> vector<256x256xf32>
    %c0_3 = arith.constant 0 : index
    %c0_4 = arith.constant 0 : index
    %3 = vector.load %arg3[%c0_3, %c0_4] : memref<1x256xf32, #tpu.memory_space<vmem>>, vector<1x256xf32>
    %4 = vector.broadcast %3 : vector<1x256xf32> to vector<256x256xf32>
    %5 = arith.addf %2, %4 : vector<256x256xf32>
    %cst_5 = arith.constant 0.000000e+00 : f32
    %6 = vector.broadcast %cst_5 : f32 to vector<256x256xf32>
    %7 = arith.maximumf %5, %6 : vector<256x256xf32>
    %8 = arith.truncf %7 : vector<256x256xf32> to vector<256x256xbf16>
    %c0_6 = arith.constant 0 : index
    %c0_7 = arith.constant 0 : index
    %9 = vector.load %arg4[%c0_6, %c0_7] : memref<256x128xbf16, #tpu.memory_space<vmem>>, vector<256x128xbf16>
    %cst_8 = arith.constant dense<0.000000e+00> : vector<256x128xf32>
    %10 = tpu.matmul %8, %9, %cst_8 {dimension_numbers = #tpu.dot_dimension_numbers<[1], [0], [0], [1], [0, 0, 1, 1], [], []>} : vector<256x256xbf16>, vector<256x128xbf16>, vector<256x128xf32> -> vector<256x128xf32>
    %c0_9 = arith.constant 0 : index
    %c0_10 = arith.constant 0 : index
    %11 = vector.load %arg5[%c0_9, %c0_10] : memref<1x128xf32, #tpu.memory_space<vmem>>, vector<1x128xf32>
    %12 = vector.broadcast %11 : vector<1x128xf32> to vector<256x128xf32>
    %13 = arith.addf %10, %12 : vector<256x128xf32>
    %cst_11 = arith.constant 0.000000e+00 : f32
    %14 = vector.broadcast %cst_11 : f32 to vector<256x128xf32>
    %15 = arith.maximumf %13, %14 : vector<256x128xf32>
    %16 = arith.truncf %15 : vector<256x128xf32> to vector<256x128xbf16>
    %c0_12 = arith.constant 0 : index
    %c0_13 = arith.constant 0 : index
    %17 = vector.load %arg6[%c0_12, %c0_13] : memref<128x128xbf16, #tpu.memory_space<vmem>>, vector<128x128xbf16>
    %cst_14 = arith.constant dense<0.000000e+00> : vector<256x128xf32>
    %18 = tpu.matmul %16, %17, %cst_14 {dimension_numbers = #tpu.dot_dimension_numbers<[1], [0], [0], [1], [0, 0, 1, 1], [], []>} : vector<256x128xbf16>, vector<128x128xbf16>, vector<256x128xf32> -> vector<256x128xf32>
    %c0_15 = arith.constant 0 : index
    %c0_16 = arith.constant 0 : index
    %19 = vector.load %arg7[%c0_15, %c0_16] : memref<1x128xf32, #tpu.memory_space<vmem>>, vector<1x128xf32>
    %20 = vector.broadcast %19 : vector<1x128xf32> to vector<256x128xf32>
    %21 = arith.addf %18, %20 : vector<256x128xf32>
    %cst_17 = arith.constant 0.000000e+00 : f32
    %22 = vector.broadcast %cst_17 : f32 to vector<256x128xf32>
    %23 = arith.maximumf %21, %22 : vector<256x128xf32>
    %24 = arith.truncf %23 : vector<256x128xf32> to vector<256x128xbf16>
    %c0_18 = arith.constant 0 : index
    %c0_19 = arith.constant 0 : index
    %25 = vector.load %arg8[%c0_18, %c0_19] : memref<128x128xbf16, #tpu.memory_space<vmem>>, vector<128x128xbf16>
    %cst_20 = arith.constant dense<0.000000e+00> : vector<256x128xf32>
    %26 = tpu.matmul %24, %25, %cst_20 {dimension_numbers = #tpu.dot_dimension_numbers<[1], [0], [0], [1], [0, 0, 1, 1], [], []>} : vector<256x128xbf16>, vector<128x128xbf16>, vector<256x128xf32> -> vector<256x128xf32>
    %c0_21 = arith.constant 0 : index
    %c0_22 = arith.constant 0 : index
    %27 = vector.load %arg9[%c0_21, %c0_22] : memref<1x128xf32, #tpu.memory_space<vmem>>, vector<1x128xf32>
    %28 = vector.broadcast %27 : vector<1x128xf32> to vector<256x128xf32>
    %29 = arith.addf %26, %28 : vector<256x128xf32>
    %cst_23 = arith.constant dense<0xFF800000> : vector<256xf32>
    %30 = vector.multi_reduction <maximumf>, %29, %cst_23 [1] : vector<256x128xf32> to vector<256xf32>
    %31 = vector.shape_cast %30 : vector<256xf32> to vector<256x1xf32>
    %32 = vector.broadcast %31 : vector<256x1xf32> to vector<256x128xf32>
    %33 = arith.subf %29, %32 : vector<256x128xf32>
    %34 = math.exp %33 : vector<256x128xf32>
    %cst_24 = arith.constant dense<0.000000e+00> : vector<256xf32>
    %35 = vector.multi_reduction <add>, %34, %cst_24 [1] : vector<256x128xf32> to vector<256xf32>
    %36 = vector.shape_cast %35 : vector<256xf32> to vector<256x1xf32>
    %37 = vector.broadcast %36 : vector<256x1xf32> to vector<256x128xf32>
    %38 = arith.divf %34, %37 : vector<256x128xf32>
    %c0_25 = arith.constant 0 : index
    %c0_26 = arith.constant 0 : index
    %39 = vector.load %arg10[%c0_25, %c0_26] : memref<256x128xf32, #tpu.memory_space<vmem>>, vector<256x128xf32>
    tpu.vector_store %arg10[%c0_25, %c0_26], %38 {strides = array<i32>} : memref<256x128xf32, #tpu.memory_space<vmem>>, vector<256x128xf32>,
    return
  }
  func.func @transform_0(%arg0: i32) -> (i32, i32) {
    %c0_i32 = arith.constant 0 : i32
    %c0_i32_0 = arith.constant 0 : i32
    return %arg0, %c0_i32 : i32, i32
  }
  func.func @transform_1(%arg0: i32) -> (i32, i32) {
    %c0_i32 = arith.constant 0 : i32
    %c0_i32_0 = arith.constant 0 : i32
    %c0_i32_1 = arith.constant 0 : i32
    return %c0_i32, %c0_i32_0 : i32, i32
  }
  func.func @transform_2(%arg0: i32) -> (i32, i32) {
    %c0_i32 = arith.constant 0 : i32
    %c0_i32_0 = arith.constant 0 : i32
    %c0_i32_1 = arith.constant 0 : i32
    return %c0_i32, %c0_i32_0 : i32, i32
  }
  func.func @transform_3(%arg0: i32) -> (i32, i32) {
    %c0_i32 = arith.constant 0 : i32
    %c0_i32_0 = arith.constant 0 : i32
    %c0_i32_1 = arith.constant 0 : i32
    return %c0_i32, %c0_i32_0 : i32, i32
  }
  func.func @transform_4(%arg0: i32) -> (i32, i32) {
    %c0_i32 = arith.constant 0 : i32
    %c0_i32_0 = arith.constant 0 : i32
    %c0_i32_1 = arith.constant 0 : i32
    return %c0_i32, %c0_i32_0 : i32, i32
  }
  func.func @transform_5(%arg0: i32) -> (i32, i32) {
    %c0_i32 = arith.constant 0 : i32
    %c0_i32_0 = arith.constant 0 : i32
    %c0_i32_1 = arith.constant 0 : i32
    return %c0_i32, %c0_i32_0 : i32, i32
  }
  func.func @transform_6(%arg0: i32) -> (i32, i32) {
    %c0_i32 = arith.constant 0 : i32
    %c0_i32_0 = arith.constant 0 : i32
    %c0_i32_1 = arith.constant 0 : i32
    return %c0_i32, %c0_i32_0 : i32, i32
  }
  func.func @transform_7(%arg0: i32) -> (i32, i32) {
    %c0_i32 = arith.constant 0 : i32
    %c0_i32_0 = arith.constant 0 : i32
    %c0_i32_1 = arith.constant 0 : i32
    return %c0_i32, %c0_i32_0 : i32, i32
  }
  func.func @transform_8(%arg0: i32) -> (i32, i32) {
    %c0_i32 = arith.constant 0 : i32
    %c0_i32_0 = arith.constant 0 : i32
    %c0_i32_1 = arith.constant 0 : i32
    return %c0_i32, %c0_i32_0 : i32, i32
  }
  func.func @transform_9(%arg0: i32) -> (i32, i32) {
    %c0_i32 = arith.constant 0 : i32
    %c0_i32_0 = arith.constant 0 : i32
    return %arg0, %c0_i32 : i32, i32
  }
}

</mosaic_0001>

<llo_original>
// kernel: tpu_custom_call.1
$region0: #{tpu_custom_call.1}
  #allocation0 [shape = 'u32[]', space=smem, size = 0x4, offset = 0x4, fixed_abs, tag = 'smem constant byte address 0x4 - core index']
  #allocation1 [shape = 'u32[144,128]{1,0:T(1,128)}', space=vmem, size = 0x12000, scoped, tag = 'internal scratch']
  %s0 = inlined_call_operand.vmem [shape: bf16[256,16], index: 0, kind: input, shape index: {}]
  %s1 = inlined_call_operand.vmem [shape: bf16[16,256], index: 1, kind: input, shape index: {}]
  %s2 = inlined_call_operand.vmem [shape: f32[1,256], index: 2, kind: input, shape index: {}]
  %s3 = inlined_call_operand.vmem [shape: bf16[256,128], index: 3, kind: input, shape index: {}]
  %s4 = inlined_call_operand.vmem [shape: f32[1,128], index: 4, kind: input, shape index: {}]
  %s5 = inlined_call_operand.hbm [shape: bf16[128,128], index: 5, kind: input, shape index: {}]
  %s6 = inlined_call_operand.vmem [shape: f32[1,128], index: 6, kind: input, shape index: {}]
  %s7 = inlined_call_operand.hbm [shape: bf16[128,128], index: 7, kind: input, shape index: {}]
  %s8 = inlined_call_operand.vmem [shape: f32[1,128], index: 8, kind: input, shape index: {}]
  %s9 = inlined_call_operand.hbm [shape: f32[256,128], index: 9, kind: output, shape index: {}]
  %s10 = sld [smem:[#allocation0]]
  $region54: #{tpu_custom_call.1} parent=0
    _
  %s12 = ssub.s32 1, %s10
  %s13 = scalar_select 0, %s12, %s10
  $region1: #{tpu_custom_call.1} parent=0
    #allocation2 [shape = 'u8[32768]{0}', space=vmem, size = 0x8000, scoped, tag = 'input window, operand 5, single buffered']
    #allocation3 [shape = 's32[1]{0}', space=sflag, size = 0x4, scoped, tag = 'scoped memory for tpu_custom_call.1']
    #allocation4 [shape = 's32[1]{0}', space=sflag, size = 0x4, scoped, tag = 'scoped memory for tpu_custom_call.1']
    #allocation5 [shape = 'u8[32768]{0}', space=vmem, size = 0x8000, scoped, tag = 'input window, operand 7, single buffered']
    #allocation6 [shape = 's32[1]{0}', space=sflag, size = 0x4, scoped, tag = 'scoped memory for tpu_custom_call.1']
    #allocation7 [shape = 'u8[131072]{0}', space=vmem, size = 0x20000, scoped, tag = 'output window, operand 0, single buffered']
    %14 = vsyncpa [#allocation3], 0
    %15 = vsyncpa [#allocation6], 0
    %16 = vsyncpa [#allocation4], 0
    // Predicated region
    $region2: #{tpu_custom_call.1} parent=1 // pred_check
      _
    $region3: #{tpu_custom_call.1} parent=1 // pred_check_branch
      %18 = sbr.rel (0) target = $region5
    $region4: #{tpu_custom_call.1} parent=1 // pred_region
      _
    $region5: #{tpu_custom_call.1} parent=1 // pred_fallthru
      _
    // Predicated region
    $region6: #{tpu_custom_call.1} parent=1 // pred_check
      _
    $region7: #{tpu_custom_call.1} parent=1 // pred_check_branch
      %20 = sbr.rel (0) target = $region9
    $region8: #{tpu_custom_call.1} parent=1 // pred_region
      _
    $region9: #{tpu_custom_call.1} parent=1 // pred_fallthru
      _
    // Predicated region
    $region10: #{tpu_custom_call.1} parent=1 // pred_check
      _
    $region11: #{tpu_custom_call.1} parent=1 // pred_check_branch
      %22 = sbr.rel (0) target = $region13
    $region12: #{tpu_custom_call.1} parent=1 // pred_region
      _
    $region13: #{tpu_custom_call.1} parent=1 // pred_fallthru
      _
    // Predicated region
    $region14: #{tpu_custom_call.1} parent=1 // pred_check
      _
    $region15: #{tpu_custom_call.1} parent=1 // pred_check_branch
      %24 = sbr.rel (0) target = $region17
    $region16: #{tpu_custom_call.1} parent=1 // pred_region
      _
    $region17: #{tpu_custom_call.1} parent=1 // pred_fallthru
      _
    // Predicated region
    $region18: #{tpu_custom_call.1} parent=1 // pred_check
      _
    $region19: #{tpu_custom_call.1} parent=1 // pred_check_branch
      %26 = sbr.rel (0) target = $region21
    $region20: #{tpu_custom_call.1} parent=1 // pred_region
      _
    $region21: #{tpu_custom_call.1} parent=1 // pred_fallthru
      _
    // Predicated region
    $region22: #{tpu_custom_call.1} parent=1 // pred_check
      _
    $region23: #{tpu_custom_call.1} parent=1 // pred_check_branch
      %28 = sbr.rel (0) target = $region25
    $region24: #{tpu_custom_call.1} parent=1 // pred_region
      %s30 = ssub.s32 1024, 1024
      %31 = vsyncadd [#allocation3], %s30
      %s32 = sshll.u32 [#allocation2], 4
      %s33 = int_to_ptr.vmem [resolvable:$true] %s32
      %38 = dma.hbm_to_vmem [thread:$0]  %s5, 1024, %s33, [#allocation3], 64, 64, 4
    $region25: #{tpu_custom_call.1} parent=1 // pred_fallthru
      _
    // Predicated region
    $region26: #{tpu_custom_call.1} parent=1 // pred_check
      _
    $region27: #{tpu_custom_call.1} parent=1 // pred_check_branch
      %40 = sbr.rel (0) target = $region29
    $region28: #{tpu_custom_call.1} parent=1 // pred_region
      _
    $region29: #{tpu_custom_call.1} parent=1 // pred_fallthru
      _
    // Predicated region
    $region30: #{tpu_custom_call.1} parent=1 // pred_check
      _
    $region31: #{tpu_custom_call.1} parent=1 // pred_check_branch
      %42 = sbr.rel (0) target = $region33
    $region32: #{tpu_custom_call.1} parent=1 // pred_region
      %s44 = ssub.s32 1024, 1024
      %45 = vsyncadd [#allocation6], %s44
      %s46 = sshll.u32 [#allocation5], 4
      %s47 = int_to_ptr.vmem [resolvable:$true] %s46
      %52 = dma.hbm_to_vmem [thread:$0]  %s7, 1024, %s47, [#allocation6], 64, 64, 4
    $region33: #{tpu_custom_call.1} parent=1 // pred_fallthru
      _
    // Predicated region
    $region34: #{tpu_custom_call.1} parent=1 // pred_check
      _
    $region35: #{tpu_custom_call.1} parent=1 // pred_check_branch
      %54 = sbr.rel (0) target = $region37
    $region36: #{tpu_custom_call.1} parent=1 // pred_region
      _
    $region37: #{tpu_custom_call.1} parent=1 // pred_fallthru
      _
    // Predicated region
    $region38: #{tpu_custom_call.1} parent=1 // pred_check
      _
    $region39: #{tpu_custom_call.1} parent=1 // pred_check_branch
      %56 = sbr.rel (0) target = $region41
    $region40: #{tpu_custom_call.1} parent=1 // pred_region
      %57 = dma.done [#allocation3], 1024
    $region41: #{tpu_custom_call.1} parent=1 // pred_fallthru
      _
    // Predicated region
    $region42: #{tpu_custom_call.1} parent=1 // pred_check
      _
    $region43: #{tpu_custom_call.1} parent=1 // pred_check_branch
      %59 = sbr.rel (0) target = $region45
    $region44: #{tpu_custom_call.1} parent=1 // pred_region
      %60 = dma.done [#allocation6], 1024
    $region45: #{tpu_custom_call.1} parent=1 // pred_fallthru
      _
    %v62 = vld [vmem:[%s0] sm:$0xf]
    %v63 = vld [vmem:[%s0 + $0x4] sm:$0xf]
    %v64 = vld [vmem:[%s0 + $0x8] sm:$0xf]
    %v65 = vld [vmem:[%s0 + $0xc] sm:$0xf]
    %v66 = vld [vmem:[%s0 + $0x10] sm:$0xf]
    %v67 = vld [vmem:[%s0 + $0x14] sm:$0xf]
    %v68 = vld [vmem:[%s0 + $0x18] sm:$0xf]
    %v69 = vld [vmem:[%s0 + $0x1c] sm:$0xf]
    %v70 = vld [vmem:[%s0 + $0x20] sm:$0xf]
    %v71 = vld [vmem:[%s0 + $0x24] sm:$0xf]
    %v72 = vld [vmem:[%s0 + $0x28] sm:$0xf]
    %v73 = vld [vmem:[%s0 + $0x2c] sm:$0xf]
    %v74 = vld [vmem:[%s0 + $0x30] sm:$0xf]
    %v75 = vld [vmem:[%s0 + $0x34] sm:$0xf]
    %v76 = vld [vmem:[%s0 + $0x38] sm:$0xf]
    %v77 = vld [vmem:[%s0 + $0x3c] sm:$0xf]
    %v78 = vld [vmem:[%s0 + $0x40] sm:$0xf]
    %v79 = vld [vmem:[%s0 + $0x44] sm:$0xf]
    %v80 = vld [vmem:[%s0 + $0x48] sm:$0xf]
    %v81 = vld [vmem:[%s0 + $0x4c] sm:$0xf]
    %v82 = vld [vmem:[%s0 + $0x50] sm:$0xf]
    %v83 = vld [vmem:[%s0 + $0x54] sm:$0xf]
    %v84 = vld [vmem:[%s0 + $0x58] sm:$0xf]
    %v85 = vld [vmem:[%s0 + $0x5c] sm:$0xf]
    %v86 = vld [vmem:[%s0 + $0x60] sm:$0xf]
    %v87 = vld [vmem:[%s0 + $0x64] sm:$0xf]
    %v88 = vld [vmem:[%s0 + $0x68] sm:$0xf]
    %v89 = vld [vmem:[%s0 + $0x6c] sm:$0xf]
    %v90 = vld [vmem:[%s0 + $0x70] sm:$0xf]
    %v91 = vld [vmem:[%s0 + $0x74] sm:$0xf]
    %v92 = vld [vmem:[%s0 + $0x78] sm:$0xf]
    %v93 = vld [vmem:[%s0 + $0x7c] sm:$0xf]
    %v94 = vld [vmem:[%s1] sm:$0xff]
    %v95 = vld [vmem:[%s1 + $0x8] sm:$0xff]
    %v96 = vld [vmem:[%s2] sm:$0x3]
    %v98 = vlaneseq
    %v99 = vshrl.u32 %v98, 7
    %v100 = vsub.s32 0, %v99
    %v101 = vrot.slane %v96, %v100
    %v102 = vlaneseq
    %v103 = vshrl.u32 %v102, 7
    %v104 = vsub.s32 1, %v103
    %v105 = vrot.slane %v96, %v104
    %v140 = vunpack.c.l.b16 %v62
    %v141 = vunpack.c.l.b16 %v63
    %v142 = vunpack.c.l.b16 %v64
    %v143 = vunpack.c.l.b16 %v65
    %v144 = vunpack.c.l.b16 %v66
    %v145 = vunpack.c.l.b16 %v67
    %v146 = vunpack.c.l.b16 %v68
    %v147 = vunpack.c.l.b16 %v69
    %v148 = vunpack.c.l.b16 %v70
    %v149 = vunpack.c.l.b16 %v71
    %v150 = vunpack.c.l.b16 %v72
    %v151 = vunpack.c.l.b16 %v73
    %v152 = vunpack.c.l.b16 %v74
    %v153 = vunpack.c.l.b16 %v75
    %v154 = vunpack.c.l.b16 %v76
    %v155 = vunpack.c.l.b16 %v77
    %v156 = vunpack.c.l.b16 %v78
    %v157 = vunpack.c.l.b16 %v79
    %v158 = vunpack.c.l.b16 %v80
    %v159 = vunpack.c.l.b16 %v81
    %v160 = vunpack.c.l.b16 %v82
    %v161 = vunpack.c.l.b16 %v83
    %v162 = vunpack.c.l.b16 %v84
    %v163 = vunpack.c.l.b16 %v85
    %v164 = vunpack.c.l.b16 %v86
    %v165 = vunpack.c.l.b16 %v87
    %v166 = vunpack.c.l.b16 %v88
    %v167 = vunpack.c.l.b16 %v89
    %v168 = vunpack.c.l.b16 %v90
    %v169 = vunpack.c.l.b16 %v91
    %v170 = vunpack.c.l.b16 %v92
    %v171 = vunpack.c.l.b16 %v93
    %v172 = vpack.c.b16 %v141, %v140
    %v173 = vpack.c.b16 %v143, %v142
    %v174 = vpack.c.b16 %v145, %v144
    %v175 = vpack.c.b16 %v147, %v146
    %v176 = vpack.c.b16 %v149, %v148
    %v177 = vpack.c.b16 %v151, %v150
    %v178 = vpack.c.b16 %v153, %v152
    %v179 = vpack.c.b16 %v155, %v154
    %v180 = vpack.c.b16 %v157, %v156
    %v181 = vpack.c.b16 %v159, %v158
    %v182 = vpack.c.b16 %v161, %v160
    %v183 = vpack.c.b16 %v163, %v162
    %v184 = vpack.c.b16 %v165, %v164
    %v185 = vpack.c.b16 %v167, %v166
    %v186 = vpack.c.b16 %v169, %v168
    %v187 = vpack.c.b16 %v171, %v170
    %v190 = vunpack.c.l.b16 %v94
    %v191 = vunpack.c.h.b16 %v94
    %v192 = vunpack.c.l.b16 %v95
    %v193 = vunpack.c.h.b16 %v95
    %v194 = vpack.c.b16 %v192, %v190
    %v195 = vpack.c.b16 %v193, %v191
    %vm198 = vcmask 130048
    %v200 = vsel %vm198, %v172, 0
    %v203 = vsel %vm198, %v173, 0
    %v206 = vsel %vm198, %v174, 0
    %v209 = vsel %vm198, %v175, 0
    %v212 = vsel %vm198, %v176, 0
    %v215 = vsel %vm198, %v177, 0
    %v218 = vsel %vm198, %v178, 0
    %v221 = vsel %vm198, %v179, 0
    %v224 = vsel %vm198, %v180, 0
    %v227 = vsel %vm198, %v181, 0
    %v230 = vsel %vm198, %v182, 0
    %v233 = vsel %vm198, %v183, 0
    %v236 = vsel %vm198, %v184, 0
    %v239 = vsel %vm198, %v185, 0
    %v242 = vsel %vm198, %v186, 0
    %v245 = vsel %vm198, %v187, 0
    %247 = vmatprep.subr.bf16.mxu0 %v195
    %248 = vmatpush1.bf16.msra.mxu0 %v194
    %249 = vmatprep.subr.bf16.mxu0 0
    %250 = vmatpush1.bf16.msra.mxu0 0
    %251 = vmatprep.subr.bf16.mxu0 0
    %252 = vmatpush1.bf16.msra.mxu0 0
    %253 = vmatprep.subr.bf16.mxu0 0
    %254 = vmatpush1.bf16.msra.mxu0 0
    %255 = vmatprep.subr.bf16.mxu0 0
    %256 = vmatpush1.bf16.msra.mxu0 0
    %257 = vmatprep.subr.bf16.mxu0 0
    %258 = vmatpush1.bf16.msra.mxu0 0
    %259 = vmatprep.subr.bf16.mxu0 0
    %260 = vmatpush1.bf16.msra.mxu0 0
    %261 = vmatprep.subr.bf16.mxu0 0
    %262 = vmatpush1.bf16.msra.mxu0 0
    %263 = vmatprep.subr.bf16.mxu0 0
    %264 = vmatpush1.bf16.msra.mxu0 0
    %265 = vmatprep.subr.bf16.mxu0 0
    %266 = vmatpush1.bf16.msra.mxu0 0
    %267 = vmatprep.subr.bf16.mxu0 0
    %268 = vmatpush1.bf16.msra.mxu0 0
    %269 = vmatprep.subr.bf16.mxu0 0
    %270 = vmatpush1.bf16.msra.mxu0 0
    %271 = vmatprep.subr.bf16.mxu0 0
    %272 = vmatpush1.bf16.msra.mxu0 0
    %273 = vmatprep.subr.bf16.mxu0 0
    %274 = vmatpush1.bf16.msra.mxu0 0
    %275 = vmatprep.subr.bf16.mxu0 0
    %276 = vmatpush1.bf16.msra.mxu0 0
    %277 = vmatprep.subr.bf16.mxu0 0
    %278 = vmatpush1.bf16.msra.mxu0 0
    %279 = vmatprep.mubr.bf16.mxu0 0
    %280 = vmatmul.mubr.bf16.gmra.mrb[0].mxu0 %v200
    %v281 = vpop.f32.mrb[0].mxu0
    %v282 = vadd.f32 %v101, %v281
    %v283 = vpop.f32.mrb[0].mxu0
    %v284 = vadd.f32 %v105, %v283
    %v285 = vpop.f32.mrb[0].mxu0
    %v286 = vadd.f32 %v101, %v285
    %v287 = vpop.f32.mrb[0].mxu0
    %v288 = vadd.f32 %v105, %v287
    %289 = vmatprep.mubr.bf16.mxu0 0
    %290 = vmatmul.mubr.bf16.gmra.mrb[0].mxu0 %v203
    %v291 = vpop.f32.mrb[0].mxu0
    %v292 = vadd.f32 %v101, %v291
    %v293 = vpop.f32.mrb[0].mxu0
    %v294 = vadd.f32 %v105, %v293
    %v295 = vpop.f32.mrb[0].mxu0
    %v296 = vadd.f32 %v101, %v295
    %v297 = vpop.f32.mrb[0].mxu0
    %v298 = vadd.f32 %v105, %v297
    %299 = vmatprep.mubr.bf16.mxu0 0
    %300 = vmatmul.mubr.bf16.gmra.mrb[0].mxu0 %v206
    %v301 = vpop.f32.mrb[0].mxu0
    %v302 = vadd.f32 %v101, %v301
    %v303 = vpop.f32.mrb[0].mxu0
    %v304 = vadd.f32 %v105, %v303
    %v305 = vpop.f32.mrb[0].mxu0
    %v306 = vadd.f32 %v101, %v305
    %v307 = vpop.f32.mrb[0].mxu0
    %v308 = vadd.f32 %v105, %v307
    %309 = vmatprep.mubr.bf16.mxu0 0
    %310 = vmatmul.mubr.bf16.gmra.mrb[0].mxu0 %v209
    %v311 = vpop.f32.mrb[0].mxu0
    %v312 = vadd.f32 %v101, %v311
    %v313 = vpop.f32.mrb[0].mxu0
    %v314 = vadd.f32 %v105, %v313
    %v315 = vpop.f32.mrb[0].mxu0
    %v316 = vadd.f32 %v101, %v315
    %v317 = vpop.f32.mrb[0].mxu0
    %v318 = vadd.f32 %v105, %v317
    %319 = vmatprep.mubr.bf16.mxu0 0
    %320 = vmatmul.mubr.bf16.gmra.mrb[0].mxu0 %v212
    %v321 = vpop.f32.mrb[0].mxu0
    %v322 = vadd.f32 %v101, %v321
    %v323 = vpop.f32.mrb[0].mxu0
    %v324 = vadd.f32 %v105, %v323
    %v325 = vpop.f32.mrb[0].mxu0
    %v326 = vadd.f32 %v101, %v325
    %v327 = vpop.f32.mrb[0].mxu0
    %v328 = vadd.f32 %v105, %v327
    %329 = vmatprep.mubr.bf16.mxu0 0
    %330 = vmatmul.mubr.bf16.gmra.mrb[0].mxu0 %v215
    %v331 = vpop.f32.mrb[0].mxu0
    %v332 = vadd.f32 %v101, %v331
    %v333 = vpop.f32.mrb[0].mxu0
    %v334 = vadd.f32 %v105, %v333
    %v335 = vpop.f32.mrb[0].mxu0
    %v336 = vadd.f32 %v101, %v335
    %v337 = vpop.f32.mrb[0].mxu0
    %v338 = vadd.f32 %v105, %v337
    %339 = vmatprep.mubr.bf16.mxu0 0
    %340 = vmatmul.mubr.bf16.gmra.mrb[0].mxu0 %v218
    %v341 = vpop.f32.mrb[0].mxu0
    %v342 = vadd.f32 %v101, %v341
    %v343 = vpop.f32.mrb[0].mxu0
    %v344 = vadd.f32 %v105, %v343
    %v345 = vpop.f32.mrb[0].mxu0
    %v346 = vadd.f32 %v101, %v345
    %v347 = vpop.f32.mrb[0].mxu0
    %v348 = vadd.f32 %v105, %v347
    %349 = vmatprep.mubr.bf16.mxu0 0
    %350 = vmatmul.mubr.bf16.gmra.mrb[0].mxu0 %v221
    %v351 = vpop.f32.mrb[0].mxu0
    %v352 = vadd.f32 %v101, %v351
    %v353 = vpop.f32.mrb[0].mxu0
    %v354 = vadd.f32 %v105, %v353
    %v355 = vpop.f32.mrb[0].mxu0
    %v356 = vadd.f32 %v101, %v355
    %v357 = vpop.f32.mrb[0].mxu0
    %v358 = vadd.f32 %v105, %v357
    %359 = vmatprep.mubr.bf16.mxu0 0
    %360 = vmatmul.mubr.bf16.gmra.mrb[0].mxu0 %v224
    %v361 = vpop.f32.mrb[0].mxu0
    %v362 = vadd.f32 %v101, %v361
    %v363 = vpop.f32.mrb[0].mxu0
    %v364 = vadd.f32 %v105, %v363
    %v365 = vpop.f32.mrb[0].mxu0
    %v366 = vadd.f32 %v101, %v365
    %v367 = vpop.f32.mrb[0].mxu0
    %v368 = vadd.f32 %v105, %v367
    %369 = vmatprep.mubr.bf16.mxu0 0
    %370 = vmatmul.mubr.bf16.gmra.mrb[0].mxu0 %v227
    %v371 = vpop.f32.mrb[0].mxu0
    %v372 = vadd.f32 %v101, %v371
    %v373 = vpop.f32.mrb[0].mxu0
    %v374 = vadd.f32 %v105, %v373
    %v375 = vpop.f32.mrb[0].mxu0
    %v376 = vadd.f32 %v101, %v375
    %v377 = vpop.f32.mrb[0].mxu0
    %v378 = vadd.f32 %v105, %v377
    %379 = vmatprep.mubr.bf16.mxu0 0
    %380 = vmatmul.mubr.bf16.gmra.mrb[0].mxu0 %v230
    %v381 = vpop.f32.mrb[0].mxu0
    %v382 = vadd.f32 %v101, %v381
    %v383 = vpop.f32.mrb[0].mxu0
    %v384 = vadd.f32 %v105, %v383
    %v385 = vpop.f32.mrb[0].mxu0
    %v386 = vadd.f32 %v101, %v385
    %v387 = vpop.f32.mrb[0].mxu0
    %v388 = vadd.f32 %v105, %v387
    %389 = vmatprep.mubr.bf16.mxu0 0
    %390 = vmatmul.mubr.bf16.gmra.mrb[0].mxu0 %v233
    %v391 = vpop.f32.mrb[0].mxu0
    %v392 = vadd.f32 %v101, %v391
    %v393 = vpop.f32.mrb[0].mxu0
    %v394 = vadd.f32 %v105, %v393
    %v395 = vpop.f32.mrb[0].mxu0
    %v396 = vadd.f32 %v101, %v395
    %v397 = vpop.f32.mrb[0].mxu0
    %v398 = vadd.f32 %v105, %v397
    %399 = vmatprep.mubr.bf16.mxu0 0
    %400 = vmatmul.mubr.bf16.gmra.mrb[0].mxu0 %v236
    %v401 = vpop.f32.mrb[0].mxu0
    %v402 = vadd.f32 %v101, %v401
    %v403 = vpop.f32.mrb[0].mxu0
    %v404 = vadd.f32 %v105, %v403
    %v405 = vpop.f32.mrb[0].mxu0
    %v406 = vadd.f32 %v101, %v405
    %v407 = vpop.f32.mrb[0].mxu0
    %v408 = vadd.f32 %v105, %v407
    %409 = vmatprep.mubr.bf16.mxu0 0
    %410 = vmatmul.mubr.bf16.gmra.mrb[0].mxu0 %v239
    %v411 = vpop.f32.mrb[0].mxu0
    %v412 = vadd.f32 %v101, %v411
    %v413 = vpop.f32.mrb[0].mxu0
    %v414 = vadd.f32 %v105, %v413
    %v415 = vpop.f32.mrb[0].mxu0
    %v416 = vadd.f32 %v101, %v415
    %v417 = vpop.f32.mrb[0].mxu0
    %v418 = vadd.f32 %v105, %v417
    %419 = vmatprep.mubr.bf16.mxu0 0
    %420 = vmatmul.mubr.bf16.gmra.mrb[0].mxu0 %v242
    %v421 = vpop.f32.mrb[0].mxu0
    %v422 = vadd.f32 %v101, %v421
    %v423 = vpop.f32.mrb[0].mxu0
    %v424 = vadd.f32 %v105, %v423
    %v425 = vpop.f32.mrb[0].mxu0
    %v426 = vadd.f32 %v101, %v425
    %v427 = vpop.f32.mrb[0].mxu0
    %v428 = vadd.f32 %v105, %v427
    %429 = vmatprep.mubr.bf16.mxu0 0
    %430 = vmatmul.mubr.bf16.gmra.mrb[0].mxu0 %v245
    %v431 = vpop.f32.mrb[0].mxu0
    %v432 = vadd.f32 %v101, %v431
    %v433 = vpop.f32.mrb[0].mxu0
    %v434 = vadd.f32 %v105, %v433
    %v435 = vpop.f32.mrb[0].mxu0
    %v436 = vadd.f32 %v101, %v435
    %v437 = vpop.f32.mrb[0].mxu0
    %v438 = vadd.f32 %v105, %v437
    %439 = vdwg.mxu0
    %v440 = vmax.f32 %v282, 0.0
    %v441 = vmax.f32 %v284, 0.0
    %v442 = vmax.f32 %v286, 0.0
    %v443 = vmax.f32 %v288, 0.0
    %v444 = vmax.f32 %v292, 0.0
    %v445 = vmax.f32 %v294, 0.0
    %v446 = vmax.f32 %v296, 0.0
    %v447 = vmax.f32 %v298, 0.0
    %v448 = vmax.f32 %v302, 0.0
    %v449 = vmax.f32 %v304, 0.0
    %v450 = vmax.f32 %v306, 0.0
    %v451 = vmax.f32 %v308, 0.0
    %v452 = vmax.f32 %v312, 0.0
    %v453 = vmax.f32 %v314, 0.0
    %v454 = vmax.f32 %v316, 0.0
    %v455 = vmax.f32 %v318, 0.0
    %v456 = vmax.f32 %v322, 0.0
    %v457 = vmax.f32 %v324, 0.0
    %v458 = vmax.f32 %v326, 0.0
    %v459 = vmax.f32 %v328, 0.0
    %v460 = vmax.f32 %v332, 0.0
    %v461 = vmax.f32 %v334, 0.0
    %v462 = vmax.f32 %v336, 0.0
    %v463 = vmax.f32 %v338, 0.0
    %v464 = vmax.f32 %v342, 0.0
    %v465 = vmax.f32 %v344, 0.0
    %v466 = vmax.f32 %v346, 0.0
    %v467 = vmax.f32 %v348, 0.0
    %v468 = vmax.f32 %v352, 0.0
    %v469 = vmax.f32 %v354, 0.0
    %v470 = vmax.f32 %v356, 0.0
    %v471 = vmax.f32 %v358, 0.0
    %v472 = vmax.f32 %v362, 0.0
    %v473 = vmax.f32 %v364, 0.0
    %v474 = vmax.f32 %v366, 0.0
    %v475 = vmax.f32 %v368, 0.0
    %v476 = vmax.f32 %v372, 0.0
    %v477 = vmax.f32 %v374, 0.0
    %v478 = vmax.f32 %v376, 0.0
    %v479 = vmax.f32 %v378, 0.0
    %v480 = vmax.f32 %v382, 0.0
    %v481 = vmax.f32 %v384, 0.0
    %v482 = vmax.f32 %v386, 0.0
    %v483 = vmax.f32 %v388, 0.0
    %v484 = vmax.f32 %v392, 0.0
    %v485 = vmax.f32 %v394, 0.0
    %v486 = vmax.f32 %v396, 0.0
    %v487 = vmax.f32 %v398, 0.0
    %v488 = vmax.f32 %v402, 0.0
    %v489 = vmax.f32 %v404, 0.0
    %v490 = vmax.f32 %v406, 0.0
    %v491 = vmax.f32 %v408, 0.0
    %v492 = vmax.f32 %v412, 0.0
    %v493 = vmax.f32 %v414, 0.0
    %v494 = vmax.f32 %v416, 0.0
    %v495 = vmax.f32 %v418, 0.0
    %v496 = vmax.f32 %v422, 0.0
    %v497 = vmax.f32 %v424, 0.0
    %v498 = vmax.f32 %v426, 0.0
    %v499 = vmax.f32 %v428, 0.0
    %v500 = vmax.f32 %v432, 0.0
    %v501 = vmax.f32 %v434, 0.0
    %v502 = vmax.f32 %v436, 0.0
    %v503 = vmax.f32 %v438, 0.0
    %v504 = vpack.c.bf16 %v442, %v440
    %v505 = vpack.c.bf16 %v443, %v441
    %v506 = vpack.c.bf16 %v446, %v444
    %v507 = vpack.c.bf16 %v447, %v445
    %v508 = vpack.c.bf16 %v450, %v448
    %v509 = vpack.c.bf16 %v451, %v449
    %v510 = vpack.c.bf16 %v454, %v452
    %v511 = vpack.c.bf16 %v455, %v453
    %v512 = vpack.c.bf16 %v458, %v456
    %v513 = vpack.c.bf16 %v459, %v457
    %v514 = vpack.c.bf16 %v462, %v460
    %v515 = vpack.c.bf16 %v463, %v461
    %v516 = vpack.c.bf16 %v466, %v464
    %v517 = vpack.c.bf16 %v467, %v465
    %v518 = vpack.c.bf16 %v470, %v468
    %v519 = vpack.c.bf16 %v471, %v469
    %v520 = vpack.c.bf16 %v474, %v472
    %v521 = vpack.c.bf16 %v475, %v473
    %v522 = vpack.c.bf16 %v478, %v476
    %v523 = vpack.c.bf16 %v479, %v477
    %v524 = vpack.c.bf16 %v482, %v480
    %v525 = vpack.c.bf16 %v483, %v481
    %v526 = vpack.c.bf16 %v486, %v484
    %v527 = vpack.c.bf16 %v487, %v485
    %v528 = vpack.c.bf16 %v490, %v488
    %v529 = vpack.c.bf16 %v491, %v489
    %v530 = vpack.c.bf16 %v494, %v492
    %v531 = vpack.c.bf16 %v495, %v493
    %v532 = vpack.c.bf16 %v498, %v496
    %v533 = vpack.c.bf16 %v499, %v497
    %v534 = vpack.c.bf16 %v502, %v500
    %v535 = vpack.c.bf16 %v503, %v501
    %v536 = vld [vmem:[%s3] sm:$0xf]
    %v537 = vld [vmem:[%s3 + $0x4] sm:$0xf]
    %v538 = vld [vmem:[%s3 + $0x8] sm:$0xf]
    %v539 = vld [vmem:[%s3 + $0xc] sm:$0xf]
    %v540 = vld [vmem:[%s3 + $0x10] sm:$0xf]
    %v541 = vld [vmem:[%s3 + $0x14] sm:$0xf]
    %v542 = vld [vmem:[%s3 + $0x18] sm:$0xf]
    %v543 = vld [vmem:[%s3 + $0x1c] sm:$0xf]
    %v544 = vld [vmem:[%s3 + $0x20] sm:$0xf]
    %v545 = vld [vmem:[%s3 + $0x24] sm:$0xf]
    %v546 = vld [vmem:[%s3 + $0x28] sm:$0xf]
    %v547 = vld [vmem:[%s3 + $0x2c] sm:$0xf]
    %v548 = vld [vmem:[%s3 + $0x30] sm:$0xf]
    %v549 = vld [vmem:[%s3 + $0x34] sm:$0xf]
    %v550 = vld [vmem:[%s3 + $0x38] sm:$0xf]
    %v551 = vld [vmem:[%s3 + $0x3c] sm:$0xf]
    %v552 = vld [vmem:[%s3 + $0x40] sm:$0xf]
    %v553 = vld [vmem:[%s3 + $0x44] sm:$0xf]
    %v554 = vld [vmem:[%s3 + $0x48] sm:$0xf]
    %v555 = vld [vmem:[%s3 + $0x4c] sm:$0xf]
    %v556 = vld [vmem:[%s3 + $0x50] sm:$0xf]
    %v557 = vld [vmem:[%s3 + $0x54] sm:$0xf]
    %v558 = vld [vmem:[%s3 + $0x58] sm:$0xf]
    %v559 = vld [vmem:[%s3 + $0x5c] sm:$0xf]
    %v560 = vld [vmem:[%s3 + $0x60] sm:$0xf]
    %v561 = vld [vmem:[%s3 + $0x64] sm:$0xf]
    %v562 = vld [vmem:[%s3 + $0x68] sm:$0xf]
    %v563 = vld [vmem:[%s3 + $0x6c] sm:$0xf]
    %v564 = vld [vmem:[%s3 + $0x70] sm:$0xf]
    %v565 = vld [vmem:[%s3 + $0x74] sm:$0xf]
    %v566 = vld [vmem:[%s3 + $0x78] sm:$0xf]
    %v567 = vld [vmem:[%s3 + $0x7c] sm:$0xf]
    %v568 = vld [vmem:[%s4] sm:$0x1]
    %v570 = vlaneseq
    %v571 = vshrl.u32 %v570, 7
    %v572 = vsub.s32 0, %v571
    %v573 = vrot.slane %v568, %v572
    %v607 = vunpack.c.l.b16 %v536
    %v608 = vunpack.c.l.b16 %v537
    %v609 = vunpack.c.l.b16 %v538
    %v610 = vunpack.c.l.b16 %v539
    %v611 = vunpack.c.l.b16 %v540
    %v612 = vunpack.c.l.b16 %v541
    %v613 = vunpack.c.l.b16 %v542
    %v614 = vunpack.c.l.b16 %v543
    %v615 = vunpack.c.l.b16 %v544
    %v616 = vunpack.c.l.b16 %v545
    %v617 = vunpack.c.l.b16 %v546
    %v618 = vunpack.c.l.b16 %v547
    %v619 = vunpack.c.l.b16 %v548
    %v620 = vunpack.c.l.b16 %v549
    %v621 = vunpack.c.l.b16 %v550
    %v622 = vunpack.c.l.b16 %v551
    %v623 = vunpack.c.l.b16 %v552
    %v624 = vunpack.c.l.b16 %v553
    %v625 = vunpack.c.l.b16 %v554
    %v626 = vunpack.c.l.b16 %v555
    %v627 = vunpack.c.l.b16 %v556
    %v628 = vunpack.c.l.b16 %v557
    %v629 = vunpack.c.l.b16 %v558
    %v630 = vunpack.c.l.b16 %v559
    %v631 = vunpack.c.l.b16 %v560
    %v632 = vunpack.c.l.b16 %v561
    %v633 = vunpack.c.l.b16 %v562
    %v634 = vunpack.c.l.b16 %v563
    %v635 = vunpack.c.l.b16 %v564
    %v636 = vunpack.c.l.b16 %v565
    %v637 = vunpack.c.l.b16 %v566
    %v638 = vunpack.c.l.b16 %v567
    %v639 = vpack.c.b16 %v608, %v607
    %v640 = vpack.c.b16 %v610, %v609
    %v641 = vpack.c.b16 %v612, %v611
    %v642 = vpack.c.b16 %v614, %v613
    %v643 = vpack.c.b16 %v616, %v615
    %v644 = vpack.c.b16 %v618, %v617
    %v645 = vpack.c.b16 %v620, %v619
    %v646 = vpack.c.b16 %v622, %v621
    %v647 = vpack.c.b16 %v624, %v623
    %v648 = vpack.c.b16 %v626, %v625
    %v649 = vpack.c.b16 %v628, %v627
    %v650 = vpack.c.b16 %v630, %v629
    %v651 = vpack.c.b16 %v632, %v631
    %v652 = vpack.c.b16 %v634, %v633
    %v653 = vpack.c.b16 %v636, %v635
    %v654 = vpack.c.b16 %v638, %v637
    %671 = vmatprep.subr.bf16.mxu0 0
    %672 = vmatpush1.bf16.msra.mxu0 %v639
    %673 = vmatprep.subr.bf16.mxu0 0
    %674 = vmatpush1.bf16.msra.mxu0 %v640
    %675 = vmatprep.subr.bf16.mxu0 0
    %676 = vmatpush1.bf16.msra.mxu0 %v641
    %677 = vmatprep.subr.bf16.mxu0 0
    %678 = vmatpush1.bf16.msra.mxu0 %v642
    %679 = vmatprep.subr.bf16.mxu0 0
    %680 = vmatpush1.bf16.msra.mxu0 %v643
    %681 = vmatprep.subr.bf16.mxu0 0
    %682 = vmatpush1.bf16.msra.mxu0 %v644
    %683 = vmatprep.subr.bf16.mxu0 0
    %684 = vmatpush1.bf16.msra.mxu0 %v645
    %685 = vmatprep.subr.bf16.mxu0 0
    %686 = vmatpush1.bf16.msra.mxu0 %v646
    %687 = vmatprep.subr.bf16.mxu0 0
    %688 = vmatpush1.bf16.msra.mxu0 %v647
    %689 = vmatprep.subr.bf16.mxu0 0
    %690 = vmatpush1.bf16.msra.mxu0 %v648
    %691 = vmatprep.subr.bf16.mxu0 0
    %692 = vmatpush1.bf16.msra.mxu0 %v649
    %693 = vmatprep.subr.bf16.mxu0 0
    %694 = vmatpush1.bf16.msra.mxu0 %v650
    %695 = vmatprep.subr.bf16.mxu0 0
    %696 = vmatpush1.bf16.msra.mxu0 %v651
    %697 = vmatprep.subr.bf16.mxu0 0
    %698 = vmatpush1.bf16.msra.mxu0 %v652
    %699 = vmatprep.subr.bf16.mxu0 0
    %700 = vmatpush1.bf16.msra.mxu0 %v653
    %701 = vmatprep.subr.bf16.mxu0 0
    %702 = vmatpush1.bf16.msra.mxu0 %v654
    %703 = vmatprep.mubr.bf16.mxu0 %v505
    %704 = vmatmul.mubr.bf16.gmra.mrb[0].mxu0 %v504
    %v705 = vpop.f32.mrb[0].mxu0
    %v706 = vadd.f32 %v573, %v705
    %v707 = vpop.f32.mrb[0].mxu0
    %v708 = vpop.f32.mrb[0].mxu0
    %v709 = vadd.f32 %v573, %v708
    %v710 = vpop.f32.mrb[0].mxu0
    %711 = vmatprep.mubr.bf16.mxu0 %v507
    %712 = vmatmul.mubr.bf16.gmra.mrb[0].mxu0 %v506
    %v713 = vpop.f32.mrb[0].mxu0
    %v714 = vadd.f32 %v573, %v713
    %v715 = vpop.f32.mrb[0].mxu0
    %v716 = vpop.f32.mrb[0].mxu0
    %v717 = vadd.f32 %v573, %v716
    %v718 = vpop.f32.mrb[0].mxu0
    %719 = vmatprep.mubr.bf16.mxu0 %v509
    %720 = vmatmul.mubr.bf16.gmra.mrb[0].mxu0 %v508
    %v721 = vpop.f32.mrb[0].mxu0
    %v722 = vadd.f32 %v573, %v721
    %v723 = vpop.f32.mrb[0].mxu0
    %v724 = vpop.f32.mrb[0].mxu0
    %v725 = vadd.f32 %v573, %v724
    %v726 = vpop.f32.mrb[0].mxu0
    %727 = vmatprep.mubr.bf16.mxu0 %v511
    %728 = vmatmul.mubr.bf16.gmra.mrb[0].mxu0 %v510
    %v729 = vpop.f32.mrb[0].mxu0
    %v730 = vadd.f32 %v573, %v729
    %v731 = vpop.f32.mrb[0].mxu0
    %v732 = vpop.f32.mrb[0].mxu0
    %v733 = vadd.f32 %v573, %v732
    %v734 = vpop.f32.mrb[0].mxu0
    %735 = vmatprep.mubr.bf16.mxu0 %v513
    %736 = vmatmul.mubr.bf16.gmra.mrb[0].mxu0 %v512
    %v737 = vpop.f32.mrb[0].mxu0
    %v738 = vadd.f32 %v573, %v737
    %v739 = vpop.f32.mrb[0].mxu0
    %v740 = vpop.f32.mrb[0].mxu0
    %v741 = vadd.f32 %v573, %v740
    %v742 = vpop.f32.mrb[0].mxu0
    %743 = vmatprep.mubr.bf16.mxu0 %v515
    %744 = vmatmul.mubr.bf16.gmra.mrb[0].mxu0 %v514
    %v745 = vpop.f32.mrb[0].mxu0
    %v746 = vadd.f32 %v573, %v745
    %v747 = vpop.f32.mrb[0].mxu0
    %v748 = vpop.f32.mrb[0].mxu0
    %v749 = vadd.f32 %v573, %v748
    %v750 = vpop.f32.mrb[0].mxu0
    %751 = vmatprep.mubr.bf16.mxu0 %v517
    %752 = vmatmul.mubr.bf16.gmra.mrb[0].mxu0 %v516
    %v753 = vpop.f32.mrb[0].mxu0
    %v754 = vadd.f32 %v573, %v753
    %v755 = vpop.f32.mrb[0].mxu0
    %v756 = vpop.f32.mrb[0].mxu0
    %v757 = vadd.f32 %v573, %v756
    %v758 = vpop.f32.mrb[0].mxu0
    %759 = vmatprep.mubr.bf16.mxu0 %v519
    %760 = vmatmul.mubr.bf16.gmra.mrb[0].mxu0 %v518
    %v761 = vpop.f32.mrb[0].mxu0
    %v762 = vadd.f32 %v573, %v761
    %v763 = vpop.f32.mrb[0].mxu0
    %v764 = vpop.f32.mrb[0].mxu0
    %v765 = vadd.f32 %v573, %v764
    %v766 = vpop.f32.mrb[0].mxu0
    %767 = vmatprep.mubr.bf16.mxu0 %v521
    %768 = vmatmul.mubr.bf16.gmra.mrb[0].mxu0 %v520
    %v769 = vpop.f32.mrb[0].mxu0
    %v770 = vadd.f32 %v573, %v769
    %v771 = vpop.f32.mrb[0].mxu0
    %v772 = vpop.f32.mrb[0].mxu0
    %v773 = vadd.f32 %v573, %v772
    %v774 = vpop.f32.mrb[0].mxu0
    %775 = vmatprep.mubr.bf16.mxu0 %v523
    %776 = vmatmul.mubr.bf16.gmra.mrb[0].mxu0 %v522
    %v777 = vpop.f32.mrb[0].mxu0
    %v778 = vadd.f32 %v573, %v777
    %v779 = vpop.f32.mrb[0].mxu0
    %v780 = vpop.f32.mrb[0].mxu0
    %v781 = vadd.f32 %v573, %v780
    %v782 = vpop.f32.mrb[0].mxu0
    %783 = vmatprep.mubr.bf16.mxu0 %v525
    %784 = vmatmul.mubr.bf16.gmra.mrb[0].mxu0 %v524
    %v785 = vpop.f32.mrb[0].mxu0
    %v786 = vadd.f32 %v573, %v785
    %v787 = vpop.f32.mrb[0].mxu0
    %v788 = vpop.f32.mrb[0].mxu0
    %v789 = vadd.f32 %v573, %v788
    %v790 = vpop.f32.mrb[0].mxu0
    %791 = vmatprep.mubr.bf16.mxu0 %v527
    %792 = vmatmul.mubr.bf16.gmra.mrb[0].mxu0 %v526
    %v793 = vpop.f32.mrb[0].mxu0
    %v794 = vadd.f32 %v573, %v793
    %v795 = vpop.f32.mrb[0].mxu0
    %v796 = vpop.f32.mrb[0].mxu0
    %v797 = vadd.f32 %v573, %v796
    %v798 = vpop.f32.mrb[0].mxu0
    %799 = vmatprep.mubr.bf16.mxu0 %v529
    %800 = vmatmul.mubr.bf16.gmra.mrb[0].mxu0 %v528
    %v801 = vpop.f32.mrb[0].mxu0
    %v802 = vadd.f32 %v573, %v801
    %v803 = vpop.f32.mrb[0].mxu0
    %v804 = vpop.f32.mrb[0].mxu0
    %v805 = vadd.f32 %v573, %v804
    %v806 = vpop.f32.mrb[0].mxu0
    %807 = vmatprep.mubr.bf16.mxu0 %v531
    %808 = vmatmul.mubr.bf16.gmra.mrb[0].mxu0 %v530
    %v809 = vpop.f32.mrb[0].mxu0
    %v810 = vadd.f32 %v573, %v809
    %v811 = vpop.f32.mrb[0].mxu0
    %v812 = vpop.f32.mrb[0].mxu0
    %v813 = vadd.f32 %v573, %v812
    %v814 = vpop.f32.mrb[0].mxu0
    %815 = vmatprep.mubr.bf16.mxu0 %v533
    %816 = vmatmul.mubr.bf16.gmra.mrb[0].mxu0 %v532
    %v817 = vpop.f32.mrb[0].mxu0
    %v818 = vadd.f32 %v573, %v817
    %v819 = vpop.f32.mrb[0].mxu0
    %v820 = vpop.f32.mrb[0].mxu0
    %v821 = vadd.f32 %v573, %v820
    %v822 = vpop.f32.mrb[0].mxu0
    %823 = vmatprep.mubr.bf16.mxu0 %v535
    %824 = vmatmul.mubr.bf16.gmra.mrb[0].mxu0 %v534
    %v825 = vpop.f32.mrb[0].mxu0
    %v826 = vadd.f32 %v573, %v825
    %v827 = vpop.f32.mrb[0].mxu0
    %v828 = vpop.f32.mrb[0].mxu0
    %v829 = vadd.f32 %v573, %v828
    %v830 = vpop.f32.mrb[0].mxu0
    %831 = vdwg.mxu0
    %v832 = vmax.f32 %v706, 0.0
    %v833 = vmax.f32 %v709, 0.0
    %v834 = vmax.f32 %v714, 0.0
    %v835 = vmax.f32 %v717, 0.0
    %v836 = vmax.f32 %v722, 0.0
    %v837 = vmax.f32 %v725, 0.0
    %v838 = vmax.f32 %v730, 0.0
    %v839 = vmax.f32 %v733, 0.0
    %v840 = vmax.f32 %v738, 0.0
    %v841 = vmax.f32 %v741, 0.0
    %v842 = vmax.f32 %v746, 0.0
    %v843 = vmax.f32 %v749, 0.0
    %v844 = vmax.f32 %v754, 0.0
    %v845 = vmax.f32 %v757, 0.0
    %v846 = vmax.f32 %v762, 0.0
    %v847 = vmax.f32 %v765, 0.0
    %v848 = vmax.f32 %v770, 0.0
    %v849 = vmax.f32 %v773, 0.0
    %v850 = vmax.f32 %v778, 0.0
    %v851 = vmax.f32 %v781, 0.0
    %v852 = vmax.f32 %v786, 0.0
    %v853 = vmax.f32 %v789, 0.0
    %v854 = vmax.f32 %v794, 0.0
    %v855 = vmax.f32 %v797, 0.0
    %v856 = vmax.f32 %v802, 0.0
    %v857 = vmax.f32 %v805, 0.0
    %v858 = vmax.f32 %v810, 0.0
    %v859 = vmax.f32 %v813, 0.0
    %v860 = vmax.f32 %v818, 0.0
    %v861 = vmax.f32 %v821, 0.0
    %v862 = vmax.f32 %v826, 0.0
    %v863 = vmax.f32 %v829, 0.0
    %v864 = vpack.c.bf16 %v833, %v832
    %v865 = vpack.c.bf16 %v835, %v834
    %v866 = vpack.c.bf16 %v837, %v836
    %v867 = vpack.c.bf16 %v839, %v838
    %v868 = vpack.c.bf16 %v841, %v840
    %v869 = vpack.c.bf16 %v843, %v842
    %v870 = vpack.c.bf16 %v845, %v844
    %v871 = vpack.c.bf16 %v847, %v846
    %v872 = vpack.c.bf16 %v849, %v848
    %v873 = vpack.c.bf16 %v851, %v850
    %v874 = vpack.c.bf16 %v853, %v852
    %v875 = vpack.c.bf16 %v855, %v854
    %v876 = vpack.c.bf16 %v857, %v856
    %v877 = vpack.c.bf16 %v859, %v858
    %v878 = vpack.c.bf16 %v861, %v860
    %v879 = vpack.c.bf16 %v863, %v862
    %v880 = vld [vmem:[#allocation2] sm:$0xf]
    %v881 = vld [vmem:[#allocation2 + $0x4] sm:$0xf]
    %v882 = vld [vmem:[#allocation2 + $0x8] sm:$0xf]
    %v883 = vld [vmem:[#allocation2 + $0xc] sm:$0xf]
    %v884 = vld [vmem:[#allocation2 + $0x10] sm:$0xf]
    %v885 = vld [vmem:[#allocation2 + $0x14] sm:$0xf]
    %v886 = vld [vmem:[#allocation2 + $0x18] sm:$0xf]
    %v887 = vld [vmem:[#allocation2 + $0x1c] sm:$0xf]
    %v888 = vld [vmem:[#allocation2 + $0x20] sm:$0xf]
    %v889 = vld [vmem:[#allocation2 + $0x24] sm:$0xf]
    %v890 = vld [vmem:[#allocation2 + $0x28] sm:$0xf]
    %v891 = vld [vmem:[#allocation2 + $0x2c] sm:$0xf]
    %v892 = vld [vmem:[#allocation2 + $0x30] sm:$0xf]
    %v893 = vld [vmem:[#allocation2 + $0x34] sm:$0xf]
    %v894 = vld [vmem:[#allocation2 + $0x38] sm:$0xf]
    %v895 = vld [vmem:[#allocation2 + $0x3c] sm:$0xf]
    %v896 = vld [vmem:[%s6] sm:$0x1]
    %v898 = vlaneseq
    %v899 = vshrl.u32 %v898, 7
    %v900 = vsub.s32 0, %v899
    %v901 = vrot.slane %v896, %v900
    %v919 = vunpack.c.l.b16 %v880
    %v920 = vunpack.c.l.b16 %v881
    %v921 = vunpack.c.l.b16 %v882
    %v922 = vunpack.c.l.b16 %v883
    %v923 = vunpack.c.l.b16 %v884
    %v924 = vunpack.c.l.b16 %v885
    %v925 = vunpack.c.l.b16 %v886
    %v926 = vunpack.c.l.b16 %v887
    %v927 = vunpack.c.l.b16 %v888
    %v928 = vunpack.c.l.b16 %v889
    %v929 = vunpack.c.l.b16 %v890
    %v930 = vunpack.c.l.b16 %v891
    %v931 = vunpack.c.l.b16 %v892
    %v932 = vunpack.c.l.b16 %v893
    %v933 = vunpack.c.l.b16 %v894
    %v934 = vunpack.c.l.b16 %v895
    %v935 = vpack.c.b16 %v920, %v919
    %v936 = vpack.c.b16 %v922, %v921
    %v937 = vpack.c.b16 %v924, %v923
    %v938 = vpack.c.b16 %v926, %v925
    %v939 = vpack.c.b16 %v928, %v927
    %v940 = vpack.c.b16 %v930, %v929
    %v941 = vpack.c.b16 %v932, %v931
    %v942 = vpack.c.b16 %v934, %v933
    %951 = vmatprep.subr.bf16.mxu0 0
    %952 = vmatpush1.bf16.msra.mxu0 %v935
    %953 = vmatprep.subr.bf16.mxu0 0
    %954 = vmatpush1.bf16.msra.mxu0 %v936
    %955 = vmatprep.subr.bf16.mxu0 0
    %956 = vmatpush1.bf16.msra.mxu0 %v937
    %957 = vmatprep.subr.bf16.mxu0 0
    %958 = vmatpush1.bf16.msra.mxu0 %v938
    %959 = vmatprep.subr.bf16.mxu0 0
    %960 = vmatpush1.bf16.msra.mxu0 %v939
    %961 = vmatprep.subr.bf16.mxu0 0
    %962 = vmatpush1.bf16.msra.mxu0 %v940
    %963 = vmatprep.subr.bf16.mxu0 0
    %964 = vmatpush1.bf16.msra.mxu0 %v941
    %965 = vmatprep.subr.bf16.mxu0 0
    %966 = vmatpush1.bf16.msra.mxu0 %v942
    %967 = vmatprep.subr.bf16.mxu0 0
    %968 = vmatpush1.bf16.msra.mxu0 0
    %969 = vmatprep.subr.bf16.mxu0 0
    %970 = vmatpush1.bf16.msra.mxu0 0
    %971 = vmatprep.subr.bf16.mxu0 0
    %972 = vmatpush1.bf16.msra.mxu0 0
    %973 = vmatprep.subr.bf16.mxu0 0
    %974 = vmatpush1.bf16.msra.mxu0 0
    %975 = vmatprep.subr.bf16.mxu0 0
    %976 = vmatpush1.bf16.msra.mxu0 0
    %977 = vmatprep.subr.bf16.mxu0 0
    %978 = vmatpush1.bf16.msra.mxu0 0
    %979 = vmatprep.subr.bf16.mxu0 0
    %980 = vmatpush1.bf16.msra.mxu0 0
    %981 = vmatprep.subr.bf16.mxu0 0
    %982 = vmatpush1.bf16.msra.mxu0 0
    %983 = vmatprep.mubr.bf16.mxu0 0
    %984 = vmatmul.mubr.bf16.gmra.mrb[0].mxu0 %v864
    %v985 = vpop.f32.mrb[0].mxu0
    %v986 = vadd.f32 %v901, %v985
    %v987 = vpop.f32.mrb[0].mxu0
    %v988 = vpop.f32.mrb[0].mxu0
    %v989 = vadd.f32 %v901, %v988
    %v990 = vpop.f32.mrb[0].mxu0
    %991 = vmatprep.mubr.bf16.mxu0 0
    %992 = vmatmul.mubr.bf16.gmra.mrb[0].mxu0 %v865
    %v993 = vpop.f32.mrb[0].mxu0
    %v994 = vadd.f32 %v901, %v993
    %v995 = vpop.f32.mrb[0].mxu0
    %v996 = vpop.f32.mrb[0].mxu0
    %v997 = vadd.f32 %v901, %v996
    %v998 = vpop.f32.mrb[0].mxu0
    %999 = vmatprep.mubr.bf16.mxu0 0
    %1000 = vmatmul.mubr.bf16.gmra.mrb[0].mxu0 %v866
    %v1001 = vpop.f32.mrb[0].mxu0
    %v1002 = vadd.f32 %v901, %v1001
    %v1003 = vpop.f32.mrb[0].mxu0
    %v1004 = vpop.f32.mrb[0].mxu0
    %v1005 = vadd.f32 %v901, %v1004
    %v1006 = vpop.f32.mrb[0].mxu0
    %1007 = vmatprep.mubr.bf16.mxu0 0
    %1008 = vmatmul.mubr.bf16.gmra.mrb[0].mxu0 %v867
    %v1009 = vpop.f32.mrb[0].mxu0
    %v1010 = vadd.f32 %v901, %v1009
    %v1011 = vpop.f32.mrb[0].mxu0
    %v1012 = vpop.f32.mrb[0].mxu0
    %v1013 = vadd.f32 %v901, %v1012
    %v1014 = vpop.f32.mrb[0].mxu0
    %1015 = vmatprep.mubr.bf16.mxu0 0
    %1016 = vmatmul.mubr.bf16.gmra.mrb[0].mxu0 %v868
    %v1017 = vpop.f32.mrb[0].mxu0
    %v1018 = vadd.f32 %v901, %v1017
    %v1019 = vpop.f32.mrb[0].mxu0
    %v1020 = vpop.f32.mrb[0].mxu0
    %v1021 = vadd.f32 %v901, %v1020
    %v1022 = vpop.f32.mrb[0].mxu0
    %1023 = vmatprep.mubr.bf16.mxu0 0
    %1024 = vmatmul.mubr.bf16.gmra.mrb[0].mxu0 %v869
    %v1025 = vpop.f32.mrb[0].mxu0
    %v1026 = vadd.f32 %v901, %v1025
    %v1027 = vpop.f32.mrb[0].mxu0
    %v1028 = vpop.f32.mrb[0].mxu0
    %v1029 = vadd.f32 %v901, %v1028
    %v1030 = vpop.f32.mrb[0].mxu0
    %1031 = vmatprep.mubr.bf16.mxu0 0
    %1032 = vmatmul.mubr.bf16.gmra.mrb[0].mxu0 %v870
    %v1033 = vpop.f32.mrb[0].mxu0
    %v1034 = vadd.f32 %v901, %v1033
    %v1035 = vpop.f32.mrb[0].mxu0
    %v1036 = vpop.f32.mrb[0].mxu0
    %v1037 = vadd.f32 %v901, %v1036
    %v1038 = vpop.f32.mrb[0].mxu0
    %1039 = vmatprep.mubr.bf16.mxu0 0
    %1040 = vmatmul.mubr.bf16.gmra.mrb[0].mxu0 %v871
    %v1041 = vpop.f32.mrb[0].mxu0
    %v1042 = vadd.f32 %v901, %v1041
    %v1043 = vpop.f32.mrb[0].mxu0
    %v1044 = vpop.f32.mrb[0].mxu0
    %v1045 = vadd.f32 %v901, %v1044
    %v1046 = vpop.f32.mrb[0].mxu0
    %1047 = vmatprep.mubr.bf16.mxu0 0
    %1048 = vmatmul.mubr.bf16.gmra.mrb[0].mxu0 %v872
    %v1049 = vpop.f32.mrb[0].mxu0
    %v1050 = vadd.f32 %v901, %v1049
    %v1051 = vpop.f32.mrb[0].mxu0
    %v1052 = vpop.f32.mrb[0].mxu0
    %v1053 = vadd.f32 %v901, %v1052
    %v1054 = vpop.f32.mrb[0].mxu0
    %1055 = vmatprep.mubr.bf16.mxu0 0
    %1056 = vmatmul.mubr.bf16.gmra.mrb[0].mxu0 %v873
    %v1057 = vpop.f32.mrb[0].mxu0
    %v1058 = vadd.f32 %v901, %v1057
    %v1059 = vpop.f32.mrb[0].mxu0
    %v1060 = vpop.f32.mrb[0].mxu0
    %v1061 = vadd.f32 %v901, %v1060
    %v1062 = vpop.f32.mrb[0].mxu0
    %1063 = vmatprep.mubr.bf16.mxu0 0
    %1064 = vmatmul.mubr.bf16.gmra.mrb[0].mxu0 %v874
    %v1065 = vpop.f32.mrb[0].mxu0
    %v1066 = vadd.f32 %v901, %v1065
    %v1067 = vpop.f32.mrb[0].mxu0
    %v1068 = vpop.f32.mrb[0].mxu0
    %v1069 = vadd.f32 %v901, %v1068
    %v1070 = vpop.f32.mrb[0].mxu0
    %1071 = vmatprep.mubr.bf16.mxu0 0
    %1072 = vmatmul.mubr.bf16.gmra.mrb[0].mxu0 %v875
    %v1073 = vpop.f32.mrb[0].mxu0
    %v1074 = vadd.f32 %v901, %v1073
    %v1075 = vpop.f32.mrb[0].mxu0
    %v1076 = vpop.f32.mrb[0].mxu0
    %v1077 = vadd.f32 %v901, %v1076
    %v1078 = vpop.f32.mrb[0].mxu0
    %1079 = vmatprep.mubr.bf16.mxu0 0
    %1080 = vmatmul.mubr.bf16.gmra.mrb[0].mxu0 %v876
    %v1081 = vpop.f32.mrb[0].mxu0
    %v1082 = vadd.f32 %v901, %v1081
    %v1083 = vpop.f32.mrb[0].mxu0
    %v1084 = vpop.f32.mrb[0].mxu0
    %v1085 = vadd.f32 %v901, %v1084
    %v1086 = vpop.f32.mrb[0].mxu0
    %1087 = vmatprep.mubr.bf16.mxu0 0
    %1088 = vmatmul.mubr.bf16.gmra.mrb[0].mxu0 %v877
    %v1089 = vpop.f32.mrb[0].mxu0
    %v1090 = vadd.f32 %v901, %v1089
    %v1091 = vpop.f32.mrb[0].mxu0
    %v1092 = vpop.f32.mrb[0].mxu0
    %v1093 = vadd.f32 %v901, %v1092
    %v1094 = vpop.f32.mrb[0].mxu0
    %1095 = vmatprep.mubr.bf16.mxu0 0
    %1096 = vmatmul.mubr.bf16.gmra.mrb[0].mxu0 %v878
    %v1097 = vpop.f32.mrb[0].mxu0
    %v1098 = vadd.f32 %v901, %v1097
    %v1099 = vpop.f32.mrb[0].mxu0
    %v1100 = vpop.f32.mrb[0].mxu0
    %v1101 = vadd.f32 %v901, %v1100
    %v1102 = vpop.f32.mrb[0].mxu0
    %1103 = vmatprep.mubr.bf16.mxu0 0
    %1104 = vmatmul.mubr.bf16.gmra.mrb[0].mxu0 %v879
    %v1105 = vpop.f32.mrb[0].mxu0
    %v1106 = vadd.f32 %v901, %v1105
    %v1107 = vpop.f32.mrb[0].mxu0
    %v1108 = vpop.f32.mrb[0].mxu0
    %v1109 = vadd.f32 %v901, %v1108
    %v1110 = vpop.f32.mrb[0].mxu0
    %1111 = vdwg.mxu0
    %v1112 = vmax.f32 %v986, 0.0
    %v1113 = vmax.f32 %v989, 0.0
    %v1114 = vmax.f32 %v994, 0.0
    %v1115 = vmax.f32 %v997, 0.0
    %v1116 = vmax.f32 %v1002, 0.0
    %v1117 = vmax.f32 %v1005, 0.0
    %v1118 = vmax.f32 %v1010, 0.0
    %v1119 = vmax.f32 %v1013, 0.0
    %v1120 = vmax.f32 %v1018, 0.0
    %v1121 = vmax.f32 %v1021, 0.0
    %v1122 = vmax.f32 %v1026, 0.0
    %v1123 = vmax.f32 %v1029, 0.0
    %v1124 = vmax.f32 %v1034, 0.0
    %v1125 = vmax.f32 %v1037, 0.0
    %v1126 = vmax.f32 %v1042, 0.0
    %v1127 = vmax.f32 %v1045, 0.0
    %v1128 = vmax.f32 %v1050, 0.0
    %v1129 = vmax.f32 %v1053, 0.0
    %v1130 = vmax.f32 %v1058, 0.0
    %v1131 = vmax.f32 %v1061, 0.0
    %v1132 = vmax.f32 %v1066, 0.0
    %v1133 = vmax.f32 %v1069, 0.0
    %v1134 = vmax.f32 %v1074, 0.0
    %v1135 = vmax.f32 %v1077, 0.0
    %v1136 = vmax.f32 %v1082, 0.0
    %v1137 = vmax.f32 %v1085, 0.0
    %v1138 = vmax.f32 %v1090, 0.0
    %v1139 = vmax.f32 %v1093, 0.0
    %v1140 = vmax.f32 %v1098, 0.0
    %v1141 = vmax.f32 %v1101, 0.0
    %v1142 = vmax.f32 %v1106, 0.0
    %v1143 = vmax.f32 %v1109, 0.0
    %v1144 = vpack.c.bf16 %v1113, %v1112
    %v1145 = vpack.c.bf16 %v1115, %v1114
    %v1146 = vpack.c.bf16 %v1117, %v1116
    %v1147 = vpack.c.bf16 %v1119, %v1118
    %v1148 = vpack.c.bf16 %v1121, %v1120
    %v1149 = vpack.c.bf16 %v1123, %v1122
    %v1150 = vpack.c.bf16 %v1125, %v1124
    %v1151 = vpack.c.bf16 %v1127, %v1126
    %v1152 = vpack.c.bf16 %v1129, %v1128
    %v1153 = vpack.c.bf16 %v1131, %v1130
    %v1154 = vpack.c.bf16 %v1133, %v1132
    %v1155 = vpack.c.bf16 %v1135, %v1134
    %v1156 = vpack.c.bf16 %v1137, %v1136
    %v1157 = vpack.c.bf16 %v1139, %v1138
    %v1158 = vpack.c.bf16 %v1141, %v1140
    %v1159 = vpack.c.bf16 %v1143, %v1142
    %v1160 = vld [vmem:[#allocation5] sm:$0xf]
    %v1161 = vld [vmem:[#allocation5 + $0x4] sm:$0xf]
    %v1162 = vld [vmem:[#allocation5 + $0x8] sm:$0xf]
    %v1163 = vld [vmem:[#allocation5 + $0xc] sm:$0xf]
    %v1164 = vld [vmem:[#allocation5 + $0x10] sm:$0xf]
    %v1165 = vld [vmem:[#allocation5 + $0x14] sm:$0xf]
    %v1166 = vld [vmem:[#allocation5 + $0x18] sm:$0xf]
    %v1167 = vld [vmem:[#allocation5 + $0x1c] sm:$0xf]
    %v1168 = vld [vmem:[#allocation5 + $0x20] sm:$0xf]
    %v1169 = vld [vmem:[#allocation5 + $0x24] sm:$0xf]
    %v1170 = vld [vmem:[#allocation5 + $0x28] sm:$0xf]
    %v1171 = vld [vmem:[#allocation5 + $0x2c] sm:$0xf]
    %v1172 = vld [vmem:[#allocation5 + $0x30] sm:$0xf]
    %v1173 = vld [vmem:[#allocation5 + $0x34] sm:$0xf]
    %v1174 = vld [vmem:[#allocation5 + $0x38] sm:$0xf]
    %v1175 = vld [vmem:[#allocation5 + $0x3c] sm:$0xf]
    %v1176 = vld [vmem:[%s8] sm:$0x1]
    %v1178 = vlaneseq
    %v1179 = vshrl.u32 %v1178, 7
    %v1180 = vsub.s32 0, %v1179
    %v1181 = vrot.slane %v1176, %v1180
    %v1199 = vunpack.c.l.b16 %v1160
    %v1200 = vunpack.c.l.b16 %v1161
    %v1201 = vunpack.c.l.b16 %v1162
    %v1202 = vunpack.c.l.b16 %v1163
    %v1203 = vunpack.c.l.b16 %v1164
    %v1204 = vunpack.c.l.b16 %v1165
    %v1205 = vunpack.c.l.b16 %v1166
    %v1206 = vunpack.c.l.b16 %v1167
    %v1207 = vunpack.c.l.b16 %v1168
    %v1208 = vunpack.c.l.b16 %v1169
    %v1209 = vunpack.c.l.b16 %v1170
    %v1210 = vunpack.c.l.b16 %v1171
    %v1211 = vunpack.c.l.b16 %v1172
    %v1212 = vunpack.c.l.b16 %v1173
    %v1213 = vunpack.c.l.b16 %v1174
    %v1214 = vunpack.c.l.b16 %v1175
    %v1215 = vpack.c.b16 %v1200, %v1199
    %v1216 = vpack.c.b16 %v1202, %v1201
    %v1217 = vpack.c.b16 %v1204, %v1203
    %v1218 = vpack.c.b16 %v1206, %v1205
    %v1219 = vpack.c.b16 %v1208, %v1207
    %v1220 = vpack.c.b16 %v1210, %v1209
    %v1221 = vpack.c.b16 %v1212, %v1211
    %v1222 = vpack.c.b16 %v1214, %v1213
    %1231 = vmatprep.subr.bf16.mxu0 0
    %1232 = vmatpush1.bf16.msra.mxu0 %v1215
    %1233 = vmatprep.subr.bf16.mxu0 0
    %1234 = vmatpush1.bf16.msra.mxu0 %v1216
    %1235 = vmatprep.subr.bf16.mxu0 0
    %1236 = vmatpush1.bf16.msra.mxu0 %v1217
    %1237 = vmatprep.subr.bf16.mxu0 0
    %1238 = vmatpush1.bf16.msra.mxu0 %v1218
    %1239 = vmatprep.subr.bf16.mxu0 0
    %1240 = vmatpush1.bf16.msra.mxu0 %v1219
    %1241 = vmatprep.subr.bf16.mxu0 0
    %1242 = vmatpush1.bf16.msra.mxu0 %v1220
    %1243 = vmatprep.subr.bf16.mxu0 0
    %1244 = vmatpush1.bf16.msra.mxu0 %v1221
    %1245 = vmatprep.subr.bf16.mxu0 0
    %1246 = vmatpush1.bf16.msra.mxu0 %v1222
    %1247 = vmatprep.subr.bf16.mxu0 0
    %1248 = vmatpush1.bf16.msra.mxu0 0
    %1249 = vmatprep.subr.bf16.mxu0 0
    %1250 = vmatpush1.bf16.msra.mxu0 0
    %1251 = vmatprep.subr.bf16.mxu0 0
    %1252 = vmatpush1.bf16.msra.mxu0 0
    %1253 = vmatprep.subr.bf16.mxu0 0
    %1254 = vmatpush1.bf16.msra.mxu0 0
    %1255 = vmatprep.subr.bf16.mxu0 0
    %1256 = vmatpush1.bf16.msra.mxu0 0
    %1257 = vmatprep.subr.bf16.mxu0 0
    %1258 = vmatpush1.bf16.msra.mxu0 0
    %1259 = vmatprep.subr.bf16.mxu0 0
    %1260 = vmatpush1.bf16.msra.mxu0 0
    %1261 = vmatprep.subr.bf16.mxu0 0
    %1262 = vmatpush1.bf16.msra.mxu0 0
    %1263 = vmatprep.mubr.bf16.mxu0 0
    %1264 = vmatmul.mubr.bf16.gmra.mrb[0].mxu0 %v1144
    %v1265 = vpop.f32.mrb[0].mxu0
    %v1266 = vadd.f32 %v1181, %v1265
    %v1267 = vpop.f32.mrb[0].mxu0
    %v1268 = vpop.f32.mrb[0].mxu0
    %v1269 = vadd.f32 %v1181, %v1268
    %v1270 = vpop.f32.mrb[0].mxu0
    %1271 = vmatprep.mubr.bf16.mxu0 0
    %1272 = vmatmul.mubr.bf16.gmra.mrb[0].mxu0 %v1145
    %v1273 = vpop.f32.mrb[0].mxu0
    %v1274 = vadd.f32 %v1181, %v1273
    %v1275 = vpop.f32.mrb[0].mxu0
    %v1276 = vpop.f32.mrb[0].mxu0
    %v1277 = vadd.f32 %v1181, %v1276
    %v1278 = vpop.f32.mrb[0].mxu0
    %1279 = vmatprep.mubr.bf16.mxu0 0
    %1280 = vmatmul.mubr.bf16.gmra.mrb[0].mxu0 %v1146
    %v1281 = vpop.f32.mrb[0].mxu0
    %v1282 = vadd.f32 %v1181, %v1281
    %v1283 = vpop.f32.mrb[0].mxu0
    %v1284 = vpop.f32.mrb[0].mxu0
    %v1285 = vadd.f32 %v1181, %v1284
    %v1286 = vpop.f32.mrb[0].mxu0
    %1287 = vmatprep.mubr.bf16.mxu0 0
    %1288 = vmatmul.mubr.bf16.gmra.mrb[0].mxu0 %v1147
    %v1289 = vpop.f32.mrb[0].mxu0
    %v1290 = vadd.f32 %v1181, %v1289
    %v1291 = vpop.f32.mrb[0].mxu0
    %v1292 = vpop.f32.mrb[0].mxu0
    %v1293 = vadd.f32 %v1181, %v1292
    %v1294 = vpop.f32.mrb[0].mxu0
    %1295 = vmatprep.mubr.bf16.mxu0 0
    %1296 = vmatmul.mubr.bf16.gmra.mrb[0].mxu0 %v1148
    %v1297 = vpop.f32.mrb[0].mxu0
    %v1298 = vadd.f32 %v1181, %v1297
    %v1299 = vpop.f32.mrb[0].mxu0
    %v1300 = vpop.f32.mrb[0].mxu0
    %v1301 = vadd.f32 %v1181, %v1300
    %v1302 = vpop.f32.mrb[0].mxu0
    %1303 = vmatprep.mubr.bf16.mxu0 0
    %1304 = vmatmul.mubr.bf16.gmra.mrb[0].mxu0 %v1149
    %v1305 = vpop.f32.mrb[0].mxu0
    %v1306 = vadd.f32 %v1181, %v1305
    %v1307 = vpop.f32.mrb[0].mxu0
    %v1308 = vpop.f32.mrb[0].mxu0
    %v1309 = vadd.f32 %v1181, %v1308
    %v1310 = vpop.f32.mrb[0].mxu0
    %1311 = vmatprep.mubr.bf16.mxu0 0
    %1312 = vmatmul.mubr.bf16.gmra.mrb[0].mxu0 %v1150
    %v1313 = vpop.f32.mrb[0].mxu0
    %v1314 = vadd.f32 %v1181, %v1313
    %v1315 = vpop.f32.mrb[0].mxu0
    %v1316 = vpop.f32.mrb[0].mxu0
    %v1317 = vadd.f32 %v1181, %v1316
    %v1318 = vpop.f32.mrb[0].mxu0
    %1319 = vmatprep.mubr.bf16.mxu0 0
    %1320 = vmatmul.mubr.bf16.gmra.mrb[0].mxu0 %v1151
    %v1321 = vpop.f32.mrb[0].mxu0
    %v1322 = vadd.f32 %v1181, %v1321
    %v1323 = vpop.f32.mrb[0].mxu0
    %v1324 = vpop.f32.mrb[0].mxu0
    %v1325 = vadd.f32 %v1181, %v1324
    %v1326 = vpop.f32.mrb[0].mxu0
    %1327 = vmatprep.mubr.bf16.mxu0 0
    %1328 = vmatmul.mubr.bf16.gmra.mrb[0].mxu0 %v1152
    %v1329 = vpop.f32.mrb[0].mxu0
    %v1330 = vadd.f32 %v1181, %v1329
    %v1331 = vpop.f32.mrb[0].mxu0
    %v1332 = vpop.f32.mrb[0].mxu0
    %v1333 = vadd.f32 %v1181, %v1332
    %v1334 = vpop.f32.mrb[0].mxu0
    %1335 = vmatprep.mubr.bf16.mxu0 0
    %1336 = vmatmul.mubr.bf16.gmra.mrb[0].mxu0 %v1153
    %v1337 = vpop.f32.mrb[0].mxu0
    %v1338 = vadd.f32 %v1181, %v1337
    %v1339 = vpop.f32.mrb[0].mxu0
    %v1340 = vpop.f32.mrb[0].mxu0
    %v1341 = vadd.f32 %v1181, %v1340
    %v1342 = vpop.f32.mrb[0].mxu0
    %1343 = vmatprep.mubr.bf16.mxu0 0
    %1344 = vmatmul.mubr.bf16.gmra.mrb[0].mxu0 %v1154
    %v1345 = vpop.f32.mrb[0].mxu0
    %v1346 = vadd.f32 %v1181, %v1345
    %v1347 = vpop.f32.mrb[0].mxu0
    %v1348 = vpop.f32.mrb[0].mxu0
    %v1349 = vadd.f32 %v1181, %v1348
    %v1350 = vpop.f32.mrb[0].mxu0
    %1351 = vmatprep.mubr.bf16.mxu0 0
    %1352 = vmatmul.mubr.bf16.gmra.mrb[0].mxu0 %v1155
    %v1353 = vpop.f32.mrb[0].mxu0
    %v1354 = vadd.f32 %v1181, %v1353
    %v1355 = vpop.f32.mrb[0].mxu0
    %v1356 = vpop.f32.mrb[0].mxu0
    %v1357 = vadd.f32 %v1181, %v1356
    %v1358 = vpop.f32.mrb[0].mxu0
    %1359 = vmatprep.mubr.bf16.mxu0 0
    %1360 = vmatmul.mubr.bf16.gmra.mrb[0].mxu0 %v1156
    %v1361 = vpop.f32.mrb[0].mxu0
    %v1362 = vadd.f32 %v1181, %v1361
    %v1363 = vpop.f32.mrb[0].mxu0
    %v1364 = vpop.f32.mrb[0].mxu0
    %v1365 = vadd.f32 %v1181, %v1364
    %v1366 = vpop.f32.mrb[0].mxu0
    %1367 = vmatprep.mubr.bf16.mxu0 0
    %1368 = vmatmul.mubr.bf16.gmra.mrb[0].mxu0 %v1157
    %v1369 = vpop.f32.mrb[0].mxu0
    %v1370 = vadd.f32 %v1181, %v1369
    %v1371 = vpop.f32.mrb[0].mxu0
    %v1372 = vpop.f32.mrb[0].mxu0
    %v1373 = vadd.f32 %v1181, %v1372
    %v1374 = vpop.f32.mrb[0].mxu0
    %1375 = vmatprep.mubr.bf16.mxu0 0
    %1376 = vmatmul.mubr.bf16.gmra.mrb[0].mxu0 %v1158
    %v1377 = vpop.f32.mrb[0].mxu0
    %v1378 = vadd.f32 %v1181, %v1377
    %v1379 = vpop.f32.mrb[0].mxu0
    %v1380 = vpop.f32.mrb[0].mxu0
    %v1381 = vadd.f32 %v1181, %v1380
    %v1382 = vpop.f32.mrb[0].mxu0
    %1383 = vmatprep.mubr.bf16.mxu0 0
    %1384 = vmatmul.mubr.bf16.gmra.mrb[0].mxu0 %v1159
    %v1385 = vpop.f32.mrb[0].mxu0
    %v1386 = vadd.f32 %v1181, %v1385
    %v1387 = vpop.f32.mrb[0].mxu0
    %v1388 = vpop.f32.mrb[0].mxu0
    %v1389 = vadd.f32 %v1181, %v1388
    %v1390 = vpop.f32.mrb[0].mxu0
    %1391 = vdwg.mxu0
    %1392 = vmax.xlane.f32.xlu0 %v1266
    %v1393 = vpop.xlane.xlu0 %1392
    %1394 = vmax.xlane.f32.xlu0 %v1269
    %v1395 = vpop.xlane.xlu0 %1394
    %1396 = vmax.xlane.f32.xlu0 %v1274
    %v1397 = vpop.xlane.xlu0 %1396
    %1398 = vmax.xlane.f32.xlu0 %v1277
    %v1399 = vpop.xlane.xlu0 %1398
    %1400 = vmax.xlane.f32.xlu0 %v1282
    %v1401 = vpop.xlane.xlu0 %1400
    %1402 = vmax.xlane.f32.xlu0 %v1285
    %v1403 = vpop.xlane.xlu0 %1402
    %1404 = vmax.xlane.f32.xlu0 %v1290
    %v1405 = vpop.xlane.xlu0 %1404
    %1406 = vmax.xlane.f32.xlu0 %v1293
    %v1407 = vpop.xlane.xlu0 %1406
    %1408 = vmax.xlane.f32.xlu0 %v1298
    %v1409 = vpop.xlane.xlu0 %1408
    %1410 = vmax.xlane.f32.xlu0 %v1301
    %v1411 = vpop.xlane.xlu0 %1410
    %1412 = vmax.xlane.f32.xlu0 %v1306
    %v1413 = vpop.xlane.xlu0 %1412
    %1414 = vmax.xlane.f32.xlu0 %v1309
    %v1415 = vpop.xlane.xlu0 %1414
    %1416 = vmax.xlane.f32.xlu0 %v1314
    %v1417 = vpop.xlane.xlu0 %1416
    %1418 = vmax.xlane.f32.xlu0 %v1317
    %v1419 = vpop.xlane.xlu0 %1418
    %1420 = vmax.xlane.f32.xlu0 %v1322
    %v1421 = vpop.xlane.xlu0 %1420
    %1422 = vmax.xlane.f32.xlu0 %v1325
    %v1423 = vpop.xlane.xlu0 %1422
    %1424 = vmax.xlane.f32.xlu0 %v1330
    %v1425 = vpop.xlane.xlu0 %1424
    %1426 = vmax.xlane.f32.xlu0 %v1333
    %v1427 = vpop.xlane.xlu0 %1426
    %1428 = vmax.xlane.f32.xlu0 %v1338
    %v1429 = vpop.xlane.xlu0 %1428
    %1430 = vmax.xlane.f32.xlu0 %v1341
    %v1431 = vpop.xlane.xlu0 %1430
    %1432 = vmax.xlane.f32.xlu0 %v1346
    %v1433 = vpop.xlane.xlu0 %1432
    %1434 = vmax.xlane.f32.xlu0 %v1349
    %v1435 = vpop.xlane.xlu0 %1434
    %1436 = vmax.xlane.f32.xlu0 %v1354
    %v1437 = vpop.xlane.xlu0 %1436
    %1438 = vmax.xlane.f32.xlu0 %v1357
    %v1439 = vpop.xlane.xlu0 %1438
    %1440 = vmax.xlane.f32.xlu0 %v1362
    %v1441 = vpop.xlane.xlu0 %1440
    %1442 = vmax.xlane.f32.xlu0 %v1365
    %v1443 = vpop.xlane.xlu0 %1442
    %1444 = vmax.xlane.f32.xlu0 %v1370
    %v1445 = vpop.xlane.xlu0 %1444
    %1446 = vmax.xlane.f32.xlu0 %v1373
    %v1447 = vpop.xlane.xlu0 %1446
    %1448 = vmax.xlane.f32.xlu0 %v1378
    %v1449 = vpop.xlane.xlu0 %1448
    %1450 = vmax.xlane.f32.xlu0 %v1381
    %v1451 = vpop.xlane.xlu0 %1450
    %1452 = vmax.xlane.f32.xlu0 %v1386
    %v1453 = vpop.xlane.xlu0 %1452
    %1454 = vmax.xlane.f32.xlu0 %v1389
    %v1455 = vpop.xlane.xlu0 %1454
    %v1456 = vsub.f32 %v1266, %v1393
    %v1457 = vsub.f32 %v1269, %v1395
    %v1458 = vsub.f32 %v1274, %v1397
    %v1459 = vsub.f32 %v1277, %v1399
    %v1460 = vsub.f32 %v1282, %v1401
    %v1461 = vsub.f32 %v1285, %v1403
    %v1462 = vsub.f32 %v1290, %v1405
    %v1463 = vsub.f32 %v1293, %v1407
    %v1464 = vsub.f32 %v1298, %v1409
    %v1465 = vsub.f32 %v1301, %v1411
    %v1466 = vsub.f32 %v1306, %v1413
    %v1467 = vsub.f32 %v1309, %v1415
    %v1468 = vsub.f32 %v1314, %v1417
    %v1469 = vsub.f32 %v1317, %v1419
    %v1470 = vsub.f32 %v1322, %v1421
    %v1471 = vsub.f32 %v1325, %v1423
    %v1472 = vsub.f32 %v1330, %v1425
    %v1473 = vsub.f32 %v1333, %v1427
    %v1474 = vsub.f32 %v1338, %v1429
    %v1475 = vsub.f32 %v1341, %v1431
    %v1476 = vsub.f32 %v1346, %v1433
    %v1477 = vsub.f32 %v1349, %v1435
    %v1478 = vsub.f32 %v1354, %v1437
    %v1479 = vsub.f32 %v1357, %v1439
    %v1480 = vsub.f32 %v1362, %v1441
    %v1481 = vsub.f32 %v1365, %v1443
    %v1482 = vsub.f32 %v1370, %v1445
    %v1483 = vsub.f32 %v1373, %v1447
    %v1484 = vsub.f32 %v1378, %v1449
    %v1485 = vsub.f32 %v1381, %v1451
    %v1486 = vsub.f32 %v1386, %v1453
    %v1487 = vsub.f32 %v1389, %v1455
    %v1488 = vmul.f32 %v1456, 1.442695
    %v1489 = vpow.pop %v1488
    %v1490 = vmul.f32 %v1457, 1.442695
    %v1491 = vpow.pop %v1490
    %v1492 = vmul.f32 %v1458, 1.442695
    %v1493 = vpow.pop %v1492
    %v1494 = vmul.f32 %v1459, 1.442695
    %v1495 = vpow.pop %v1494
    %v1496 = vmul.f32 %v1460, 1.442695
    %v1497 = vpow.pop %v1496
    %v1498 = vmul.f32 %v1461, 1.442695
    %v1499 = vpow.pop %v1498
    %v1500 = vmul.f32 %v1462, 1.442695
    %v1501 = vpow.pop %v1500
    %v1502 = vmul.f32 %v1463, 1.442695
    %v1503 = vpow.pop %v1502
    %v1504 = vmul.f32 %v1464, 1.442695
    %v1505 = vpow.pop %v1504
    %v1506 = vmul.f32 %v1465, 1.442695
    %v1507 = vpow.pop %v1506
    %v1508 = vmul.f32 %v1466, 1.442695
    %v1509 = vpow.pop %v1508
    %v1510 = vmul.f32 %v1467, 1.442695
    %v1511 = vpow.pop %v1510
    %v1512 = vmul.f32 %v1468, 1.442695
    %v1513 = vpow.pop %v1512
    %v1514 = vmul.f32 %v1469, 1.442695
    %v1515 = vpow.pop %v1514
    %v1516 = vmul.f32 %v1470, 1.442695
    %v1517 = vpow.pop %v1516
    %v1518 = vmul.f32 %v1471, 1.442695
    %v1519 = vpow.pop %v1518
    %v1520 = vmul.f32 %v1472, 1.442695
    %v1521 = vpow.pop %v1520
    %v1522 = vmul.f32 %v1473, 1.442695
    %v1523 = vpow.pop %v1522
    %v1524 = vmul.f32 %v1474, 1.442695
    %v1525 = vpow.pop %v1524
    %v1526 = vmul.f32 %v1475, 1.442695
    %v1527 = vpow.pop %v1526
    %v1528 = vmul.f32 %v1476, 1.442695
    %v1529 = vpow.pop %v1528
    %v1530 = vmul.f32 %v1477, 1.442695
    %v1531 = vpow.pop %v1530
    %v1532 = vmul.f32 %v1478, 1.442695
    %v1533 = vpow.pop %v1532
    %v1534 = vmul.f32 %v1479, 1.442695
    %v1535 = vpow.pop %v1534
    %v1536 = vmul.f32 %v1480, 1.442695
    %v1537 = vpow.pop %v1536
    %v1538 = vmul.f32 %v1481, 1.442695
    %v1539 = vpow.pop %v1538
    %v1540 = vmul.f32 %v1482, 1.442695
    %v1541 = vpow.pop %v1540
    %v1542 = vmul.f32 %v1483, 1.442695
    %v1543 = vpow.pop %v1542
    %v1544 = vmul.f32 %v1484, 1.442695
    %v1545 = vpow.pop %v1544
    %v1546 = vmul.f32 %v1485, 1.442695
    %v1547 = vpow.pop %v1546
    %v1548 = vmul.f32 %v1486, 1.442695
    %v1549 = vpow.pop %v1548
    %v1550 = vmul.f32 %v1487, 1.442695
    %v1551 = vpow.pop %v1550
    %1552 = vadd.xlane.f32.xlu0 %v1489
    %v1553 = vpop.xlane.xlu0 %1552
    %1554 = vadd.xlane.f32.xlu0 %v1491
    %v1555 = vpop.xlane.xlu0 %1554
    %1556 = vadd.xlane.f32.xlu0 %v1493
    %v1557 = vpop.xlane.xlu0 %1556
    %1558 = vadd.xlane.f32.xlu0 %v1495
    %v1559 = vpop.xlane.xlu0 %1558
    %1560 = vadd.xlane.f32.xlu0 %v1497
    %v1561 = vpop.xlane.xlu0 %1560
    %1562 = vadd.xlane.f32.xlu0 %v1499
    %v1563 = vpop.xlane.xlu0 %1562
    %1564 = vadd.xlane.f32.xlu0 %v1501
    %v1565 = vpop.xlane.xlu0 %1564
    %1566 = vadd.xlane.f32.xlu0 %v1503
    %v1567 = vpop.xlane.xlu0 %1566
    %1568 = vadd.xlane.f32.xlu0 %v1505
    %v1569 = vpop.xlane.xlu0 %1568
    %1570 = vadd.xlane.f32.xlu0 %v1507
    %v1571 = vpop.xlane.xlu0 %1570
    %1572 = vadd.xlane.f32.xlu0 %v1509
    %v1573 = vpop.xlane.xlu0 %1572
    %1574 = vadd.xlane.f32.xlu0 %v1511
    %v1575 = vpop.xlane.xlu0 %1574
    %1576 = vadd.xlane.f32.xlu0 %v1513
    %v1577 = vpop.xlane.xlu0 %1576
    %1578 = vadd.xlane.f32.xlu0 %v1515
    %v1579 = vpop.xlane.xlu0 %1578
    %1580 = vadd.xlane.f32.xlu0 %v1517
    %v1581 = vpop.xlane.xlu0 %1580
    %1582 = vadd.xlane.f32.xlu0 %v1519
    %v1583 = vpop.xlane.xlu0 %1582
    %1584 = vadd.xlane.f32.xlu0 %v1521
    %v1585 = vpop.xlane.xlu0 %1584
    %1586 = vadd.xlane.f32.xlu0 %v1523
    %v1587 = vpop.xlane.xlu0 %1586
    %1588 = vadd.xlane.f32.xlu0 %v1525
    %v1589 = vpop.xlane.xlu0 %1588
    %1590 = vadd.xlane.f32.xlu0 %v1527
    %v1591 = vpop.xlane.xlu0 %1590
    %1592 = vadd.xlane.f32.xlu0 %v1529
    %v1593 = vpop.xlane.xlu0 %1592
    %1594 = vadd.xlane.f32.xlu0 %v1531
    %v1595 = vpop.xlane.xlu0 %1594
    %1596 = vadd.xlane.f32.xlu0 %v1533
    %v1597 = vpop.xlane.xlu0 %1596
    %1598 = vadd.xlane.f32.xlu0 %v1535
    %v1599 = vpop.xlane.xlu0 %1598
    %1600 = vadd.xlane.f32.xlu0 %v1537
    %v1601 = vpop.xlane.xlu0 %1600
    %1602 = vadd.xlane.f32.xlu0 %v1539
    %v1603 = vpop.xlane.xlu0 %1602
    %1604 = vadd.xlane.f32.xlu0 %v1541
    %v1605 = vpop.xlane.xlu0 %1604
    %1606 = vadd.xlane.f32.xlu0 %v1543
    %v1607 = vpop.xlane.xlu0 %1606
    %1608 = vadd.xlane.f32.xlu0 %v1545
    %v1609 = vpop.xlane.xlu0 %1608
    %1610 = vadd.xlane.f32.xlu0 %v1547
    %v1611 = vpop.xlane.xlu0 %1610
    %1612 = vadd.xlane.f32.xlu0 %v1549
    %v1613 = vpop.xlane.xlu0 %1612
    %1614 = vadd.xlane.f32.xlu0 %v1551
    %v1615 = vpop.xlane.xlu0 %1614
    %v1616 = vrcp.pop %v1553
    %v1617 = vmul.f32 %v1489, %v1616
    %v1618 = vrcp.pop %v1555
    %v1619 = vmul.f32 %v1491, %v1618
    %v1620 = vrcp.pop %v1557
    %v1621 = vmul.f32 %v1493, %v1620
    %v1622 = vrcp.pop %v1559
    %v1623 = vmul.f32 %v1495, %v1622
    %v1624 = vrcp.pop %v1561
    %v1625 = vmul.f32 %v1497, %v1624
    %v1626 = vrcp.pop %v1563
    %v1627 = vmul.f32 %v1499, %v1626
    %v1628 = vrcp.pop %v1565
    %v1629 = vmul.f32 %v1501, %v1628
    %v1630 = vrcp.pop %v1567
    %v1631 = vmul.f32 %v1503, %v1630
    %v1632 = vrcp.pop %v1569
    %v1633 = vmul.f32 %v1505, %v1632
    %v1634 = vrcp.pop %v1571
    %v1635 = vmul.f32 %v1507, %v1634
    %v1636 = vrcp.pop %v1573
    %v1637 = vmul.f32 %v1509, %v1636
    %v1638 = vrcp.pop %v1575
    %v1639 = vmul.f32 %v1511, %v1638
    %v1640 = vrcp.pop %v1577
    %v1641 = vmul.f32 %v1513, %v1640
    %v1642 = vrcp.pop %v1579
    %v1643 = vmul.f32 %v1515, %v1642
    %v1644 = vrcp.pop %v1581
    %v1645 = vmul.f32 %v1517, %v1644
    %v1646 = vrcp.pop %v1583
    %v1647 = vmul.f32 %v1519, %v1646
    %v1648 = vrcp.pop %v1585
    %v1649 = vmul.f32 %v1521, %v1648
    %v1650 = vrcp.pop %v1587
    %v1651 = vmul.f32 %v1523, %v1650
    %v1652 = vrcp.pop %v1589
    %v1653 = vmul.f32 %v1525, %v1652
    %v1654 = vrcp.pop %v1591
    %v1655 = vmul.f32 %v1527, %v1654
    %v1656 = vrcp.pop %v1593
    %v1657 = vmul.f32 %v1529, %v1656
    %v1658 = vrcp.pop %v1595
    %v1659 = vmul.f32 %v1531, %v1658
    %v1660 = vrcp.pop %v1597
    %v1661 = vmul.f32 %v1533, %v1660
    %v1662 = vrcp.pop %v1599
    %v1663 = vmul.f32 %v1535, %v1662
    %v1664 = vrcp.pop %v1601
    %v1665 = vmul.f32 %v1537, %v1664
    %v1666 = vrcp.pop %v1603
    %v1667 = vmul.f32 %v1539, %v1666
    %v1668 = vrcp.pop %v1605
    %v1669 = vmul.f32 %v1541, %v1668
    %v1670 = vrcp.pop %v1607
    %v1671 = vmul.f32 %v1543, %v1670
    %v1672 = vrcp.pop %v1609
    %v1673 = vmul.f32 %v1545, %v1672
    %v1674 = vrcp.pop %v1611
    %v1675 = vmul.f32 %v1547, %v1674
    %v1676 = vrcp.pop %v1613
    %v1677 = vmul.f32 %v1549, %v1676
    %v1678 = vrcp.pop %v1615
    %v1679 = vmul.f32 %v1551, %v1678
    %1680 = vst [vmem:[#allocation7] sm:$0xff] %v1617
    %1681 = vst [vmem:[#allocation7 + $0x8] sm:$0xff] %v1619
    %1682 = vst [vmem:[#allocation7 + $0x10] sm:$0xff] %v1621
    %1683 = vst [vmem:[#allocation7 + $0x18] sm:$0xff] %v1623
    %1684 = vst [vmem:[#allocation7 + $0x20] sm:$0xff] %v1625
    %1685 = vst [vmem:[#allocation7 + $0x28] sm:$0xff] %v1627
    %1686 = vst [vmem:[#allocation7 + $0x30] sm:$0xff] %v1629
    %1687 = vst [vmem:[#allocation7 + $0x38] sm:$0xff] %v1631
    %1688 = vst [vmem:[#allocation7 + $0x40] sm:$0xff] %v1633
    %1689 = vst [vmem:[#allocation7 + $0x48] sm:$0xff] %v1635
    %1690 = vst [vmem:[#allocation7 + $0x50] sm:$0xff] %v1637
    %1691 = vst [vmem:[#allocation7 + $0x58] sm:$0xff] %v1639
    %1692 = vst [vmem:[#allocation7 + $0x60] sm:$0xff] %v1641
    %1693 = vst [vmem:[#allocation7 + $0x68] sm:$0xff] %v1643
    %1694 = vst [vmem:[#allocation7 + $0x70] sm:$0xff] %v1645
    %1695 = vst [vmem:[#allocation7 + $0x78] sm:$0xff] %v1647
    %1696 = vst [vmem:[#allocation7 + $0x80] sm:$0xff] %v1649
    %1697 = vst [vmem:[#allocation7 + $0x88] sm:$0xff] %v1651
    %1698 = vst [vmem:[#allocation7 + $0x90] sm:$0xff] %v1653
    %1699 = vst [vmem:[#allocation7 + $0x98] sm:$0xff] %v1655
    %1700 = vst [vmem:[#allocation7 + $0xa0] sm:$0xff] %v1657
    %1701 = vst [vmem:[#allocation7 + $0xa8] sm:$0xff] %v1659
    %1702 = vst [vmem:[#allocation7 + $0xb0] sm:$0xff] %v1661
    %1703 = vst [vmem:[#allocation7 + $0xb8] sm:$0xff] %v1663
    %1704 = vst [vmem:[#allocation7 + $0xc0] sm:$0xff] %v1665
    %1705 = vst [vmem:[#allocation7 + $0xc8] sm:$0xff] %v1667
    %1706 = vst [vmem:[#allocation7 + $0xd0] sm:$0xff] %v1669
    %1707 = vst [vmem:[#allocation7 + $0xd8] sm:$0xff] %v1671
    %1708 = vst [vmem:[#allocation7 + $0xe0] sm:$0xff] %v1673
    %1709 = vst [vmem:[#allocation7 + $0xe8] sm:$0xff] %v1675
    %1710 = vst [vmem:[#allocation7 + $0xf0] sm:$0xff] %v1677
    %1711 = vst [vmem:[#allocation7 + $0xf8] sm:$0xff] %v1679
    // Predicated region
    $region46: #{tpu_custom_call.1} parent=1 // pred_check
      _
    $region47: #{tpu_custom_call.1} parent=1 // pred_check_branch
      %1713 = sbr.rel (0) target = $region49
    $region48: #{tpu_custom_call.1} parent=1 // pred_region
      %s1715 = ssub.s32 4096, 4096
      %1716 = vsyncadd [#allocation4], %s1715
      %s1717 = sshll.u32 [#allocation7], 4
      %s1718 = int_to_ptr.vmem [resolvable:$true] %s1717
      %1723 = dma.vmem_to_hbm [thread:$0]  %s1718, 4096, %s9, [#allocation4], 128, 128, 8
    $region49: #{tpu_custom_call.1} parent=1 // pred_fallthru
      _
    // Predicated region
    $region50: #{tpu_custom_call.1} parent=1 // pred_check
      _
    $region51: #{tpu_custom_call.1} parent=1 // pred_check_branch
      %1725 = sbr.rel (0) target = $region53
    $region52: #{tpu_custom_call.1} parent=1 // pred_region
      %1726 = dma.done [#allocation4], 4096
    $region53: #{tpu_custom_call.1} parent=1 // pred_fallthru
      _
    %1727 = vsyncpa [#allocation3], 1
    %1728 = vsyncpa [#allocation6], 1
    %1729 = vsyncpa [#allocation4], 1

// kernel: tpu_custom_call.1
$region0: #{tpu_custom_call.1}
  #allocation0 [shape = 'u32[]', space=smem, size = 0x4, offset = 0x4, fixed_abs, tag = 'smem constant byte address 0x4 - core index']
  #allocation1 [shape = 'u32[144,128]{1,0:T(1,128)}', space=vmem, size = 0x12000, scoped, tag = 'internal scratch']
  %s0 = inlined_call_operand.vmem [shape: bf16[256,16], index: 0, kind: input, shape index: {}]
  %s1 = inlined_call_operand.vmem [shape: bf16[16,256], index: 1, kind: input, shape index: {}]
  %s2 = inlined_call_operand.vmem [shape: f32[1,256], index: 2, kind: input, shape index: {}]
  %s3 = inlined_call_operand.vmem [shape: bf16[256,128], index: 3, kind: input, shape index: {}]
  %s4 = inlined_call_operand.vmem [shape: f32[1,128], index: 4, kind: input, shape index: {}]
  %s5 = inlined_call_operand.hbm [shape: bf16[128,128], index: 5, kind: input, shape index: {}]
  %s6 = inlined_call_operand.vmem [shape: f32[1,128], index: 6, kind: input, shape index: {}]
  %s7 = inlined_call_operand.hbm [shape: bf16[128,128], index: 7, kind: input, shape index: {}]
  %s8 = inlined_call_operand.vmem [shape: f32[1,128], index: 8, kind: input, shape index: {}]
  %s9 = inlined_call_operand.hbm [shape: f32[256,128], index: 9, kind: output, shape index: {}]
  %s10 = sld [smem:[#allocation0]]
  $region54: #{tpu_custom_call.1} parent=0
    _
  %s12 = ssub.s32 1, %s10
  %s13 = scalar_select 0, %s12, %s10
  $region1: #{tpu_custom_call.1} parent=0
    #allocation2 [shape = 'u8[32768]{0}', space=vmem, size = 0x8000, scoped, tag = 'input window, operand 5, single buffered']
    #allocation3 [shape = 's32[1]{0}', space=sflag, size = 0x4, scoped, tag = 'scoped memory for tpu_custom_call.1']
    #allocation4 [shape = 's32[1]{0}', space=sflag, size = 0x4, scoped, tag = 'scoped memory for tpu_custom_call.1']
    #allocation5 [shape = 'u8[32768]{0}', space=vmem, size = 0x8000, scoped, tag = 'input window, operand 7, single buffered']
    #allocation6 [shape = 's32[1]{0}', space=sflag, size = 0x4, scoped, tag = 'scoped memory for tpu_custom_call.1']
    #allocation7 [shape = 'u8[131072]{0}', space=vmem, size = 0x20000, scoped, tag = 'output window, operand 0, single buffered']
    %14 = vsyncpa [#allocation3], 0
    %15 = vsyncpa [#allocation6], 0
    %16 = vsyncpa [#allocation4], 0
    // Predicated region
    $region2: #{tpu_custom_call.1} parent=1 // pred_check
      _
    $region3: #{tpu_custom_call.1} parent=1 // pred_check_branch
      %18 = sbr.rel (0) target = $region5
    $region4: #{tpu_custom_call.1} parent=1 // pred_region
      _
    $region5: #{tpu_custom_call.1} parent=1 // pred_fallthru
      _
    // Predicated region
    $region6: #{tpu_custom_call.1} parent=1 // pred_check
      _
    $region7: #{tpu_custom_call.1} parent=1 // pred_check_branch
      %20 = sbr.rel (0) target = $region9
    $region8: #{tpu_custom_call.1} parent=1 // pred_region
      _
    $region9: #{tpu_custom_call.1} parent=1 // pred_fallthru
      _
    // Predicated region
    $region10: #{tpu_custom_call.1} parent=1 // pred_check
      _
    $region11: #{tpu_custom_call.1} parent=1 // pred_check_branch
      %22 = sbr.rel (0) target = $region13
    $region12: #{tpu_custom_call.1} parent=1 // pred_region
      _
    $region13: #{tpu_custom_call.1} parent=1 // pred_fallthru
      _
    // Predicated region
    $region14: #{tpu_custom_call.1} parent=1 // pred_check
      _
    $region15: #{tpu_custom_call.1} parent=1 // pred_check_branch
      %24 = sbr.rel (0) target = $region17
    $region16: #{tpu_custom_call.1} parent=1 // pred_region
      _
    $region17: #{tpu_custom_call.1} parent=1 // pred_fallthru
      _
    // Predicated region
    $region18: #{tpu_custom_call.1} parent=1 // pred_check
      _
    $region19: #{tpu_custom_call.1} parent=1 // pred_check_branch
      %26 = sbr.rel (0) target = $region21
    $region20: #{tpu_custom_call.1} parent=1 // pred_region
      _
    $region21: #{tpu_custom_call.1} parent=1 // pred_fallthru
      _
    // Predicated region
    $region22: #{tpu_custom_call.1} parent=1 // pred_check
      _
    $region23: #{tpu_custom_call.1} parent=1 // pred_check_branch
      %28 = sbr.rel (0) target = $region25
    $region24: #{tpu_custom_call.1} parent=1 // pred_region
      %s30 = ssub.s32 1024, 1024
      %31 = vsyncadd [#allocation3], %s30
      %s32 = sshll.u32 [#allocation2], 4
      %s33 = int_to_ptr.vmem [resolvable:$true] %s32
      %38 = dma.hbm_to_vmem [thread:$0]  %s5, 1024, %s33, [#allocation3], 64, 64, 4
    $region25: #{tpu_custom_call.1} parent=1 // pred_fallthru
      _
    // Predicated region
    $region26: #{tpu_custom_call.1} parent=1 // pred_check
      _
    $region27: #{tpu_custom_call.1} parent=1 // pred_check_branch
      %40 = sbr.rel (0) target = $region29
    $region28: #{tpu_custom_call.1} parent=1 // pred_region
      _
    $region29: #{tpu_custom_call.1} parent=1 // pred_fallthru
      _
    // Predicated region
    $region30: #{tpu_custom_call.1} parent=1 // pred_check
      _
    $region31: #{tpu_custom_call.1} parent=1 // pred_check_branch
      %42 = sbr.rel (0) target = $region33
    $region32: #{tpu_custom_call.1} parent=1 // pred_region
      %s44 = ssub.s32 1024, 1024
      %45 = vsyncadd [#allocation6], %s44
      %s46 = sshll.u32 [#allocation5], 4
      %s47 = int_to_ptr.vmem [resolvable:$true] %s46
      %52 = dma.hbm_to_vmem [thread:$0]  %s7, 1024, %s47, [#allocation6], 64, 64, 4
    $region33: #{tpu_custom_call.1} parent=1 // pred_fallthru
      _
    // Predicated region
    $region34: #{tpu_custom_call.1} parent=1 // pred_check
      _
    $region35: #{tpu_custom_call.1} parent=1 // pred_check_branch
      %54 = sbr.rel (0) target = $region37
    $region36: #{tpu_custom_call.1} parent=1 // pred_region
      _
    $region37: #{tpu_custom_call.1} parent=1 // pred_fallthru
      _
    // Predicated region
    $region38: #{tpu_custom_call.1} parent=1 // pred_check
      _
    $region39: #{tpu_custom_call.1} parent=1 // pred_check_branch
      %56 = sbr.rel (0) target = $region41
    $region40: #{tpu_custom_call.1} parent=1 // pred_region
      %57 = dma.done [#allocation3], 1024
    $region41: #{tpu_custom_call.1} parent=1 // pred_fallthru
      _
    // Predicated region
    $region42: #{tpu_custom_call.1} parent=1 // pred_check
      _
    $region43: #{tpu_custom_call.1} parent=1 // pred_check_branch
      %59 = sbr.rel (0) target = $region45
    $region44: #{tpu_custom_call.1} parent=1 // pred_region
      %60 = dma.done [#allocation6], 1024
    $region45: #{tpu_custom_call.1} parent=1 // pred_fallthru
      _
    %v62 = vld [vmem:[%s0] sm:$0xf]
    %v63 = vld [vmem:[%s0 + $0x4] sm:$0xf]
    %v64 = vld [vmem:[%s0 + $0x8] sm:$0xf]
    %v65 = vld [vmem:[%s0 + $0xc] sm:$0xf]
    %v66 = vld [vmem:[%s0 + $0x10] sm:$0xf]
    %v67 = vld [vmem:[%s0 + $0x14] sm:$0xf]
    %v68 = vld [vmem:[%s0 + $0x18] sm:$0xf]
    %v69 = vld [vmem:[%s0 + $0x1c] sm:$0xf]
    %v70 = vld [vmem:[%s0 + $0x20] sm:$0xf]
    %v71 = vld [vmem:[%s0 + $0x24] sm:$0xf]
    %v72 = vld [vmem:[%s0 + $0x28] sm:$0xf]
    %v73 = vld [vmem:[%s0 + $0x2c] sm:$0xf]
    %v74 = vld [vmem:[%s0 + $0x30] sm:$0xf]
    %v75 = vld [vmem:[%s0 + $0x34] sm:$0xf]
    %v76 = vld [vmem:[%s0 + $0x38] sm:$0xf]
    %v77 = vld [vmem:[%s0 + $0x3c] sm:$0xf]
    %v78 = vld [vmem:[%s0 + $0x40] sm:$0xf]
    %v79 = vld [vmem:[%s0 + $0x44] sm:$0xf]
    %v80 = vld [vmem:[%s0 + $0x48] sm:$0xf]
    %v81 = vld [vmem:[%s0 + $0x4c] sm:$0xf]
    %v82 = vld [vmem:[%s0 + $0x50] sm:$0xf]
    %v83 = vld [vmem:[%s0 + $0x54] sm:$0xf]
    %v84 = vld [vmem:[%s0 + $0x58] sm:$0xf]
    %v85 = vld [vmem:[%s0 + $0x5c] sm:$0xf]
    %v86 = vld [vmem:[%s0 + $0x60] sm:$0xf]
    %v87 = vld [vmem:[%s0 + $0x64] sm:$0xf]
    %v88 = vld [vmem:[%s0 + $0x68] sm:$0xf]
    %v89 = vld [vmem:[%s0 + $0x6c] sm:$0xf]
    %v90 = vld [vmem:[%s0 + $0x70] sm:$0xf]
    %v91 = vld [vmem:[%s0 + $0x74] sm:$0xf]
    %v92 = vld [vmem:[%s0 + $0x78] sm:$0xf]
    %v93 = vld [vmem:[%s0 + $0x7c] sm:$0xf]
    %v94 = vld [vmem:[%s1] sm:$0xff]
    %v95 = vld [vmem:[%s1 + $0x8] sm:$0xff]
    %v96 = vld [vmem:[%s2] sm:$0x3]
    %v98 = vlaneseq
    %v99 = vshrl.u32 %v98, 7
    %v100 = vsub.s32 0, %v99
    %v101 = vrot.slane %v96, %v100
    %v102 = vlaneseq
    %v103 = vshrl.u32 %v102, 7
    %v104 = vsub.s32 1, %v103
    %v105 = vrot.slane %v96, %v104
    %v140 = vunpack.c.l.b16 %v62
    %v141 = vunpack.c.l.b16 %v63
    %v142 = vunpack.c.l.b16 %v64
    %v143 = vunpack.c.l.b16 %v65
    %v144 = vunpack.c.l.b16 %v66
    %v145 = vunpack.c.l.b16 %v67
    %v146 = vunpack.c.l.b16 %v68
    %v147 = vunpack.c.l.b16 %v69
    %v148 = vunpack.c.l.b16 %v70
    %v149 = vunpack.c.l.b16 %v71
    %v150 = vunpack.c.l.b16 %v72
    %v151 = vunpack.c.l.b16 %v73
    %v152 = vunpack.c.l.b16 %v74
    %v153 = vunpack.c.l.b16 %v75
    %v154 = vunpack.c.l.b16 %v76
    %v155 = vunpack.c.l.b16 %v77
    %v156 = vunpack.c.l.b16 %v78
    %v157 = vunpack.c.l.b16 %v79
    %v158 = vunpack.c.l.b16 %v80
    %v159 = vunpack.c.l.b16 %v81
    %v160 = vunpack.c.l.b16 %v82
    %v161 = vunpack.c.l.b16 %v83
    %v162 = vunpack.c.l.b16 %v84
    %v163 = vunpack.c.l.b16 %v85
    %v164 = vunpack.c.l.b16 %v86
    %v165 = vunpack.c.l.b16 %v87
    %v166 = vunpack.c.l.b16 %v88
    %v167 = vunpack.c.l.b16 %v89
    %v168 = vunpack.c.l.b16 %v90
    %v169 = vunpack.c.l.b16 %v91
    %v170 = vunpack.c.l.b16 %v92
    %v171 = vunpack.c.l.b16 %v93
    %v172 = vpack.c.b16 %v141, %v140
    %v173 = vpack.c.b16 %v143, %v142
    %v174 = vpack.c.b16 %v145, %v144
    %v175 = vpack.c.b16 %v147, %v146
    %v176 = vpack.c.b16 %v149, %v148
    %v177 = vpack.c.b16 %v151, %v150
    %v178 = vpack.c.b16 %v153, %v152
    %v179 = vpack.c.b16 %v155, %v154
    %v180 = vpack.c.b16 %v157, %v156
    %v181 = vpack.c.b16 %v159, %v158
    %v182 = vpack.c.b16 %v161, %v160
    %v183 = vpack.c.b16 %v163, %v162
    %v184 = vpack.c.b16 %v165, %v164
    %v185 = vpack.c.b16 %v167, %v166
    %v186 = vpack.c.b16 %v169, %v168
    %v187 = vpack.c.b16 %v171, %v170
    %v190 = vunpack.c.l.b16 %v94
    %v191 = vunpack.c.h.b16 %v94
    %v192 = vunpack.c.l.b16 %v95
    %v193 = vunpack.c.h.b16 %v95
    %v194 = vpack.c.b16 %v192, %v190
    %v195 = vpack.c.b16 %v193, %v191
    %vm198 = vcmask 130048
    %v200 = vsel %vm198, %v172, 0
    %v203 = vsel %vm198, %v173, 0
    %v206 = vsel %vm198, %v174, 0
    %v209 = vsel %vm198, %v175, 0
    %v212 = vsel %vm198, %v176, 0
    %v215 = vsel %vm198, %v177, 0
    %v218 = vsel %vm198, %v178, 0
    %v221 = vsel %vm198, %v179, 0
    %v224 = vsel %vm198, %v180, 0
    %v227 = vsel %vm198, %v181, 0
    %v230 = vsel %vm198, %v182, 0
    %v233 = vsel %vm198, %v183, 0
    %v236 = vsel %vm198, %v184, 0
    %v239 = vsel %vm198, %v185, 0
    %v242 = vsel %vm198, %v186, 0
    %v245 = vsel %vm198, %v187, 0
    %247 = vmatprep.subr.bf16.mxu0 %v195
    %248 = vmatpush1.bf16.msra.mxu0 %v194
    %249 = vmatprep.subr.bf16.mxu0 0
    %250 = vmatpush1.bf16.msra.mxu0 0
    %251 = vmatprep.subr.bf16.mxu0 0
    %252 = vmatpush1.bf16.msra.mxu0 0
    %253 = vmatprep.subr.bf16.mxu0 0
    %254 = vmatpush1.bf16.msra.mxu0 0
    %255 = vmatprep.subr.bf16.mxu0 0
    %256 = vmatpush1.bf16.msra.mxu0 0
    %257 = vmatprep.subr.bf16.mxu0 0
    %258 = vmatpush1.bf16.msra.mxu0 0
    %259 = vmatprep.subr.bf16.mxu0 0
    %260 = vmatpush1.bf16.msra.mxu0 0
    %261 = vmatprep.subr.bf16.mxu0 0
    %262 = vmatpush1.bf16.msra.mxu0 0
    %263 = vmatprep.subr.bf16.mxu0 0
    %264 = vmatpush1.bf16.msra.mxu0 0
    %265 = vmatprep.subr.bf16.mxu0 0
    %266 = vmatpush1.bf16.msra.mxu0 0
    %267 = vmatprep.subr.bf16.mxu0 0
    %268 = vmatpush1.bf16.msra.mxu0 0
    %269 = vmatprep.subr.bf16.mxu0 0
    %270 = vmatpush1.bf16.msra.mxu0 0
    %271 = vmatprep.subr.bf16.mxu0 0
    %272 = vmatpush1.bf16.msra.mxu0 0
    %273 = vmatprep.subr.bf16.mxu0 0
    %274 = vmatpush1.bf16.msra.mxu0 0
    %275 = vmatprep.subr.bf16.mxu0 0
    %276 = vmatpush1.bf16.msra.mxu0 0
    %277 = vmatprep.subr.bf16.mxu0 0
    %278 = vmatpush1.bf16.msra.mxu0 0
    %279 = vmatprep.mubr.bf16.mxu0 0
    %280 = vmatmul.mubr.bf16.gmra.mrb[0].mxu0 %v200
    %v281 = vpop.f32.mrb[0].mxu0
    %v282 = vadd.f32 %v101, %v281
    %v283 = vpop.f32.mrb[0].mxu0
    %v284 = vadd.f32 %v105, %v283
    %v285 = vpop.f32.mrb[0].mxu0
    %v286 = vadd.f32 %v101, %v285
    %v287 = vpop.f32.mrb[0].mxu0
    %v288 = vadd.f32 %v105, %v287
    %289 = vmatprep.mubr.bf16.mxu0 0
    %290 = vmatmul.mubr.bf16.gmra.mrb[0].mxu0 %v203
    %v291 = vpop.f32.mrb[0].mxu0
    %v292 = vadd.f32 %v101, %v291
    %v293 = vpop.f32.mrb[0].mxu0
    %v294 = vadd.f32 %v105, %v293
    %v295 = vpop.f32.mrb[0].mxu0
    %v296 = vadd.f32 %v101, %v295
    %v297 = vpop.f32.mrb[0].mxu0
    %v298 = vadd.f32 %v105, %v297
    %299 = vmatprep.mubr.bf16.mxu0 0
    %300 = vmatmul.mubr.bf16.gmra.mrb[0].mxu0 %v206
    %v301 = vpop.f32.mrb[0].mxu0
    %v302 = vadd.f32 %v101, %v301
    %v303 = vpop.f32.mrb[0].mxu0
    %v304 = vadd.f32 %v105, %v303
    %v305 = vpop.f32.mrb[0].mxu0
    %v306 = vadd.f32 %v101, %v305
    %v307 = vpop.f32.mrb[0].mxu0
    %v308 = vadd.f32 %v105, %v307
    %309 = vmatprep.mubr.bf16.mxu0 0
    %310 = vmatmul.mubr.bf16.gmra.mrb[0].mxu0 %v209
    %v311 = vpop.f32.mrb[0].mxu0
    %v312 = vadd.f32 %v101, %v311
    %v313 = vpop.f32.mrb[0].mxu0
    %v314 = vadd.f32 %v105, %v313
    %v315 = vpop.f32.mrb[0].mxu0
    %v316 = vadd.f32 %v101, %v315
    %v317 = vpop.f32.mrb[0].mxu0
    %v318 = vadd.f32 %v105, %v317
    %319 = vmatprep.mubr.bf16.mxu0 0
    %320 = vmatmul.mubr.bf16.gmra.mrb[0].mxu0 %v212
    %v321 = vpop.f32.mrb[0].mxu0
    %v322 = vadd.f32 %v101, %v321
    %v323 = vpop.f32.mrb[0].mxu0
    %v324 = vadd.f32 %v105, %v323
    %v325 = vpop.f32.mrb[0].mxu0
    %v326 = vadd.f32 %v101, %v325
    %v327 = vpop.f32.mrb[0].mxu0
    %v328 = vadd.f32 %v105, %v327
    %329 = vmatprep.mubr.bf16.mxu0 0
    %330 = vmatmul.mubr.bf16.gmra.mrb[0].mxu0 %v215
    %v331 = vpop.f32.mrb[0].mxu0
    %v332 = vadd.f32 %v101, %v331
    %v333 = vpop.f32.mrb[0].mxu0
    %v334 = vadd.f32 %v105, %v333
    %v335 = vpop.f32.mrb[0].mxu0
    %v336 = vadd.f32 %v101, %v335
    %v337 = vpop.f32.mrb[0].mxu0
    %v338 = vadd.f32 %v105, %v337
    %339 = vmatprep.mubr.bf16.mxu0 0
    %340 = vmatmul.mubr.bf16.gmra.mrb[0].mxu0 %v218
    %v341 = vpop.f32.mrb[0].mxu0
    %v342 = vadd.f32 %v101, %v341
    %v343 = vpop.f32.mrb[0].mxu0
    %v344 = vadd.f32 %v105, %v343
    %v345 = vpop.f32.mrb[0].mxu0
    %v346 = vadd.f32 %v101, %v345
    %v347 = vpop.f32.mrb[0].mxu0
    %v348 = vadd.f32 %v105, %v347
    %349 = vmatprep.mubr.bf16.mxu0 0
    %350 = vmatmul.mubr.bf16.gmra.mrb[0].mxu0 %v221
    %v351 = vpop.f32.mrb[0].mxu0
    %v352 = vadd.f32 %v101, %v351
    %v353 = vpop.f32.mrb[0].mxu0
    %v354 = vadd.f32 %v105, %v353
    %v355 = vpop.f32.mrb[0].mxu0
    %v356 = vadd.f32 %v101, %v355
    %v357 = vpop.f32.mrb[0].mxu0
    %v358 = vadd.f32 %v105, %v357
    %359 = vmatprep.mubr.bf16.mxu0 0
    %360 = vmatmul.mubr.bf16.gmra.mrb[0].mxu0 %v224
    %v361 = vpop.f32.mrb[0].mxu0
    %v362 = vadd.f32 %v101, %v361
    %v363 = vpop.f32.mrb[0].mxu0
    %v364 = vadd.f32 %v105, %v363
    %v365 = vpop.f32.mrb[0].mxu0
    %v366 = vadd.f32 %v101, %v365
    %v367 = vpop.f32.mrb[0].mxu0
    %v368 = vadd.f32 %v105, %v367
    %369 = vmatprep.mubr.bf16.mxu0 0
    %370 = vmatmul.mubr.bf16.gmra.mrb[0].mxu0 %v227
    %v371 = vpop.f32.mrb[0].mxu0
    %v372 = vadd.f32 %v101, %v371
    %v373 = vpop.f32.mrb[0].mxu0
    %v374 = vadd.f32 %v105, %v373
    %v375 = vpop.f32.mrb[0].mxu0
    %v376 = vadd.f32 %v101, %v375
    %v377 = vpop.f32.mrb[0].mxu0
    %v378 = vadd.f32 %v105, %v377
    %379 = vmatprep.mubr.bf16.mxu0 0
    %380 = vmatmul.mubr.bf16.gmra.mrb[0].mxu0 %v230
    %v381 = vpop.f32.mrb[0].mxu0
    %v382 = vadd.f32 %v101, %v381
    %v383 = vpop.f32.mrb[0].mxu0
    %v384 = vadd.f32 %v105, %v383
    %v385 = vpop.f32.mrb[0].mxu0
    %v386 = vadd.f32 %v101, %v385
    %v387 = vpop.f32.mrb[0].mxu0
    %v388 = vadd.f32 %v105, %v387
    %389 = vmatprep.mubr.bf16.mxu0 0
    %390 = vmatmul.mubr.bf16.gmra.mrb[0].mxu0 %v233
    %v391 = vpop.f32.mrb[0].mxu0
    %v392 = vadd.f32 %v101, %v391
    %v393 = vpop.f32.mrb[0].mxu0
    %v394 = vadd.f32 %v105, %v393
    %v395 = vpop.f32.mrb[0].mxu0
    %v396 = vadd.f32 %v101, %v395
    %v397 = vpop.f32.mrb[0].mxu0
    %v398 = vadd.f32 %v105, %v397
    %399 = vmatprep.mubr.bf16.mxu0 0
    %400 = vmatmul.mubr.bf16.gmra.mrb[0].mxu0 %v236
    %v401 = vpop.f32.mrb[0].mxu0
    %v402 = vadd.f32 %v101, %v401
    %v403 = vpop.f32.mrb[0].mxu0
    %v404 = vadd.f32 %v105, %v403
    %v405 = vpop.f32.mrb[0].mxu0
    %v406 = vadd.f32 %v101, %v405
    %v407 = vpop.f32.mrb[0].mxu0
    %v408 = vadd.f32 %v105, %v407
    %409 = vmatprep.mubr.bf16.mxu0 0
    %410 = vmatmul.mubr.bf16.gmra.mrb[0].mxu0 %v239
    %v411 = vpop.f32.mrb[0].mxu0
    %v412 = vadd.f32 %v101, %v411
    %v413 = vpop.f32.mrb[0].mxu0
    %v414 = vadd.f32 %v105, %v413
    %v415 = vpop.f32.mrb[0].mxu0
    %v416 = vadd.f32 %v101, %v415
    %v417 = vpop.f32.mrb[0].mxu0
    %v418 = vadd.f32 %v105, %v417
    %419 = vmatprep.mubr.bf16.mxu0 0
    %420 = vmatmul.mubr.bf16.gmra.mrb[0].mxu0 %v242
    %v421 = vpop.f32.mrb[0].mxu0
    %v422 = vadd.f32 %v101, %v421
    %v423 = vpop.f32.mrb[0].mxu0
    %v424 = vadd.f32 %v105, %v423
    %v425 = vpop.f32.mrb[0].mxu0
    %v426 = vadd.f32 %v101, %v425
    %v427 = vpop.f32.mrb[0].mxu0
    %v428 = vadd.f32 %v105, %v427
    %429 = vmatprep.mubr.bf16.mxu0 0
    %430 = vmatmul.mubr.bf16.gmra.mrb[0].mxu0 %v245
    %v431 = vpop.f32.mrb[0].mxu0
    %v432 = vadd.f32 %v101, %v431
    %v433 = vpop.f32.mrb[0].mxu0
    %v434 = vadd.f32 %v105, %v433
    %v435 = vpop.f32.mrb[0].mxu0
    %v436 = vadd.f32 %v101, %v435
    %v437 = vpop.f32.mrb[0].mxu0
    %v438 = vadd.f32 %v105, %v437
    %439 = vdwg.mxu0
    %v440 = vmax.f32 %v282, 0.0
    %v441 = vmax.f32 %v284, 0.0
    %v442 = vmax.f32 %v286, 0.0
    %v443 = vmax.f32 %v288, 0.0
    %v444 = vmax.f32 %v292, 0.0
    %v445 = vmax.f32 %v294, 0.0
    %v446 = vmax.f32 %v296, 0.0
    %v447 = vmax.f32 %v298, 0.0
    %v448 = vmax.f32 %v302, 0.0
    %v449 = vmax.f32 %v304, 0.0
    %v450 = vmax.f32 %v306, 0.0
    %v451 = vmax.f32 %v308, 0.0
    %v452 = vmax.f32 %v312, 0.0
    %v453 = vmax.f32 %v314, 0.0
    %v454 = vmax.f32 %v316, 0.0
    %v455 = vmax.f32 %v318, 0.0
    %v456 = vmax.f32 %v322, 0.0
    %v457 = vmax.f32 %v324, 0.0
    %v458 = vmax.f32 %v326, 0.0
    %v459 = vmax.f32 %v328, 0.0
    %v460 = vmax.f32 %v332, 0.0
    %v461 = vmax.f32 %v334, 0.0
    %v462 = vmax.f32 %v336, 0.0
    %v463 = vmax.f32 %v338, 0.0
    %v464 = vmax.f32 %v342, 0.0
    %v465 = vmax.f32 %v344, 0.0
    %v466 = vmax.f32 %v346, 0.0
    %v467 = vmax.f32 %v348, 0.0
    %v468 = vmax.f32 %v352, 0.0
    %v469 = vmax.f32 %v354, 0.0
    %v470 = vmax.f32 %v356, 0.0
    %v471 = vmax.f32 %v358, 0.0
    %v472 = vmax.f32 %v362, 0.0
    %v473 = vmax.f32 %v364, 0.0
    %v474 = vmax.f32 %v366, 0.0
    %v475 = vmax.f32 %v368, 0.0
    %v476 = vmax.f32 %v372, 0.0
    %v477 = vmax.f32 %v374, 0.0
    %v478 = vmax.f32 %v376, 0.0
    %v479 = vmax.f32 %v378, 0.0
    %v480 = vmax.f32 %v382, 0.0
    %v481 = vmax.f32 %v384, 0.0
    %v482 = vmax.f32 %v386, 0.0
    %v483 = vmax.f32 %v388, 0.0
    %v484 = vmax.f32 %v392, 0.0
    %v485 = vmax.f32 %v394, 0.0
    %v486 = vmax.f32 %v396, 0.0
    %v487 = vmax.f32 %v398, 0.0
    %v488 = vmax.f32 %v402, 0.0
    %v489 = vmax.f32 %v404, 0.0
    %v490 = vmax.f32 %v406, 0.0
    %v491 = vmax.f32 %v408, 0.0
    %v492 = vmax.f32 %v412, 0.0
    %v493 = vmax.f32 %v414, 0.0
    %v494 = vmax.f32 %v416, 0.0
    %v495 = vmax.f32 %v418, 0.0
    %v496 = vmax.f32 %v422, 0.0
    %v497 = vmax.f32 %v424, 0.0
    %v498 = vmax.f32 %v426, 0.0
    %v499 = vmax.f32 %v428, 0.0
    %v500 = vmax.f32 %v432, 0.0
    %v501 = vmax.f32 %v434, 0.0
    %v502 = vmax.f32 %v436, 0.0
    %v503 = vmax.f32 %v438, 0.0
    %v504 = vpack.c.bf16 %v442, %v440
    %v505 = vpack.c.bf16 %v443, %v441
    %v506 = vpack.c.bf16 %v446, %v444
    %v507 = vpack.c.bf16 %v447, %v445
    %v508 = vpack.c.bf16 %v450, %v448
    %v509 = vpack.c.bf16 %v451, %v449
    %v510 = vpack.c.bf16 %v454, %v452
    %v511 = vpack.c.bf16 %v455, %v453
    %v512 = vpack.c.bf16 %v458, %v456
    %v513 = vpack.c.bf16 %v459, %v457
    %v514 = vpack.c.bf16 %v462, %v460
    %v515 = vpack.c.bf16 %v463, %v461
    %v516 = vpack.c.bf16 %v466, %v464
    %v517 = vpack.c.bf16 %v467, %v465
    %v518 = vpack.c.bf16 %v470, %v468
    %v519 = vpack.c.bf16 %v471, %v469
    %v520 = vpack.c.bf16 %v474, %v472
    %v521 = vpack.c.bf16 %v475, %v473
    %v522 = vpack.c.bf16 %v478, %v476
    %v523 = vpack.c.bf16 %v479, %v477
    %v524 = vpack.c.bf16 %v482, %v480
    %v525 = vpack.c.bf16 %v483, %v481
    %v526 = vpack.c.bf16 %v486, %v484
    %v527 = vpack.c.bf16 %v487, %v485
    %v528 = vpack.c.bf16 %v490, %v488
    %v529 = vpack.c.bf16 %v491, %v489
    %v530 = vpack.c.bf16 %v494, %v492
    %v531 = vpack.c.bf16 %v495, %v493
    %v532 = vpack.c.bf16 %v498, %v496
    %v533 = vpack.c.bf16 %v499, %v497
    %v534 = vpack.c.bf16 %v502, %v500
    %v535 = vpack.c.bf16 %v503, %v501
    %v536 = vld [vmem:[%s3] sm:$0xf]
    %v537 = vld [vmem:[%s3 + $0x4] sm:$0xf]
    %v538 = vld [vmem:[%s3 + $0x8] sm:$0xf]
    %v539 = vld [vmem:[%s3 + $0xc] sm:$0xf]
    %v540 = vld [vmem:[%s3 + $0x10] sm:$0xf]
    %v541 = vld [vmem:[%s3 + $0x14] sm:$0xf]
    %v542 = vld [vmem:[%s3 + $0x18] sm:$0xf]
    %v543 = vld [vmem:[%s3 + $0x1c] sm:$0xf]
    %v544 = vld [vmem:[%s3 + $0x20] sm:$0xf]
    %v545 = vld [vmem:[%s3 + $0x24] sm:$0xf]
    %v546 = vld [vmem:[%s3 + $0x28] sm:$0xf]
    %v547 = vld [vmem:[%s3 + $0x2c] sm:$0xf]
    %v548 = vld [vmem:[%s3 + $0x30] sm:$0xf]
    %v549 = vld [vmem:[%s3 + $0x34] sm:$0xf]
    %v550 = vld [vmem:[%s3 + $0x38] sm:$0xf]
    %v551 = vld [vmem:[%s3 + $0x3c] sm:$0xf]
    %v552 = vld [vmem:[%s3 + $0x40] sm:$0xf]
    %v553 = vld [vmem:[%s3 + $0x44] sm:$0xf]
    %v554 = vld [vmem:[%s3 + $0x48] sm:$0xf]
    %v555 = vld [vmem:[%s3 + $0x4c] sm:$0xf]
    %v556 = vld [vmem:[%s3 + $0x50] sm:$0xf]
    %v557 = vld [vmem:[%s3 + $0x54] sm:$0xf]
    %v558 = vld [vmem:[%s3 + $0x58] sm:$0xf]
    %v559 = vld [vmem:[%s3 + $0x5c] sm:$0xf]
    %v560 = vld [vmem:[%s3 + $0x60] sm:$0xf]
    %v561 = vld [vmem:[%s3 + $0x64] sm:$0xf]
    %v562 = vld [vmem:[%s3 + $0x68] sm:$0xf]
    %v563 = vld [vmem:[%s3 + $0x6c] sm:$0xf]
    %v564 = vld [vmem:[%s3 + $0x70] sm:$0xf]
    %v565 = vld [vmem:[%s3 + $0x74] sm:$0xf]
    %v566 = vld [vmem:[%s3 + $0x78] sm:$0xf]
    %v567 = vld [vmem:[%s3 + $0x7c] sm:$0xf]
    %v568 = vld [vmem:[%s4] sm:$0x1]
    %v570 = vlaneseq
    %v571 = vshrl.u32 %v570, 7
    %v572 = vsub.s32 0, %v571
    %v573 = vrot.slane %v568, %v572
    %v607 = vunpack.c.l.b16 %v536
    %v608 = vunpack.c.l.b16 %v537
    %v609 = vunpack.c.l.b16 %v538
    %v610 = vunpack.c.l.b16 %v539
    %v611 = vunpack.c.l.b16 %v540
    %v612 = vunpack.c.l.b16 %v541
    %v613 = vunpack.c.l.b16 %v542
    %v614 = vunpack.c.l.b16 %v543
    %v615 = vunpack.c.l.b16 %v544
    %v616 = vunpack.c.l.b16 %v545
    %v617 = vunpack.c.l.b16 %v546
    %v618 = vunpack.c.l.b16 %v547
    %v619 = vunpack.c.l.b16 %v548
    %v620 = vunpack.c.l.b16 %v549
    %v621 = vunpack.c.l.b16 %v550
    %v622 = vunpack.c.l.b16 %v551
    %v623 = vunpack.c.l.b16 %v552
    %v624 = vunpack.c.l.b16 %v553
    %v625 = vunpack.c.l.b16 %v554
    %v626 = vunpack.c.l.b16 %v555
    %v627 = vunpack.c.l.b16 %v556
    %v628 = vunpack.c.l.b16 %v557
    %v629 = vunpack.c.l.b16 %v558
    %v630 = vunpack.c.l.b16 %v559
    %v631 = vunpack.c.l.b16 %v560
    %v632 = vunpack.c.l.b16 %v561
    %v633 = vunpack.c.l.b16 %v562
    %v634 = vunpack.c.l.b16 %v563
    %v635 = vunpack.c.l.b16 %v564
    %v636 = vunpack.c.l.b16 %v565
    %v637 = vunpack.c.l.b16 %v566
    %v638 = vunpack.c.l.b16 %v567
    %v639 = vpack.c.b16 %v608, %v607
    %v640 = vpack.c.b16 %v610, %v609
    %v641 = vpack.c.b16 %v612, %v611
    %v642 = vpack.c.b16 %v614, %v613
    %v643 = vpack.c.b16 %v616, %v615
    %v644 = vpack.c.b16 %v618, %v617
    %v645 = vpack.c.b16 %v620, %v619
    %v646 = vpack.c.b16 %v622, %v621
    %v647 = vpack.c.b16 %v624, %v623
    %v648 = vpack.c.b16 %v626, %v625
    %v649 = vpack.c.b16 %v628, %v627
    %v650 = vpack.c.b16 %v630, %v629
    %v651 = vpack.c.b16 %v632, %v631
    %v652 = vpack.c.b16 %v634, %v633
    %v653 = vpack.c.b16 %v636, %v635
    %v654 = vpack.c.b16 %v638, %v637
    %671 = vmatprep.subr.bf16.mxu0 0
    %672 = vmatpush1.bf16.msra.mxu0 %v639
    %673 = vmatprep.subr.bf16.mxu0 0
    %674 = vmatpush1.bf16.msra.mxu0 %v640
    %675 = vmatprep.subr.bf16.mxu0 0
    %676 = vmatpush1.bf16.msra.mxu0 %v641
    %677 = vmatprep.subr.bf16.mxu0 0
    %678 = vmatpush1.bf16.msra.mxu0 %v642
    %679 = vmatprep.subr.bf16.mxu0 0
    %680 = vmatpush1.bf16.msra.mxu0 %v643
    %681 = vmatprep.subr.bf16.mxu0 0
    %682 = vmatpush1.bf16.msra.mxu0 %v644
    %683 = vmatprep.subr.bf16.mxu0 0
    %684 = vmatpush1.bf16.msra.mxu0 %v645
    %685 = vmatprep.subr.bf16.mxu0 0
    %686 = vmatpush1.bf16.msra.mxu0 %v646
    %687 = vmatprep.subr.bf16.mxu0 0
    %688 = vmatpush1.bf16.msra.mxu0 %v647
    %689 = vmatprep.subr.bf16.mxu0 0
    %690 = vmatpush1.bf16.msra.mxu0 %v648
    %691 = vmatprep.subr.bf16.mxu0 0
    %692 = vmatpush1.bf16.msra.mxu0 %v649
    %693 = vmatprep.subr.bf16.mxu0 0
    %694 = vmatpush1.bf16.msra.mxu0 %v650
    %695 = vmatprep.subr.bf16.mxu0 0
    %696 = vmatpush1.bf16.msra.mxu0 %v651
    %697 = vmatprep.subr.bf16.mxu0 0
    %698 = vmatpush1.bf16.msra.mxu0 %v652
    %699 = vmatprep.subr.bf16.mxu0 0
    %700 = vmatpush1.bf16.msra.mxu0 %v653
    %701 = vmatprep.subr.bf16.mxu0 0
    %702 = vmatpush1.bf16.msra.mxu0 %v654
    %703 = vmatprep.mubr.bf16.mxu0 %v505
    %704 = vmatmul.mubr.bf16.gmra.mrb[0].mxu0 %v504
    %v705 = vpop.f32.mrb[0].mxu0
    %v706 = vadd.f32 %v573, %v705
    %v707 = vpop.f32.mrb[0].mxu0
    %v708 = vpop.f32.mrb[0].mxu0
    %v709 = vadd.f32 %v573, %v708
    %v710 = vpop.f32.mrb[0].mxu0
    %711 = vmatprep.mubr.bf16.mxu0 %v507
    %712 = vmatmul.mubr.bf16.gmra.mrb[0].mxu0 %v506
    %v713 = vpop.f32.mrb[0].mxu0
    %v714 = vadd.f32 %v573, %v713
    %v715 = vpop.f32.mrb[0].mxu0
    %v716 = vpop.f32.mrb[0].mxu0
    %v717 = vadd.f32 %v573, %v716
    %v718 = vpop.f32.mrb[0].mxu0
    %719 = vmatprep.mubr.bf16.mxu0 %v509
    %720 = vmatmul.mubr.bf16.gmra.mrb[0].mxu0 %v508
    %v721 = vpop.f32.mrb[0].mxu0
    %v722 = vadd.f32 %v573, %v721
    %v723 = vpop.f32.mrb[0].mxu0
    %v724 = vpop.f32.mrb[0].mxu0
    %v725 = vadd.f32 %v573, %v724
    %v726 = vpop.f32.mrb[0].mxu0
    %727 = vmatprep.mubr.bf16.mxu0 %v511
    %728 = vmatmul.mubr.bf16.gmra.mrb[0].mxu0 %v510
    %v729 = vpop.f32.mrb[0].mxu0
    %v730 = vadd.f32 %v573, %v729
    %v731 = vpop.f32.mrb[0].mxu0
    %v732 = vpop.f32.mrb[0].mxu0
    %v733 = vadd.f32 %v573, %v732
    %v734 = vpop.f32.mrb[0].mxu0
    %735 = vmatprep.mubr.bf16.mxu0 %v513
    %736 = vmatmul.mubr.bf16.gmra.mrb[0].mxu0 %v512
    %v737 = vpop.f32.mrb[0].mxu0
    %v738 = vadd.f32 %v573, %v737
    %v739 = vpop.f32.mrb[0].mxu0
    %v740 = vpop.f32.mrb[0].mxu0
    %v741 = vadd.f32 %v573, %v740
    %v742 = vpop.f32.mrb[0].mxu0
    %743 = vmatprep.mubr.bf16.mxu0 %v515
    %744 = vmatmul.mubr.bf16.gmra.mrb[0].mxu0 %v514
    %v745 = vpop.f32.mrb[0].mxu0
    %v746 = vadd.f32 %v573, %v745
    %v747 = vpop.f32.mrb[0].mxu0
    %v748 = vpop.f32.mrb[0].mxu0
    %v749 = vadd.f32 %v573, %v748
    %v750 = vpop.f32.mrb[0].mxu0
    %751 = vmatprep.mubr.bf16.mxu0 %v517
    %752 = vmatmul.mubr.bf16.gmra.mrb[0].mxu0 %v516
    %v753 = vpop.f32.mrb[0].mxu0
    %v754 = vadd.f32 %v573, %v753
    %v755 = vpop.f32.mrb[0].mxu0
    %v756 = vpop.f32.mrb[0].mxu0
    %v757 = vadd.f32 %v573, %v756
    %v758 = vpop.f32.mrb[0].mxu0
    %759 = vmatprep.mubr.bf16.mxu0 %v519
    %760 = vmatmul.mubr.bf16.gmra.mrb[0].mxu0 %v518
    %v761 = vpop.f32.mrb[0].mxu0
    %v762 = vadd.f32 %v573, %v761
    %v763 = vpop.f32.mrb[0].mxu0
    %v764 = vpop.f32.mrb[0].mxu0
    %v765 = vadd.f32 %v573, %v764
    %v766 = vpop.f32.mrb[0].mxu0
    %767 = vmatprep.mubr.bf16.mxu0 %v521
    %768 = vmatmul.mubr.bf16.gmra.mrb[0].mxu0 %v520
    %v769 = vpop.f32.mrb[0].mxu0
    %v770 = vadd.f32 %v573, %v769
    %v771 = vpop.f32.mrb[0].mxu0
    %v772 = vpop.f32.mrb[0].mxu0
    %v773 = vadd.f32 %v573, %v772
    %v774 = vpop.f32.mrb[0].mxu0
    %775 = vmatprep.mubr.bf16.mxu0 %v523
    %776 = vmatmul.mubr.bf16.gmra.mrb[0].mxu0 %v522
    %v777 = vpop.f32.mrb[0].mxu0
    %v778 = vadd.f32 %v573, %v777
    %v779 = vpop.f32.mrb[0].mxu0
    %v780 = vpop.f32.mrb[0].mxu0
    %v781 = vadd.f32 %v573, %v780
    %v782 = vpop.f32.mrb[0].mxu0
    %783 = vmatprep.mubr.bf16.mxu0 %v525
    %784 = vmatmul.mubr.bf16.gmra.mrb[0].mxu0 %v524
    %v785 = vpop.f32.mrb[0].mxu0
    %v786 = vadd.f32 %v573, %v785
    %v787 = vpop.f32.mrb[0].mxu0
    %v788 = vpop.f32.mrb[0].mxu0
    %v789 = vadd.f32 %v573, %v788
    %v790 = vpop.f32.mrb[0].mxu0
    %791 = vmatprep.mubr.bf16.mxu0 %v527
    %792 = vmatmul.mubr.bf16.gmra.mrb[0].mxu0 %v526
    %v793 = vpop.f32.mrb[0].mxu0
    %v794 = vadd.f32 %v573, %v793
    %v795 = vpop.f32.mrb[0].mxu0
    %v796 = vpop.f32.mrb[0].mxu0
    %v797 = vadd.f32 %v573, %v796
    %v798 = vpop.f32.mrb[0].mxu0
    %799 = vmatprep.mubr.bf16.mxu0 %v529
    %800 = vmatmul.mubr.bf16.gmra.mrb[0].mxu0 %v528
    %v801 = vpop.f32.mrb[0].mxu0
    %v802 = vadd.f32 %v573, %v801
    %v803 = vpop.f32.mrb[0].mxu0
    %v804 = vpop.f32.mrb[0].mxu0
    %v805 = vadd.f32 %v573, %v804
    %v806 = vpop.f32.mrb[0].mxu0
    %807 = vmatprep.mubr.bf16.mxu0 %v531
    %808 = vmatmul.mubr.bf16.gmra.mrb[0].mxu0 %v530
    %v809 = vpop.f32.mrb[0].mxu0
    %v810 = vadd.f32 %v573, %v809
    %v811 = vpop.f32.mrb[0].mxu0
    %v812 = vpop.f32.mrb[0].mxu0
    %v813 = vadd.f32 %v573, %v812
    %v814 = vpop.f32.mrb[0].mxu0
    %815 = vmatprep.mubr.bf16.mxu0 %v533
    %816 = vmatmul.mubr.bf16.gmra.mrb[0].mxu0 %v532
    %v817 = vpop.f32.mrb[0].mxu0
    %v818 = vadd.f32 %v573, %v817
    %v819 = vpop.f32.mrb[0].mxu0
    %v820 = vpop.f32.mrb[0].mxu0
    %v821 = vadd.f32 %v573, %v820
    %v822 = vpop.f32.mrb[0].mxu0
    %823 = vmatprep.mubr.bf16.mxu0 %v535
    %824 = vmatmul.mubr.bf16.gmra.mrb[0].mxu0 %v534
    %v825 = vpop.f32.mrb[0].mxu0
    %v826 = vadd.f32 %v573, %v825
    %v827 = vpop.f32.mrb[0].mxu0
    %v828 = vpop.f32.mrb[0].mxu0
    %v829 = vadd.f32 %v573, %v828
    %v830 = vpop.f32.mrb[0].mxu0
    %831 = vdwg.mxu0
    %v832 = vmax.f32 %v706, 0.0
    %v833 = vmax.f32 %v709, 0.0
    %v834 = vmax.f32 %v714, 0.0
    %v835 = vmax.f32 %v717, 0.0
    %v836 = vmax.f32 %v722, 0.0
    %v837 = vmax.f32 %v725, 0.0
    %v838 = vmax.f32 %v730, 0.0
    %v839 = vmax.f32 %v733, 0.0
    %v840 = vmax.f32 %v738, 0.0
    %v841 = vmax.f32 %v741, 0.0
    %v842 = vmax.f32 %v746, 0.0
    %v843 = vmax.f32 %v749, 0.0
    %v844 = vmax.f32 %v754, 0.0
    %v845 = vmax.f32 %v757, 0.0
    %v846 = vmax.f32 %v762, 0.0
    %v847 = vmax.f32 %v765, 0.0
    %v848 = vmax.f32 %v770, 0.0
    %v849 = vmax.f32 %v773, 0.0
    %v850 = vmax.f32 %v778, 0.0
    %v851 = vmax.f32 %v781, 0.0
    %v852 = vmax.f32 %v786, 0.0
    %v853 = vmax.f32 %v789, 0.0
    %v854 = vmax.f32 %v794, 0.0
    %v855 = vmax.f32 %v797, 0.0
    %v856 = vmax.f32 %v802, 0.0
    %v857 = vmax.f32 %v805, 0.0
    %v858 = vmax.f32 %v810, 0.0
    %v859 = vmax.f32 %v813, 0.0
    %v860 = vmax.f32 %v818, 0.0
    %v861 = vmax.f32 %v821, 0.0
    %v862 = vmax.f32 %v826, 0.0
    %v863 = vmax.f32 %v829, 0.0
    %v864 = vpack.c.bf16 %v833, %v832
    %v865 = vpack.c.bf16 %v835, %v834
    %v866 = vpack.c.bf16 %v837, %v836
    %v867 = vpack.c.bf16 %v839, %v838
    %v868 = vpack.c.bf16 %v841, %v840
    %v869 = vpack.c.bf16 %v843, %v842
    %v870 = vpack.c.bf16 %v845, %v844
    %v871 = vpack.c.bf16 %v847, %v846
    %v872 = vpack.c.bf16 %v849, %v848
    %v873 = vpack.c.bf16 %v851, %v850
    %v874 = vpack.c.bf16 %v853, %v852
    %v875 = vpack.c.bf16 %v855, %v854
    %v876 = vpack.c.bf16 %v857, %v856
    %v877 = vpack.c.bf16 %v859, %v858
    %v878 = vpack.c.bf16 %v861, %v860
    %v879 = vpack.c.bf16 %v863, %v862
    %v880 = vld [vmem:[#allocation2] sm:$0xf]
    %v881 = vld [vmem:[#allocation2 + $0x4] sm:$0xf]
    %v882 = vld [vmem:[#allocation2 + $0x8] sm:$0xf]
    %v883 = vld [vmem:[#allocation2 + $0xc] sm:$0xf]
    %v884 = vld [vmem:[#allocation2 + $0x10] sm:$0xf]
    %v885 = vld [vmem:[#allocation2 + $0x14] sm:$0xf]
    %v886 = vld [vmem:[#allocation2 + $0x18] sm:$0xf]
    %v887 = vld [vmem:[#allocation2 + $0x1c] sm:$0xf]
    %v888 = vld [vmem:[#allocation2 + $0x20] sm:$0xf]
    %v889 = vld [vmem:[#allocation2 + $0x24] sm:$0xf]
    %v890 = vld [vmem:[#allocation2 + $0x28] sm:$0xf]
    %v891 = vld [vmem:[#allocation2 + $0x2c] sm:$0xf]
    %v892 = vld [vmem:[#allocation2 + $0x30] sm:$0xf]
    %v893 = vld [vmem:[#allocation2 + $0x34] sm:$0xf]
    %v894 = vld [vmem:[#allocation2 + $0x38] sm:$0xf]
    %v895 = vld [vmem:[#allocation2 + $0x3c] sm:$0xf]
    %v896 = vld [vmem:[%s6] sm:$0x1]
    %v898 = vlaneseq
    %v899 = vshrl.u32 %v898, 7
    %v900 = vsub.s32 0, %v899
    %v901 = vrot.slane %v896, %v900
    %v919 = vunpack.c.l.b16 %v880
    %v920 = vunpack.c.l.b16 %v881
    %v921 = vunpack.c.l.b16 %v882
    %v922 = vunpack.c.l.b16 %v883
    %v923 = vunpack.c.l.b16 %v884
    %v924 = vunpack.c.l.b16 %v885
    %v925 = vunpack.c.l.b16 %v886
    %v926 = vunpack.c.l.b16 %v887
    %v927 = vunpack.c.l.b16 %v888
    %v928 = vunpack.c.l.b16 %v889
    %v929 = vunpack.c.l.b16 %v890
    %v930 = vunpack.c.l.b16 %v891
    %v931 = vunpack.c.l.b16 %v892
    %v932 = vunpack.c.l.b16 %v893
    %v933 = vunpack.c.l.b16 %v894
    %v934 = vunpack.c.l.b16 %v895
    %v935 = vpack.c.b16 %v920, %v919
    %v936 = vpack.c.b16 %v922, %v921
    %v937 = vpack.c.b16 %v924, %v923
    %v938 = vpack.c.b16 %v926, %v925
    %v939 = vpack.c.b16 %v928, %v927
    %v940 = vpack.c.b16 %v930, %v929
    %v941 = vpack.c.b16 %v932, %v931
    %v942 = vpack.c.b16 %v934, %v933
    %951 = vmatprep.subr.bf16.mxu0 0
    %952 = vmatpush1.bf16.msra.mxu0 %v935
    %953 = vmatprep.subr.bf16.mxu0 0
    %954 = vmatpush1.bf16.msra.mxu0 %v936
    %955 = vmatprep.subr.bf16.mxu0 0
    %956 = vmatpush1.bf16.msra.mxu0 %v937
    %957 = vmatprep.subr.bf16.mxu0 0
    %958 = vmatpush1.bf16.msra.mxu0 %v938
    %959 = vmatprep.subr.bf16.mxu0 0
    %960 = vmatpush1.bf16.msra.mxu0 %v939
    %961 = vmatprep.subr.bf16.mxu0 0
    %962 = vmatpush1.bf16.msra.mxu0 %v940
    %963 = vmatprep.subr.bf16.mxu0 0
    %964 = vmatpush1.bf16.msra.mxu0 %v941
    %965 = vmatprep.subr.bf16.mxu0 0
    %966 = vmatpush1.bf16.msra.mxu0 %v942
    %967 = vmatprep.subr.bf16.mxu0 0
    %968 = vmatpush1.bf16.msra.mxu0 0
    %969 = vmatprep.subr.bf16.mxu0 0
    %970 = vmatpush1.bf16.msra.mxu0 0
    %971 = vmatprep.subr.bf16.mxu0 0
    %972 = vmatpush1.bf16.msra.mxu0 0
    %973 = vmatprep.subr.bf16.mxu0 0
    %974 = vmatpush1.bf16.msra.mxu0 0
    %975 = vmatprep.subr.bf16.mxu0 0
    %976 = vmatpush1.bf16.msra.mxu0 0
    %977 = vmatprep.subr.bf16.mxu0 0
    %978 = vmatpush1.bf16.msra.mxu0 0
    %979 = vmatprep.subr.bf16.mxu0 0
    %980 = vmatpush1.bf16.msra.mxu0 0
    %981 = vmatprep.subr.bf16.mxu0 0
    %982 = vmatpush1.bf16.msra.mxu0 0
    %983 = vmatprep.mubr.bf16.mxu0 0
    %984 = vmatmul.mubr.bf16.gmra.mrb[0].mxu0 %v864
    %v985 = vpop.f32.mrb[0].mxu0
    %v986 = vadd.f32 %v901, %v985
    %v987 = vpop.f32.mrb[0].mxu0
    %v988 = vpop.f32.mrb[0].mxu0
    %v989 = vadd.f32 %v901, %v988
    %v990 = vpop.f32.mrb[0].mxu0
    %991 = vmatprep.mubr.bf16.mxu0 0
    %992 = vmatmul.mubr.bf16.gmra.mrb[0].mxu0 %v865
    %v993 = vpop.f32.mrb[0].mxu0
    %v994 = vadd.f32 %v901, %v993
    %v995 = vpop.f32.mrb[0].mxu0
    %v996 = vpop.f32.mrb[0].mxu0
    %v997 = vadd.f32 %v901, %v996
    %v998 = vpop.f32.mrb[0].mxu0
    %999 = vmatprep.mubr.bf16.mxu0 0
    %1000 = vmatmul.mubr.bf16.gmra.mrb[0].mxu0 %v866
    %v1001 = vpop.f32.mrb[0].mxu0
    %v1002 = vadd.f32 %v901, %v1001
    %v1003 = vpop.f32.mrb[0].mxu0
    %v1004 = vpop.f32.mrb[0].mxu0
    %v1005 = vadd.f32 %v901, %v1004
    %v1006 = vpop.f32.mrb[0].mxu0
    %1007 = vmatprep.mubr.bf16.mxu0 0
    %1008 = vmatmul.mubr.bf16.gmra.mrb[0].mxu0 %v867
    %v1009 = vpop.f32.mrb[0].mxu0
    %v1010 = vadd.f32 %v901, %v1009
    %v1011 = vpop.f32.mrb[0].mxu0
    %v1012 = vpop.f32.mrb[0].mxu0
    %v1013 = vadd.f32 %v901, %v1012
    %v1014 = vpop.f32.mrb[0].mxu0
    %1015 = vmatprep.mubr.bf16.mxu0 0
    %1016 = vmatmul.mubr.bf16.gmra.mrb[0].mxu0 %v868
    %v1017 = vpop.f32.mrb[0].mxu0
    %v1018 = vadd.f32 %v901, %v1017
    %v1019 = vpop.f32.mrb[0].mxu0
    %v1020 = vpop.f32.mrb[0].mxu0
    %v1021 = vadd.f32 %v901, %v1020
    %v1022 = vpop.f32.mrb[0].mxu0
    %1023 = vmatprep.mubr.bf16.mxu0 0
    %1024 = vmatmul.mubr.bf16.gmra.mrb[0].mxu0 %v869
    %v1025 = vpop.f32.mrb[0].mxu0
    %v1026 = vadd.f32 %v901, %v1025
    %v1027 = vpop.f32.mrb[0].mxu0
    %v1028 = vpop.f32.mrb[0].mxu0
    %v1029 = vadd.f32 %v901, %v1028
    %v1030 = vpop.f32.mrb[0].mxu0
    %1031 = vmatprep.mubr.bf16.mxu0 0
    %1032 = vmatmul.mubr.bf16.gmra.mrb[0].mxu0 %v870
    %v1033 = vpop.f32.mrb[0].mxu0
    %v1034 = vadd.f32 %v901, %v1033
    %v1035 = vpop.f32.mrb[0].mxu0
    %v1036 = vpop.f32.mrb[0].mxu0
    %v1037 = vadd.f32 %v901, %v1036
    %v1038 = vpop.f32.mrb[0].mxu0
    %1039 = vmatprep.mubr.bf16.mxu0 0
    %1040 = vmatmul.mubr.bf16.gmra.mrb[0].mxu0 %v871
    %v1041 = vpop.f32.mrb[0].mxu0
    %v1042 = vadd.f32 %v901, %v1041
    %v1043 = vpop.f32.mrb[0].mxu0
    %v1044 = vpop.f32.mrb[0].mxu0
    %v1045 = vadd.f32 %v901, %v1044
    %v1046 = vpop.f32.mrb[0].mxu0
    %1047 = vmatprep.mubr.bf16.mxu0 0
    %1048 = vmatmul.mubr.bf16.gmra.mrb[0].mxu0 %v872
    %v1049 = vpop.f32.mrb[0].mxu0
    %v1050 = vadd.f32 %v901, %v1049
    %v1051 = vpop.f32.mrb[0].mxu0
    %v1052 = vpop.f32.mrb[0].mxu0
    %v1053 = vadd.f32 %v901, %v1052
    %v1054 = vpop.f32.mrb[0].mxu0
    %1055 = vmatprep.mubr.bf16.mxu0 0
    %1056 = vmatmul.mubr.bf16.gmra.mrb[0].mxu0 %v873
    %v1057 = vpop.f32.mrb[0].mxu0
    %v1058 = vadd.f32 %v901, %v1057
    %v1059 = vpop.f32.mrb[0].mxu0
    %v1060 = vpop.f32.mrb[0].mxu0
    %v1061 = vadd.f32 %v901, %v1060
    %v1062 = vpop.f32.mrb[0].mxu0
    %1063 = vmatprep.mubr.bf16.mxu0 0
    %1064 = vmatmul.mubr.bf16.gmra.mrb[0].mxu0 %v874
    %v1065 = vpop.f32.mrb[0].mxu0
    %v1066 = vadd.f32 %v901, %v1065
    %v1067 = vpop.f32.mrb[0].mxu0
    %v1068 = vpop.f32.mrb[0].mxu0
    %v1069 = vadd.f32 %v901, %v1068
    %v1070 = vpop.f32.mrb[0].mxu0
    %1071 = vmatprep.mubr.bf16.mxu0 0
    %1072 = vmatmul.mubr.bf16.gmra.mrb[0].mxu0 %v875
    %v1073 = vpop.f32.mrb[0].mxu0
    %v1074 = vadd.f32 %v901, %v1073
    %v1075 = vpop.f32.mrb[0].mxu0
    %v1076 = vpop.f32.mrb[0].mxu0
    %v1077 = vadd.f32 %v901, %v1076
    %v1078 = vpop.f32.mrb[0].mxu0
    %1079 = vmatprep.mubr.bf16.mxu0 0
    %1080 = vmatmul.mubr.bf16.gmra.mrb[0].mxu0 %v876
    %v1081 = vpop.f32.mrb[0].mxu0
    %v1082 = vadd.f32 %v901, %v1081
    %v1083 = vpop.f32.mrb[0].mxu0
    %v1084 = vpop.f32.mrb[0].mxu0
    %v1085 = vadd.f32 %v901, %v1084
    %v1086 = vpop.f32.mrb[0].mxu0
    %1087 = vmatprep.mubr.bf16.mxu0 0
    %1088 = vmatmul.mubr.bf16.gmra.mrb[0].mxu0 %v877
    %v1089 = vpop.f32.mrb[0].mxu0
    %v1090 = vadd.f32 %v901, %v1089
    %v1091 = vpop.f32.mrb[0].mxu0
    %v1092 = vpop.f32.mrb[0].mxu0
    %v1093 = vadd.f32 %v901, %v1092
    %v1094 = vpop.f32.mrb[0].mxu0
    %1095 = vmatprep.mubr.bf16.mxu0 0
    %1096 = vmatmul.mubr.bf16.gmra.mrb[0].mxu0 %v878
    %v1097 = vpop.f32.mrb[0].mxu0
    %v1098 = vadd.f32 %v901, %v1097
    %v1099 = vpop.f32.mrb[0].mxu0
    %v1100 = vpop.f32.mrb[0].mxu0
    %v1101 = vadd.f32 %v901, %v1100
    %v1102 = vpop.f32.mrb[0].mxu0
    %1103 = vmatprep.mubr.bf16.mxu0 0
    %1104 = vmatmul.mubr.bf16.gmra.mrb[0].mxu0 %v879
    %v1105 = vpop.f32.mrb[0].mxu0
    %v1106 = vadd.f32 %v901, %v1105
    %v1107 = vpop.f32.mrb[0].mxu0
    %v1108 = vpop.f32.mrb[0].mxu0
    %v1109 = vadd.f32 %v901, %v1108
    %v1110 = vpop.f32.mrb[0].mxu0
    %1111 = vdwg.mxu0
    %v1112 = vmax.f32 %v986, 0.0
    %v1113 = vmax.f32 %v989, 0.0
    %v1114 = vmax.f32 %v994, 0.0
    %v1115 = vmax.f32 %v997, 0.0
    %v1116 = vmax.f32 %v1002, 0.0
    %v1117 = vmax.f32 %v1005, 0.0
    %v1118 = vmax.f32 %v1010, 0.0
    %v1119 = vmax.f32 %v1013, 0.0
    %v1120 = vmax.f32 %v1018, 0.0
    %v1121 = vmax.f32 %v1021, 0.0
    %v1122 = vmax.f32 %v1026, 0.0
    %v1123 = vmax.f32 %v1029, 0.0
    %v1124 = vmax.f32 %v1034, 0.0
    %v1125 = vmax.f32 %v1037, 0.0
    %v1126 = vmax.f32 %v1042, 0.0
    %v1127 = vmax.f32 %v1045, 0.0
    %v1128 = vmax.f32 %v1050, 0.0
    %v1129 = vmax.f32 %v1053, 0.0
    %v1130 = vmax.f32 %v1058, 0.0
    %v1131 = vmax.f32 %v1061, 0.0
    %v1132 = vmax.f32 %v1066, 0.0
    %v1133 = vmax.f32 %v1069, 0.0
    %v1134 = vmax.f32 %v1074, 0.0
    %v1135 = vmax.f32 %v1077, 0.0
    %v1136 = vmax.f32 %v1082, 0.0
    %v1137 = vmax.f32 %v1085, 0.0
    %v1138 = vmax.f32 %v1090, 0.0
    %v1139 = vmax.f32 %v1093, 0.0
    %v1140 = vmax.f32 %v1098, 0.0
    %v1141 = vmax.f32 %v1101, 0.0
    %v1142 = vmax.f32 %v1106, 0.0
    %v1143 = vmax.f32 %v1109, 0.0
    %v1144 = vpack.c.bf16 %v1113, %v1112
    %v1145 = vpack.c.bf16 %v1115, %v1114
    %v1146 = vpack.c.bf16 %v1117, %v1116
    %v1147 = vpack.c.bf16 %v1119, %v1118
    %v1148 = vpack.c.bf16 %v1121, %v1120
    %v1149 = vpack.c.bf16 %v1123, %v1122
    %v1150 = vpack.c.bf16 %v1125, %v1124
    %v1151 = vpack.c.bf16 %v1127, %v1126
    %v1152 = vpack.c.bf16 %v1129, %v1128
    %v1153 = vpack.c.bf16 %v1131, %v1130
    %v1154 = vpack.c.bf16 %v1133, %v1132
    %v1155 = vpack.c.bf16 %v1135, %v1134
    %v1156 = vpack.c.bf16 %v1137, %v1136
    %v1157 = vpack.c.bf16 %v1139, %v1138
    %v1158 = vpack.c.bf16 %v1141, %v1140
    %v1159 = vpack.c.bf16 %v1143, %v1142
    %v1160 = vld [vmem:[#allocation5] sm:$0xf]
    %v1161 = vld [vmem:[#allocation5 + $0x4] sm:$0xf]
    %v1162 = vld [vmem:[#allocation5 + $0x8] sm:$0xf]
    %v1163 = vld [vmem:[#allocation5 + $0xc] sm:$0xf]
    %v1164 = vld [vmem:[#allocation5 + $0x10] sm:$0xf]
    %v1165 = vld [vmem:[#allocation5 + $0x14] sm:$0xf]
    %v1166 = vld [vmem:[#allocation5 + $0x18] sm:$0xf]
    %v1167 = vld [vmem:[#allocation5 + $0x1c] sm:$0xf]
    %v1168 = vld [vmem:[#allocation5 + $0x20] sm:$0xf]
    %v1169 = vld [vmem:[#allocation5 + $0x24] sm:$0xf]
    %v1170 = vld [vmem:[#allocation5 + $0x28] sm:$0xf]
    %v1171 = vld [vmem:[#allocation5 + $0x2c] sm:$0xf]
    %v1172 = vld [vmem:[#allocation5 + $0x30] sm:$0xf]
    %v1173 = vld [vmem:[#allocation5 + $0x34] sm:$0xf]
    %v1174 = vld [vmem:[#allocation5 + $0x38] sm:$0xf]
    %v1175 = vld [vmem:[#allocation5 + $0x3c] sm:$0xf]
    %v1176 = vld [vmem:[%s8] sm:$0x1]
    %v1178 = vlaneseq
    %v1179 = vshrl.u32 %v1178, 7
    %v1180 = vsub.s32 0, %v1179
    %v1181 = vrot.slane %v1176, %v1180
    %v1199 = vunpack.c.l.b16 %v1160
    %v1200 = vunpack.c.l.b16 %v1161
    %v1201 = vunpack.c.l.b16 %v1162
    %v1202 = vunpack.c.l.b16 %v1163
    %v1203 = vunpack.c.l.b16 %v1164
    %v1204 = vunpack.c.l.b16 %v1165
    %v1205 = vunpack.c.l.b16 %v1166
    %v1206 = vunpack.c.l.b16 %v1167
    %v1207 = vunpack.c.l.b16 %v1168
    %v1208 = vunpack.c.l.b16 %v1169
    %v1209 = vunpack.c.l.b16 %v1170
    %v1210 = vunpack.c.l.b16 %v1171
    %v1211 = vunpack.c.l.b16 %v1172
    %v1212 = vunpack.c.l.b16 %v1173
    %v1213 = vunpack.c.l.b16 %v1174
    %v1214 = vunpack.c.l.b16 %v1175
    %v1215 = vpack.c.b16 %v1200, %v1199
    %v1216 = vpack.c.b16 %v1202, %v1201
    %v1217 = vpack.c.b16 %v1204, %v1203
    %v1218 = vpack.c.b16 %v1206, %v1205
    %v1219 = vpack.c.b16 %v1208, %v1207
    %v1220 = vpack.c.b16 %v1210, %v1209
    %v1221 = vpack.c.b16 %v1212, %v1211
    %v1222 = vpack.c.b16 %v1214, %v1213
    %1231 = vmatprep.subr.bf16.mxu0 0
    %1232 = vmatpush1.bf16.msra.mxu0 %v1215
    %1233 = vmatprep.subr.bf16.mxu0 0
    %1234 = vmatpush1.bf16.msra.mxu0 %v1216
    %1235 = vmatprep.subr.bf16.mxu0 0
    %1236 = vmatpush1.bf16.msra.mxu0 %v1217
    %1237 = vmatprep.subr.bf16.mxu0 0
    %1238 = vmatpush1.bf16.msra.mxu0 %v1218
    %1239 = vmatprep.subr.bf16.mxu0 0
    %1240 = vmatpush1.bf16.msra.mxu0 %v1219
    %1241 = vmatprep.subr.bf16.mxu0 0
    %1242 = vmatpush1.bf16.msra.mxu0 %v1220
    %1243 = vmatprep.subr.bf16.mxu0 0
    %1244 = vmatpush1.bf16.msra.mxu0 %v1221
    %1245 = vmatprep.subr.bf16.mxu0 0
    %1246 = vmatpush1.bf16.msra.mxu0 %v1222
    %1247 = vmatprep.subr.bf16.mxu0 0
    %1248 = vmatpush1.bf16.msra.mxu0 0
    %1249 = vmatprep.subr.bf16.mxu0 0
    %1250 = vmatpush1.bf16.msra.mxu0 0
    %1251 = vmatprep.subr.bf16.mxu0 0
    %1252 = vmatpush1.bf16.msra.mxu0 0
    %1253 = vmatprep.subr.bf16.mxu0 0
    %1254 = vmatpush1.bf16.msra.mxu0 0
    %1255 = vmatprep.subr.bf16.mxu0 0
    %1256 = vmatpush1.bf16.msra.mxu0 0
    %1257 = vmatprep.subr.bf16.mxu0 0
    %1258 = vmatpush1.bf16.msra.mxu0 0
    %1259 = vmatprep.subr.bf16.mxu0 0
    %1260 = vmatpush1.bf16.msra.mxu0 0
    %1261 = vmatprep.subr.bf16.mxu0 0
    %1262 = vmatpush1.bf16.msra.mxu0 0
    %1263 = vmatprep.mubr.bf16.mxu0 0
    %1264 = vmatmul.mubr.bf16.gmra.mrb[0].mxu0 %v1144
    %v1265 = vpop.f32.mrb[0].mxu0
    %v1266 = vadd.f32 %v1181, %v1265
    %v1267 = vpop.f32.mrb[0].mxu0
    %v1268 = vpop.f32.mrb[0].mxu0
    %v1269 = vadd.f32 %v1181, %v1268
    %v1270 = vpop.f32.mrb[0].mxu0
    %1271 = vmatprep.mubr.bf16.mxu0 0
    %1272 = vmatmul.mubr.bf16.gmra.mrb[0].mxu0 %v1145
    %v1273 = vpop.f32.mrb[0].mxu0
    %v1274 = vadd.f32 %v1181, %v1273
    %v1275 = vpop.f32.mrb[0].mxu0
    %v1276 = vpop.f32.mrb[0].mxu0
    %v1277 = vadd.f32 %v1181, %v1276
    %v1278 = vpop.f32.mrb[0].mxu0
    %1279 = vmatprep.mubr.bf16.mxu0 0
    %1280 = vmatmul.mubr.bf16.gmra.mrb[0].mxu0 %v1146
    %v1281 = vpop.f32.mrb[0].mxu0
    %v1282 = vadd.f32 %v1181, %v1281
    %v1283 = vpop.f32.mrb[0].mxu0
    %v1284 = vpop.f32.mrb[0].mxu0
    %v1285 = vadd.f32 %v1181, %v1284
    %v1286 = vpop.f32.mrb[0].mxu0
    %1287 = vmatprep.mubr.bf16.mxu0 0
    %1288 = vmatmul.mubr.bf16.gmra.mrb[0].mxu0 %v1147
    %v1289 = vpop.f32.mrb[0].mxu0
    %v1290 = vadd.f32 %v1181, %v1289
    %v1291 = vpop.f32.mrb[0].mxu0
    %v1292 = vpop.f32.mrb[0].mxu0
    %v1293 = vadd.f32 %v1181, %v1292
    %v1294 = vpop.f32.mrb[0].mxu0
    %1295 = vmatprep.mubr.bf16.mxu0 0
    %1296 = vmatmul.mubr.bf16.gmra.mrb[0].mxu0 %v1148
    %v1297 = vpop.f32.mrb[0].mxu0
    %v1298 = vadd.f32 %v1181, %v1297
    %v1299 = vpop.f32.mrb[0].mxu0
    %v1300 = vpop.f32.mrb[0].mxu0
    %v1301 = vadd.f32 %v1181, %v1300
    %v1302 = vpop.f32.mrb[0].mxu0
    %1303 = vmatprep.mubr.bf16.mxu0 0
    %1304 = vmatmul.mubr.bf16.gmra.mrb[0].mxu0 %v1149
    %v1305 = vpop.f32.mrb[0].mxu0
    %v1306 = vadd.f32 %v1181, %v1305
    %v1307 = vpop.f32.mrb[0].mxu0
    %v1308 = vpop.f32.mrb[0].mxu0
    %v1309 = vadd.f32 %v1181, %v1308
    %v1310 = vpop.f32.mrb[0].mxu0
    %1311 = vmatprep.mubr.bf16.mxu0 0
    %1312 = vmatmul.mubr.bf16.gmra.mrb[0].mxu0 %v1150
    %v1313 = vpop.f32.mrb[0].mxu0
    %v1314 = vadd.f32 %v1181, %v1313
    %v1315 = vpop.f32.mrb[0].mxu0
    %v1316 = vpop.f32.mrb[0].mxu0
    %v1317 = vadd.f32 %v1181, %v1316
    %v1318 = vpop.f32.mrb[0].mxu0
    %1319 = vmatprep.mubr.bf16.mxu0 0
    %1320 = vmatmul.mubr.bf16.gmra.mrb[0].mxu0 %v1151
    %v1321 = vpop.f32.mrb[0].mxu0
    %v1322 = vadd.f32 %v1181, %v1321
    %v1323 = vpop.f32.mrb[0].mxu0
    %v1324 = vpop.f32.mrb[0].mxu0
    %v1325 = vadd.f32 %v1181, %v1324
    %v1326 = vpop.f32.mrb[0].mxu0
    %1327 = vmatprep.mubr.bf16.mxu0 0
    %1328 = vmatmul.mubr.bf16.gmra.mrb[0].mxu0 %v1152
    %v1329 = vpop.f32.mrb[0].mxu0
    %v1330 = vadd.f32 %v1181, %v1329
    %v1331 = vpop.f32.mrb[0].mxu0
    %v1332 = vpop.f32.mrb[0].mxu0
    %v1333 = vadd.f32 %v1181, %v1332
    %v1334 = vpop.f32.mrb[0].mxu0
    %1335 = vmatprep.mubr.bf16.mxu0 0
    %1336 = vmatmul.mubr.bf16.gmra.mrb[0].mxu0 %v1153
    %v1337 = vpop.f32.mrb[0].mxu0
    %v1338 = vadd.f32 %v1181, %v1337
    %v1339 = vpop.f32.mrb[0].mxu0
    %v1340 = vpop.f32.mrb[0].mxu0
    %v1341 = vadd.f32 %v1181, %v1340
    %v1342 = vpop.f32.mrb[0].mxu0
    %1343 = vmatprep.mubr.bf16.mxu0 0
    %1344 = vmatmul.mubr.bf16.gmra.mrb[0].mxu0 %v1154
    %v1345 = vpop.f32.mrb[0].mxu0
    %v1346 = vadd.f32 %v1181, %v1345
    %v1347 = vpop.f32.mrb[0].mxu0
    %v1348 = vpop.f32.mrb[0].mxu0
    %v1349 = vadd.f32 %v1181, %v1348
    %v1350 = vpop.f32.mrb[0].mxu0
    %1351 = vmatprep.mubr.bf16.mxu0 0
    %1352 = vmatmul.mubr.bf16.gmra.mrb[0].mxu0 %v1155
    %v1353 = vpop.f32.mrb[0].mxu0
    %v1354 = vadd.f32 %v1181, %v1353
    %v1355 = vpop.f32.mrb[0].mxu0
    %v1356 = vpop.f32.mrb[0].mxu0
    %v1357 = vadd.f32 %v1181, %v1356
    %v1358 = vpop.f32.mrb[0].mxu0
    %1359 = vmatprep.mubr.bf16.mxu0 0
    %1360 = vmatmul.mubr.bf16.gmra.mrb[0].mxu0 %v1156
    %v1361 = vpop.f32.mrb[0].mxu0
    %v1362 = vadd.f32 %v1181, %v1361
    %v1363 = vpop.f32.mrb[0].mxu0
    %v1364 = vpop.f32.mrb[0].mxu0
    %v1365 = vadd.f32 %v1181, %v1364
    %v1366 = vpop.f32.mrb[0].mxu0
    %1367 = vmatprep.mubr.bf16.mxu0 0
    %1368 = vmatmul.mubr.bf16.gmra.mrb[0].mxu0 %v1157
    %v1369 = vpop.f32.mrb[0].mxu0
    %v1370 = vadd.f32 %v1181, %v1369
    %v1371 = vpop.f32.mrb[0].mxu0
    %v1372 = vpop.f32.mrb[0].mxu0
    %v1373 = vadd.f32 %v1181, %v1372
    %v1374 = vpop.f32.mrb[0].mxu0
    %1375 = vmatprep.mubr.bf16.mxu0 0
    %1376 = vmatmul.mubr.bf16.gmra.mrb[0].mxu0 %v1158
    %v1377 = vpop.f32.mrb[0].mxu0
    %v1378 = vadd.f32 %v1181, %v1377
    %v1379 = vpop.f32.mrb[0].mxu0
    %v1380 = vpop.f32.mrb[0].mxu0
    %v1381 = vadd.f32 %v1181, %v1380
    %v1382 = vpop.f32.mrb[0].mxu0
    %1383 = vmatprep.mubr.bf16.mxu0 0
    %1384 = vmatmul.mubr.bf16.gmra.mrb[0].mxu0 %v1159
    %v1385 = vpop.f32.mrb[0].mxu0
    %v1386 = vadd.f32 %v1181, %v1385
    %v1387 = vpop.f32.mrb[0].mxu0
    %v1388 = vpop.f32.mrb[0].mxu0
    %v1389 = vadd.f32 %v1181, %v1388
    %v1390 = vpop.f32.mrb[0].mxu0
    %1391 = vdwg.mxu0
    %1392 = vmax.xlane.f32.xlu0 %v1266
    %v1393 = vpop.xlane.xlu0 %1392
    %1394 = vmax.xlane.f32.xlu0 %v1269
    %v1395 = vpop.xlane.xlu0 %1394
    %1396 = vmax.xlane.f32.xlu0 %v1274
    %v1397 = vpop.xlane.xlu0 %1396
    %1398 = vmax.xlane.f32.xlu0 %v1277
    %v1399 = vpop.xlane.xlu0 %1398
    %1400 = vmax.xlane.f32.xlu0 %v1282
    %v1401 = vpop.xlane.xlu0 %1400
    %1402 = vmax.xlane.f32.xlu0 %v1285
    %v1403 = vpop.xlane.xlu0 %1402
    %1404 = vmax.xlane.f32.xlu0 %v1290
    %v1405 = vpop.xlane.xlu0 %1404
    %1406 = vmax.xlane.f32.xlu0 %v1293
    %v1407 = vpop.xlane.xlu0 %1406
    %1408 = vmax.xlane.f32.xlu0 %v1298
    %v1409 = vpop.xlane.xlu0 %1408
    %1410 = vmax.xlane.f32.xlu0 %v1301
    %v1411 = vpop.xlane.xlu0 %1410
    %1412 = vmax.xlane.f32.xlu0 %v1306
    %v1413 = vpop.xlane.xlu0 %1412
    %1414 = vmax.xlane.f32.xlu0 %v1309
    %v1415 = vpop.xlane.xlu0 %1414
    %1416 = vmax.xlane.f32.xlu0 %v1314
    %v1417 = vpop.xlane.xlu0 %1416
    %1418 = vmax.xlane.f32.xlu0 %v1317
    %v1419 = vpop.xlane.xlu0 %1418
    %1420 = vmax.xlane.f32.xlu0 %v1322
    %v1421 = vpop.xlane.xlu0 %1420
    %1422 = vmax.xlane.f32.xlu0 %v1325
    %v1423 = vpop.xlane.xlu0 %1422
    %1424 = vmax.xlane.f32.xlu0 %v1330
    %v1425 = vpop.xlane.xlu0 %1424
    %1426 = vmax.xlane.f32.xlu0 %v1333
    %v1427 = vpop.xlane.xlu0 %1426
    %1428 = vmax.xlane.f32.xlu0 %v1338
    %v1429 = vpop.xlane.xlu0 %1428
    %1430 = vmax.xlane.f32.xlu0 %v1341
    %v1431 = vpop.xlane.xlu0 %1430
    %1432 = vmax.xlane.f32.xlu0 %v1346
    %v1433 = vpop.xlane.xlu0 %1432
    %1434 = vmax.xlane.f32.xlu0 %v1349
    %v1435 = vpop.xlane.xlu0 %1434
    %1436 = vmax.xlane.f32.xlu0 %v1354
    %v1437 = vpop.xlane.xlu0 %1436
    %1438 = vmax.xlane.f32.xlu0 %v1357
    %v1439 = vpop.xlane.xlu0 %1438
    %1440 = vmax.xlane.f32.xlu0 %v1362
    %v1441 = vpop.xlane.xlu0 %1440
    %1442 = vmax.xlane.f32.xlu0 %v1365
    %v1443 = vpop.xlane.xlu0 %1442
    %1444 = vmax.xlane.f32.xlu0 %v1370
    %v1445 = vpop.xlane.xlu0 %1444
    %1446 = vmax.xlane.f32.xlu0 %v1373
    %v1447 = vpop.xlane.xlu0 %1446
    %1448 = vmax.xlane.f32.xlu0 %v1378
    %v1449 = vpop.xlane.xlu0 %1448
    %1450 = vmax.xlane.f32.xlu0 %v1381
    %v1451 = vpop.xlane.xlu0 %1450
    %1452 = vmax.xlane.f32.xlu0 %v1386
    %v1453 = vpop.xlane.xlu0 %1452
    %1454 = vmax.xlane.f32.xlu0 %v1389
    %v1455 = vpop.xlane.xlu0 %1454
    %v1456 = vsub.f32 %v1266, %v1393
    %v1457 = vsub.f32 %v1269, %v1395
    %v1458 = vsub.f32 %v1274, %v1397
    %v1459 = vsub.f32 %v1277, %v1399
    %v1460 = vsub.f32 %v1282, %v1401
    %v1461 = vsub.f32 %v1285, %v1403
    %v1462 = vsub.f32 %v1290, %v1405
    %v1463 = vsub.f32 %v1293, %v1407
    %v1464 = vsub.f32 %v1298, %v1409
    %v1465 = vsub.f32 %v1301, %v1411
    %v1466 = vsub.f32 %v1306, %v1413
    %v1467 = vsub.f32 %v1309, %v1415
    %v1468 = vsub.f32 %v1314, %v1417
    %v1469 = vsub.f32 %v1317, %v1419
    %v1470 = vsub.f32 %v1322, %v1421
    %v1471 = vsub.f32 %v1325, %v1423
    %v1472 = vsub.f32 %v1330, %v1425
    %v1473 = vsub.f32 %v1333, %v1427
    %v1474 = vsub.f32 %v1338, %v1429
    %v1475 = vsub.f32 %v1341, %v1431
    %v1476 = vsub.f32 %v1346, %v1433
    %v1477 = vsub.f32 %v1349, %v1435
    %v1478 = vsub.f32 %v1354, %v1437
    %v1479 = vsub.f32 %v1357, %v1439
    %v1480 = vsub.f32 %v1362, %v1441
    %v1481 = vsub.f32 %v1365, %v1443
    %v1482 = vsub.f32 %v1370, %v1445
    %v1483 = vsub.f32 %v1373, %v1447
    %v1484 = vsub.f32 %v1378, %v1449
    %v1485 = vsub.f32 %v1381, %v1451
    %v1486 = vsub.f32 %v1386, %v1453
    %v1487 = vsub.f32 %v1389, %v1455
    %v1488 = vmul.f32 %v1456, 1.442695
    %v1489 = vpow.pop %v1488
    %v1490 = vmul.f32 %v1457, 1.442695
    %v1491 = vpow.pop %v1490
    %v1492 = vmul.f32 %v1458, 1.442695
    %v1493 = vpow.pop %v1492
    %v1494 = vmul.f32 %v1459, 1.442695
    %v1495 = vpow.pop %v1494
    %v1496 = vmul.f32 %v1460, 1.442695
    %v1497 = vpow.pop %v1496
    %v1498 = vmul.f32 %v1461, 1.442695
    %v1499 = vpow.pop %v1498
    %v1500 = vmul.f32 %v1462, 1.442695
    %v1501 = vpow.pop %v1500
    %v1502 = vmul.f32 %v1463, 1.442695
    %v1503 = vpow.pop %v1502
    %v1504 = vmul.f32 %v1464, 1.442695
    %v1505 = vpow.pop %v1504
    %v1506 = vmul.f32 %v1465, 1.442695
    %v1507 = vpow.pop %v1506
    %v1508 = vmul.f32 %v1466, 1.442695
    %v1509 = vpow.pop %v1508
    %v1510 = vmul.f32 %v1467, 1.442695
    %v1511 = vpow.pop %v1510
    %v1512 = vmul.f32 %v1468, 1.442695
    %v1513 = vpow.pop %v1512
    %v1514 = vmul.f32 %v1469, 1.442695
    %v1515 = vpow.pop %v1514
    %v1516 = vmul.f32 %v1470, 1.442695
    %v1517 = vpow.pop %v1516
    %v1518 = vmul.f32 %v1471, 1.442695
    %v1519 = vpow.pop %v1518
    %v1520 = vmul.f32 %v1472, 1.442695
    %v1521 = vpow.pop %v1520
    %v1522 = vmul.f32 %v1473, 1.442695
    %v1523 = vpow.pop %v1522
    %v1524 = vmul.f32 %v1474, 1.442695
    %v1525 = vpow.pop %v1524
    %v1526 = vmul.f32 %v1475, 1.442695
    %v1527 = vpow.pop %v1526
    %v1528 = vmul.f32 %v1476, 1.442695
    %v1529 = vpow.pop %v1528
    %v1530 = vmul.f32 %v1477, 1.442695
    %v1531 = vpow.pop %v1530
    %v1532 = vmul.f32 %v1478, 1.442695
    %v1533 = vpow.pop %v1532
    %v1534 = vmul.f32 %v1479, 1.442695
    %v1535 = vpow.pop %v1534
    %v1536 = vmul.f32 %v1480, 1.442695
    %v1537 = vpow.pop %v1536
    %v1538 = vmul.f32 %v1481, 1.442695
    %v1539 = vpow.pop %v1538
    %v1540 = vmul.f32 %v1482, 1.442695
    %v1541 = vpow.pop %v1540
    %v1542 = vmul.f32 %v1483, 1.442695
    %v1543 = vpow.pop %v1542
    %v1544 = vmul.f32 %v1484, 1.442695
    %v1545 = vpow.pop %v1544
    %v1546 = vmul.f32 %v1485, 1.442695
    %v1547 = vpow.pop %v1546
    %v1548 = vmul.f32 %v1486, 1.442695
    %v1549 = vpow.pop %v1548
    %v1550 = vmul.f32 %v1487, 1.442695
    %v1551 = vpow.pop %v1550
    %1552 = vadd.xlane.f32.xlu0 %v1489
    %v1553 = vpop.xlane.xlu0 %1552
    %1554 = vadd.xlane.f32.xlu0 %v1491
    %v1555 = vpop.xlane.xlu0 %1554
    %1556 = vadd.xlane.f32.xlu0 %v1493
    %v1557 = vpop.xlane.xlu0 %1556
    %1558 = vadd.xlane.f32.xlu0 %v1495
    %v1559 = vpop.xlane.xlu0 %1558
    %1560 = vadd.xlane.f32.xlu0 %v1497
    %v1561 = vpop.xlane.xlu0 %1560
    %1562 = vadd.xlane.f32.xlu0 %v1499
    %v1563 = vpop.xlane.xlu0 %1562
    %1564 = vadd.xlane.f32.xlu0 %v1501
    %v1565 = vpop.xlane.xlu0 %1564
    %1566 = vadd.xlane.f32.xlu0 %v1503
    %v1567 = vpop.xlane.xlu0 %1566
    %1568 = vadd.xlane.f32.xlu0 %v1505
    %v1569 = vpop.xlane.xlu0 %1568
    %1570 = vadd.xlane.f32.xlu0 %v1507
    %v1571 = vpop.xlane.xlu0 %1570
    %1572 = vadd.xlane.f32.xlu0 %v1509
    %v1573 = vpop.xlane.xlu0 %1572
    %1574 = vadd.xlane.f32.xlu0 %v1511
    %v1575 = vpop.xlane.xlu0 %1574
    %1576 = vadd.xlane.f32.xlu0 %v1513
    %v1577 = vpop.xlane.xlu0 %1576
    %1578 = vadd.xlane.f32.xlu0 %v1515
    %v1579 = vpop.xlane.xlu0 %1578
    %1580 = vadd.xlane.f32.xlu0 %v1517
    %v1581 = vpop.xlane.xlu0 %1580
    %1582 = vadd.xlane.f32.xlu0 %v1519
    %v1583 = vpop.xlane.xlu0 %1582
    %1584 = vadd.xlane.f32.xlu0 %v1521
    %v1585 = vpop.xlane.xlu0 %1584
    %1586 = vadd.xlane.f32.xlu0 %v1523
    %v1587 = vpop.xlane.xlu0 %1586
    %1588 = vadd.xlane.f32.xlu0 %v1525
    %v1589 = vpop.xlane.xlu0 %1588
    %1590 = vadd.xlane.f32.xlu0 %v1527
    %v1591 = vpop.xlane.xlu0 %1590
    %1592 = vadd.xlane.f32.xlu0 %v1529
    %v1593 = vpop.xlane.xlu0 %1592
    %1594 = vadd.xlane.f32.xlu0 %v1531
    %v1595 = vpop.xlane.xlu0 %1594
    %1596 = vadd.xlane.f32.xlu0 %v1533
    %v1597 = vpop.xlane.xlu0 %1596
    %1598 = vadd.xlane.f32.xlu0 %v1535
    %v1599 = vpop.xlane.xlu0 %1598
    %1600 = vadd.xlane.f32.xlu0 %v1537
    %v1601 = vpop.xlane.xlu0 %1600
    %1602 = vadd.xlane.f32.xlu0 %v1539
    %v1603 = vpop.xlane.xlu0 %1602
    %1604 = vadd.xlane.f32.xlu0 %v1541
    %v1605 = vpop.xlane.xlu0 %1604
    %1606 = vadd.xlane.f32.xlu0 %v1543
    %v1607 = vpop.xlane.xlu0 %1606
    %1608 = vadd.xlane.f32.xlu0 %v1545
    %v1609 = vpop.xlane.xlu0 %1608
    %1610 = vadd.xlane.f32.xlu0 %v1547
    %v1611 = vpop.xlane.xlu0 %1610
    %1612 = vadd.xlane.f32.xlu0 %v1549
    %v1613 = vpop.xlane.xlu0 %1612
    %1614 = vadd.xlane.f32.xlu0 %v1551
    %v1615 = vpop.xlane.xlu0 %1614
    %v1616 = vrcp.pop %v1553
    %v1617 = vmul.f32 %v1489, %v1616
    %v1618 = vrcp.pop %v1555
    %v1619 = vmul.f32 %v1491, %v1618
    %v1620 = vrcp.pop %v1557
    %v1621 = vmul.f32 %v1493, %v1620
    %v1622 = vrcp.pop %v1559
    %v1623 = vmul.f32 %v1495, %v1622
    %v1624 = vrcp.pop %v1561
    %v1625 = vmul.f32 %v1497, %v1624
    %v1626 = vrcp.pop %v1563
    %v1627 = vmul.f32 %v1499, %v1626
    %v1628 = vrcp.pop %v1565
    %v1629 = vmul.f32 %v1501, %v1628
    %v1630 = vrcp.pop %v1567
    %v1631 = vmul.f32 %v1503, %v1630
    %v1632 = vrcp.pop %v1569
    %v1633 = vmul.f32 %v1505, %v1632
    %v1634 = vrcp.pop %v1571
    %v1635 = vmul.f32 %v1507, %v1634
    %v1636 = vrcp.pop %v1573
    %v1637 = vmul.f32 %v1509, %v1636
    %v1638 = vrcp.pop %v1575
    %v1639 = vmul.f32 %v1511, %v1638
    %v1640 = vrcp.pop %v1577
    %v1641 = vmul.f32 %v1513, %v1640
    %v1642 = vrcp.pop %v1579
    %v1643 = vmul.f32 %v1515, %v1642
    %v1644 = vrcp.pop %v1581
    %v1645 = vmul.f32 %v1517, %v1644
    %v1646 = vrcp.pop %v1583
    %v1647 = vmul.f32 %v1519, %v1646
    %v1648 = vrcp.pop %v1585
    %v1649 = vmul.f32 %v1521, %v1648
    %v1650 = vrcp.pop %v1587
    %v1651 = vmul.f32 %v1523, %v1650
    %v1652 = vrcp.pop %v1589
    %v1653 = vmul.f32 %v1525, %v1652
    %v1654 = vrcp.pop %v1591
    %v1655 = vmul.f32 %v1527, %v1654
    %v1656 = vrcp.pop %v1593
    %v1657 = vmul.f32 %v1529, %v1656
    %v1658 = vrcp.pop %v1595
    %v1659 = vmul.f32 %v1531, %v1658
    %v1660 = vrcp.pop %v1597
    %v1661 = vmul.f32 %v1533, %v1660
    %v1662 = vrcp.pop %v1599
    %v1663 = vmul.f32 %v1535, %v1662
    %v1664 = vrcp.pop %v1601
    %v1665 = vmul.f32 %v1537, %v1664
    %v1666 = vrcp.pop %v1603
    %v1667 = vmul.f32 %v1539, %v1666
    %v1668 = vrcp.pop %v1605
    %v1669 = vmul.f32 %v1541, %v1668
    %v1670 = vrcp.pop %v1607
    %v1671 = vmul.f32 %v1543, %v1670
    %v1672 = vrcp.pop %v1609
    %v1673 = vmul.f32 %v1545, %v1672
    %v1674 = vrcp.pop %v1611
    %v1675 = vmul.f32 %v1547, %v1674
    %v1676 = vrcp.pop %v1613
    %v1677 = vmul.f32 %v1549, %v1676
    %v1678 = vrcp.pop %v1615
    %v1679 = vmul.f32 %v1551, %v1678
    %1680 = vst [vmem:[#allocation7] sm:$0xff] %v1617
    %1681 = vst [vmem:[#allocation7 + $0x8] sm:$0xff] %v1619
    %1682 = vst [vmem:[#allocation7 + $0x10] sm:$0xff] %v1621
    %1683 = vst [vmem:[#allocation7 + $0x18] sm:$0xff] %v1623
    %1684 = vst [vmem:[#allocation7 + $0x20] sm:$0xff] %v1625
    %1685 = vst [vmem:[#allocation7 + $0x28] sm:$0xff] %v1627
    %1686 = vst [vmem:[#allocation7 + $0x30] sm:$0xff] %v1629
    %1687 = vst [vmem:[#allocation7 + $0x38] sm:$0xff] %v1631
    %1688 = vst [vmem:[#allocation7 + $0x40] sm:$0xff] %v1633
    %1689 = vst [vmem:[#allocation7 + $0x48] sm:$0xff] %v1635
    %1690 = vst [vmem:[#allocation7 + $0x50] sm:$0xff] %v1637
    %1691 = vst [vmem:[#allocation7 + $0x58] sm:$0xff] %v1639
    %1692 = vst [vmem:[#allocation7 + $0x60] sm:$0xff] %v1641
    %1693 = vst [vmem:[#allocation7 + $0x68] sm:$0xff] %v1643
    %1694 = vst [vmem:[#allocation7 + $0x70] sm:$0xff] %v1645
    %1695 = vst [vmem:[#allocation7 + $0x78] sm:$0xff] %v1647
    %1696 = vst [vmem:[#allocation7 + $0x80] sm:$0xff] %v1649
    %1697 = vst [vmem:[#allocation7 + $0x88] sm:$0xff] %v1651
    %1698 = vst [vmem:[#allocation7 + $0x90] sm:$0xff] %v1653
    %1699 = vst [vmem:[#allocation7 + $0x98] sm:$0xff] %v1655
    %1700 = vst [vmem:[#allocation7 + $0xa0] sm:$0xff] %v1657
    %1701 = vst [vmem:[#allocation7 + $0xa8] sm:$0xff] %v1659
    %1702 = vst [vmem:[#allocation7 + $0xb0] sm:$0xff] %v1661
    %1703 = vst [vmem:[#allocation7 + $0xb8] sm:$0xff] %v1663
    %1704 = vst [vmem:[#allocation7 + $0xc0] sm:$0xff] %v1665
    %1705 = vst [vmem:[#allocation7 + $0xc8] sm:$0xff] %v1667
    %1706 = vst [vmem:[#allocation7 + $0xd0] sm:$0xff] %v1669
    %1707 = vst [vmem:[#allocation7 + $0xd8] sm:$0xff] %v1671
    %1708 = vst [vmem:[#allocation7 + $0xe0] sm:$0xff] %v1673
    %1709 = vst [vmem:[#allocation7 + $0xe8] sm:$0xff] %v1675
    %1710 = vst [vmem:[#allocation7 + $0xf0] sm:$0xff] %v1677
    %1711 = vst [vmem:[#allocation7 + $0xf8] sm:$0xff] %v1679
    // Predicated region
    $region46: #{tpu_custom_call.1} parent=1 // pred_check
      _
    $region47: #{tpu_custom_call.1} parent=1 // pred_check_branch
      %1713 = sbr.rel (0) target = $region49
    $region48: #{tpu_custom_call.1} parent=1 // pred_region
      %s1715 = ssub.s32 4096, 4096
      %1716 = vsyncadd [#allocation4], %s1715
      %s1717 = sshll.u32 [#allocation7], 4
      %s1718 = int_to_ptr.vmem [resolvable:$true] %s1717
      %1723 = dma.vmem_to_hbm [thread:$0]  %s1718, 4096, %s9, [#allocation4], 128, 128, 8
    $region49: #{tpu_custom_call.1} parent=1 // pred_fallthru
      _
    // Predicated region
    $region50: #{tpu_custom_call.1} parent=1 // pred_check
      _
    $region51: #{tpu_custom_call.1} parent=1 // pred_check_branch
      %1725 = sbr.rel (0) target = $region53
    $region52: #{tpu_custom_call.1} parent=1 // pred_region
      %1726 = dma.done [#allocation4], 4096
    $region53: #{tpu_custom_call.1} parent=1 // pred_fallthru
      _
    %1727 = vsyncpa [#allocation3], 1
    %1728 = vsyncpa [#allocation6], 1
    %1729 = vsyncpa [#allocation4], 1

</llo_original>
